<compile_context>
chip_gen: v7x
topology: tpu7x:2x2x1
jax: 0.10.0
libtpu: 0.0.40
codegen_flags: <defaults>
</compile_context>

<pallas_src>
import functools

import jax
import jax.numpy as jnp
from jax import lax
from jax.experimental import pallas as pl
from jax.experimental.pallas import tpu as pltpu


# ---------------------------------------------------------------------------
# Fused kernel: 4 LSTM layers + Linear + log_softmax, everything VMEM-resident.
# Fused gate order along the last weight axis: i, f, g, o (PyTorch convention).
# ---------------------------------------------------------------------------
def _fused_autoencoder_kernel(
    x_ref,
    w1i_ref, w1h_ref, b1_ref,
    w2i_ref, w2h_ref, b2_ref,
    w3i_ref, w3h_ref, b3_ref,
    w4i_ref, w4h_ref, b4_ref,
    wc_ref, bc_ref,
    out_ref,
    gin_ref, seq_a_ref, seq_b_ref,
    *, seq_len, batch_pad,
):
    T, BP = seq_len, batch_pad

    def lstm_layer(src_ref, d_in, dst_ref, wih_ref, whh_ref, b_ref):
        # src_ref: (T*BP, >=d_in) f32   time-major, batch padded to 8 sublanes
        # wih_ref: (d_in, 4H) bf16, whh_ref: (H, 4H) bf16, b_ref: (1, 4H) f32
        H = whh_ref.shape[0]
        G = 4 * H

        # Hoisted, batched input projection: ONE fused-gate matmul per layer
        # over all T*BP rows (no sequential dependency).  The pre-activations
        # are parked in VMEM scratch, not held live in vregs across the loop.
        x_bf = src_ref[:, :d_in].astype(jnp.bfloat16)
        gin_ref[:, :G] = (
            jnp.dot(x_bf, wih_ref[...], preferred_element_type=jnp.float32)
            + b_ref[...]
        )

        # Hoist recurrent weights and the gate-activation lane masks out of the
        # serial loop (JAX does not CSE broadcasts inside loops).
        whh = whh_ref[...]                                        # (H, 4H) bf16
        lane = lax.broadcasted_iota(jnp.int32, (BP, G), 1)
        is_g = jnp.logical_and(lane >= 2 * H, lane < 3 * H)       # "g" gate lanes
        scale = jnp.where(is_g, 1.0, 0.5).astype(jnp.float32)
        shift = jnp.where(is_g, 0.0, 0.5).astype(jnp.float32)

        def step(t, carry):
            h, c = carry
            r = pl.multiple_of(t * BP, BP)        # 8-sublane aligned row offset
            # ONE fused-gate recurrent matmul per step: (BP, H) @ (H, 4H).
            a = gin_ref[pl.ds(r, BP), :G] + jnp.dot(
                h.astype(jnp.bfloat16), whh, preferred_element_type=jnp.float32)
            # sigmoid(x) = 0.5*tanh(0.5*x)+0.5 and tanh(x) share one full-width
            # EUP tanh: act = scale*tanh(scale*a)+shift yields sigmoid on the
            # i/f/o lanes and tanh on the g lanes in a single 4H-wide pass.
            act = scale * jnp.tanh(scale * a) + shift
            i_g = act[:, 0:H]
            f_g = act[:, H:2 * H]
            g_g = act[:, 2 * H:3 * H]
            o_g = act[:, 3 * H:4 * H]
            c = f_g * c + i_g * g_g
            h = o_g * jnp.tanh(c)
            dst_ref[pl.ds(r, BP), :H] = h         # hidden seq stays in VMEM
            return (h, c)

        carry0 = (jnp.zeros((BP, H), jnp.float32),
                  jnp.zeros((BP, H), jnp.float32))
        lax.fori_loop(0, T, step, carry0, unroll=True)

    F = x_ref.shape[-1]
    lstm_layer(x_ref, F, seq_a_ref, w1i_ref, w1h_ref, b1_ref)          # enc rnn1: F  -> 2E
    lstm_layer(seq_a_ref, w1h_ref.shape[0], seq_b_ref,
               w2i_ref, w2h_ref, b2_ref)                               # enc rnn2: 2E -> E
    # TODO(synk): pad_packed_sequence is called on a dense tensor in the
    # original code (would raise in PyTorch); treated here as identity.
    # TODO(synk): decoder inter-layer dropout is a training-time op; eval no-op.
    lstm_layer(seq_b_ref, w2h_ref.shape[0], seq_a_ref,
               w3i_ref, w3h_ref, b3_ref)                               # dec L0: E  -> 2E
    lstm_layer(seq_a_ref, w3h_ref.shape[0], seq_b_ref,
               w4i_ref, w4h_ref, b4_ref)                               # dec L1: 2E -> 2E

    # Classification head + log_softmax.  Classes are padded to 128 lanes by
    # the wrapper (zero weight columns, -1e9 bias) so the store is lane-dense
    # and the pad lanes contribute exactly 0 to the softmax normalization.
    E2 = w4h_ref.shape[0]
    h_seq = seq_b_ref[:, :E2].astype(jnp.bfloat16)
    logits = jnp.dot(h_seq, wc_ref[...],
                     preferred_element_type=jnp.float32) + bc_ref[...]
    m = jnp.max(logits, axis=-1, keepdims=True)
    s = logits - m
    lse = jnp.log(jnp.sum(jnp.exp(s), axis=-1, keepdims=True))
    out_ref[...] = (s - lse).astype(out_ref.dtype)


# ---------------------------------------------------------------------------
# Wrapper: layout plumbing (batch-first -> time-major flat, batch padding to 8
# sublanes, class padding to 128 lanes, bf16 weight cast) + single pallas_call.
# ---------------------------------------------------------------------------
def recurrent_autoencoder_forward(params, x_btf):
    """x_btf: (B, T, F) batch-first. Returns (B, T, num_classes) log-probs."""
    B, T, F = x_btf.shape
    BP = ((B + 7) // 8) * 8                     # pad batch to 8 sublanes
    x = jnp.transpose(x_btf, (1, 0, 2)).astype(jnp.float32)   # (T, B, F)
    if BP != B:
        # Padded rows are computed and discarded (unavoidable at the 8-sublane
        # vreg granularity); numerically harmless.
        x = jnp.pad(x, ((0, 0), (0, BP - B), (0, 0)))
    x_flat = x.reshape(T * BP, F)

    def lstm_args(p):
        wih, whh, b = p
        return (wih.astype(jnp.bfloat16), whh.astype(jnp.bfloat16), b)

    wc, bc = params["cls"]
    Hc, C = wc.shape
    CP = max(128, ((C + 127) // 128) * 128)     # lane-dense padded class dim
    wc_p = jnp.zeros((Hc, CP), jnp.float32).at[:, :C].set(wc).astype(jnp.bfloat16)
    bc_p = jnp.full((1, CP), -1e9, jnp.float32).at[0, :C].set(bc)

    hidden_sizes = [params[k][1].shape[0]
                    for k in ("enc_rnn1", "enc_rnn2", "dec_rnn_l0", "dec_rnn_l1")]
    HMAX = max(hidden_sizes)
    GMAX = 4 * HMAX

    n_inputs = 1 + 4 * 3 + 2
    kernel = functools.partial(_fused_autoencoder_kernel, seq_len=T, batch_pad=BP)
    out_flat = pl.pallas_call(
        kernel,
        out_shape=jax.ShapeDtypeStruct((T * BP, CP), jnp.float32),
        in_specs=[pl.BlockSpec(memory_space=pltpu.MemorySpace.VMEM)] * n_inputs,
        out_specs=pl.BlockSpec(memory_space=pltpu.MemorySpace.VMEM),
        scratch_shapes=[
            pltpu.VMEM((T * BP, GMAX), jnp.float32),   # fused-gate pre-activations
            pltpu.VMEM((T * BP, HMAX), jnp.float32),   # hidden sequence (ping)
            pltpu.VMEM((T * BP, HMAX), jnp.float32),   # hidden sequence (pong)
        ],
    )(
        x_flat,
        *lstm_args(params["enc_rnn1"]),
        *lstm_args(params["enc_rnn2"]),
        *lstm_args(params["dec_rnn_l0"]),
        *lstm_args(params["dec_rnn_l1"]),
        wc_p, bc_p,
    )
    out = out_flat.reshape(T, BP, CP)[:, :B, :C]              # drop pads
    return jnp.transpose(out, (1, 0, 2))                      # (B, T, C)


# ---------------------------------------------------------------------------
# Parameter init (PyTorch-style uniform(-1/sqrt(H), 1/sqrt(H)), fused gate
# layout: wih (D, 4H), whh (H, 4H), bias = b_ih + b_hh as (1, 4H); i,f,g,o).
# ---------------------------------------------------------------------------
def init_lstm_params(key, d_in, hidden):
    bound = 1.0 / (float(hidden) ** 0.5)
    k1, k2, k3, k4 = jax.random.split(key, 4)
    wih = jax.random.uniform(k1, (d_in, 4 * hidden), jnp.float32, -bound, bound)
    whh = jax.random.uniform(k2, (hidden, 4 * hidden), jnp.float32, -bound, bound)
    bias = (jax.random.uniform(k3, (1, 4 * hidden), jnp.float32, -bound, bound)
            + jax.random.uniform(k4, (1, 4 * hidden), jnp.float32, -bound, bound))
    return wih, whh, bias


def init_linear_params(key, d_in, d_out):
    bound = 1.0 / (float(d_in) ** 0.5)
    k1, k2 = jax.random.split(key)
    w_t = jax.random.uniform(k1, (d_in, d_out), jnp.float32, -bound, bound)
    b = jax.random.uniform(k2, (d_out,), jnp.float32, -bound, bound)
    return w_t, b


def init_params(key, feature_len, embedding_dim, num_classes):
    E = embedding_dim
    keys = jax.random.split(key, 5)
    return {
        "enc_rnn1": init_lstm_params(keys[0], feature_len, 2 * E),
        "enc_rnn2": init_lstm_params(keys[1], 2 * E, E),
        "dec_rnn_l0": init_lstm_params(keys[2], E, 2 * E),
        "dec_rnn_l1": init_lstm_params(keys[3], 2 * E, 2 * E),
        "cls": init_linear_params(keys[4], 2 * E, num_classes),
    }


# ---------------------------------------------------------------------------
# Pure-JAX reference (same fused param layout, same bf16 matmul quantization).
# Note: per the module spec, the decoder consumes the full encoder output
# sequence (`x = self.decoder(output)`), which is what both paths implement.
# ---------------------------------------------------------------------------
def _ref_lstm(x_tbd, wih, whh, b):
    T, B, D = x_tbd.shape
    H = whh.shape[0]
    wih_b = wih.astype(jnp.bfloat16)
    whh_b = whh.astype(jnp.bfloat16)
    gin = (jnp.dot(x_tbd.reshape(T * B, D).astype(jnp.bfloat16), wih_b,
                   preferred_element_type=jnp.float32).reshape(T, B, 4 * H) + b)

    def step(carry, gin_t):
        h, c = carry
        a = gin_t + jnp.dot(h.astype(jnp.bfloat16), whh_b,
                            preferred_element_type=jnp.float32)
        i = jax.nn.sigmoid(a[:, 0:H])
        f = jax.nn.sigmoid(a[:, H:2 * H])
        g = jnp.tanh(a[:, 2 * H:3 * H])
        o = jax.nn.sigmoid(a[:, 3 * H:4 * H])
        c = f * c + i * g
        h = o * jnp.tanh(c)
        return (h, c), h

    init = (jnp.zeros((B, H), jnp.float32), jnp.zeros((B, H), jnp.float32))
    _, hs = lax.scan(step, init, gin)
    return hs                                                 # (T, B, H)


def ref_forward(params, x_btf):
    x = jnp.transpose(x_btf, (1, 0, 2)).astype(jnp.float32)   # (T, B, F)
    h = _ref_lstm(x, *params["enc_rnn1"])
    h = _ref_lstm(h, *params["enc_rnn2"])
    h = _ref_lstm(h, *params["dec_rnn_l0"])
    h = _ref_lstm(h, *params["dec_rnn_l1"])
    wc, bc = params["cls"]
    T, B, H = h.shape
    logits = jnp.dot(h.reshape(T * B, H).astype(jnp.bfloat16),
                     wc.astype(jnp.bfloat16),
                     preferred_element_type=jnp.float32).reshape(T, B, -1) + bc
    out = jax.nn.log_softmax(logits, axis=-1)
    return jnp.transpose(out, (1, 0, 2))


if __name__ == "__main__":
    # Shapes consistent with the module: feature_len=8, embedding_dim=16
    # (-> hidden 32), num_classes=10, batch=2, seq=8, num_layers=1.
    B, T, F = 2, 8, 8
    E = 16
    C = 10

    key = jax.random.PRNGKey(0)
    k_params, k_x = jax.random.split(key)
    params = init_params(k_params, feature_len=F, embedding_dim=E, num_classes=C)
    x = jax.random.normal(k_x, (B, T, F), jnp.float32)

    out = jax.block_until_ready(recurrent_autoencoder_forward(params, x))
    ref = jax.block_until_ready(ref_forward(params, x))

    assert out.shape == (B, T, C), out.shape
    assert bool(jnp.all(jnp.isfinite(out)))
    max_err = float(jnp.max(jnp.abs(out - ref)))
    assert max_err < 5e-2, max_err

    print("KERNEL_OK")
</pallas_src>

<mosaic_0001>
module attributes {stable_mosaic.version = 11 : i64} {
  func.func @_fused_autoencoder_kernel(%arg0: memref<64x8xf32, #tpu.memory_space<vmem>>, %arg1: memref<8x128xbf16, #tpu.memory_space<vmem>>, %arg2: memref<32x128xbf16, #tpu.memory_space<vmem>>, %arg3: memref<1x128xf32, #tpu.memory_space<vmem>>, %arg4: memref<32x64xbf16, #tpu.memory_space<vmem>>, %arg5: memref<16x64xbf16, #tpu.memory_space<vmem>>, %arg6: memref<1x64xf32, #tpu.memory_space<vmem>>, %arg7: memref<16x128xbf16, #tpu.memory_space<vmem>>, %arg8: memref<32x128xbf16, #tpu.memory_space<vmem>>, %arg9: memref<1x128xf32, #tpu.memory_space<vmem>>, %arg10: memref<32x128xbf16, #tpu.memory_space<vmem>>, %arg11: memref<32x128xbf16, #tpu.memory_space<vmem>>, %arg12: memref<1x128xf32, #tpu.memory_space<vmem>>, %arg13: memref<32x128xbf16, #tpu.memory_space<vmem>>, %arg14: memref<1x128xf32, #tpu.memory_space<vmem>>, %arg15: memref<64x128xf32, #tpu.memory_space<vmem>>, %arg16: memref<64x128xf32, #tpu.memory_space<vmem>>, %arg17: memref<64x32xf32, #tpu.memory_space<vmem>>, %arg18: memref<64x32xf32, #tpu.memory_space<vmem>>) attributes {dimension_semantics = [], scalar_prefetch = 0 : i64, scratch_operands = 3 : i64, tpu.core_type = #tpu.core_type<tc>} {
    %c0 = arith.constant 0 : index
    %c0_0 = arith.constant 0 : index
    %0 = vector.load %arg0[%c0, %c0_0] : memref<64x8xf32, #tpu.memory_space<vmem>>, vector<64x8xf32>
    %1 = arith.truncf %0 : vector<64x8xf32> to vector<64x8xbf16>
    %c0_1 = arith.constant 0 : index
    %c0_2 = arith.constant 0 : index
    %2 = vector.load %arg1[%c0_1, %c0_2] : memref<8x128xbf16, #tpu.memory_space<vmem>>, vector<8x128xbf16>
    %cst = arith.constant dense<0.000000e+00> : vector<64x128xf32>
    %3 = tpu.matmul %1, %2, %cst {dimension_numbers = #tpu.dot_dimension_numbers<[1], [0], [0], [1], [0, 0, 1, 1], [], []>} : vector<64x8xbf16>, vector<8x128xbf16>, vector<64x128xf32> -> vector<64x128xf32>
    %c0_3 = arith.constant 0 : index
    %c0_4 = arith.constant 0 : index
    %4 = vector.load %arg3[%c0_3, %c0_4] : memref<1x128xf32, #tpu.memory_space<vmem>>, vector<1x128xf32>
    %5 = vector.broadcast %4 : vector<1x128xf32> to vector<64x128xf32>
    %6 = arith.addf %3, %5 : vector<64x128xf32>
    %c0_5 = arith.constant 0 : index
    %c0_6 = arith.constant 0 : index
    %7 = vector.load %arg16[%c0_5, %c0_6] : memref<64x128xf32, #tpu.memory_space<vmem>>, vector<64x128xf32>
    tpu.vector_store %arg16[%c0_5, %c0_6], %6 {strides = array<i32>} : memref<64x128xf32, #tpu.memory_space<vmem>>, vector<64x128xf32>,
    %c0_7 = arith.constant 0 : index
    %c0_8 = arith.constant 0 : index
    %8 = vector.load %arg2[%c0_7, %c0_8] : memref<32x128xbf16, #tpu.memory_space<vmem>>, vector<32x128xbf16>
    %9 = tpu.iota {dimensions = array<i32: 1>} : vector<8x128xi32>
    %c64_i32 = arith.constant 64 : i32
    %10 = vector.broadcast %c64_i32 : i32 to vector<8x128xi32>
    %11 = arith.cmpi sge, %9, %10 : vector<8x128xi32>
    %c96_i32 = arith.constant 96 : i32
    %12 = vector.broadcast %c96_i32 : i32 to vector<8x128xi32>
    %13 = arith.cmpi slt, %9, %12 : vector<8x128xi32>
    %14 = arith.andi %11, %13 : vector<8x128xi1>
    %cst_9 = arith.constant 1.000000e+00 : f32
    %cst_10 = arith.constant 5.000000e-01 : f32
    %15 = vector.broadcast %cst_9 : f32 to vector<8x128xf32>
    %16 = vector.broadcast %cst_10 : f32 to vector<8x128xf32>
    %17 = arith.select %14, %15, %16 : vector<8x128xi1>, vector<8x128xf32>
    %cst_11 = arith.constant 0.000000e+00 : f32
    %cst_12 = arith.constant 5.000000e-01 : f32
    %18 = vector.broadcast %cst_11 : f32 to vector<8x128xf32>
    %19 = vector.broadcast %cst_12 : f32 to vector<8x128xf32>
    %20 = arith.select %14, %18, %19 : vector<8x128xi1>, vector<8x128xf32>
    %cst_13 = arith.constant 0.000000e+00 : f32
    %21 = vector.broadcast %cst_13 : f32 to vector<8x32xf32>
    %cst_14 = arith.constant 0.000000e+00 : f32
    %22 = vector.broadcast %cst_14 : f32 to vector<8x32xf32>
    %c0_i32 = arith.constant 0 : i32
    %c8_i32 = arith.constant 8 : i32
    %23 = arith.muli %c0_i32, %c8_i32 : i32
    %24 = tpu.assume_multiple %23, 8 : i32
    %25 = arith.index_cast %24 : i32 to index
    %c0_15 = arith.constant 0 : index
    %26 = vector.load %arg16[%25, %c0_15] : memref<64x128xf32, #tpu.memory_space<vmem>>, vector<8x128xf32>
    %27 = arith.truncf %21 : vector<8x32xf32> to vector<8x32xbf16>
    %cst_16 = arith.constant dense<0.000000e+00> : vector<8x128xf32>
    %28 = tpu.matmul %27, %8, %cst_16 {dimension_numbers = #tpu.dot_dimension_numbers<[1], [0], [0], [1], [0, 0, 1, 1], [], []>} : vector<8x32xbf16>, vector<32x128xbf16>, vector<8x128xf32> -> vector<8x128xf32>
    %29 = arith.addf %26, %28 : vector<8x128xf32>
    %30 = arith.mulf %17, %29 : vector<8x128xf32>
    %31 = math.tanh %30 : vector<8x128xf32>
    %32 = arith.mulf %17, %31 : vector<8x128xf32>
    %33 = arith.addf %32, %20 : vector<8x128xf32>
    %34 = vector.extract_strided_slice %33 {offsets = [0, 0], sizes = [8, 32], strides = [1, 1]} : vector<8x128xf32> to vector<8x32xf32>
    %35 = vector.extract_strided_slice %33 {offsets = [0, 32], sizes = [8, 32], strides = [1, 1]} : vector<8x128xf32> to vector<8x32xf32>
    %36 = vector.extract_strided_slice %33 {offsets = [0, 64], sizes = [8, 32], strides = [1, 1]} : vector<8x128xf32> to vector<8x32xf32>
    %37 = vector.extract_strided_slice %33 {offsets = [0, 96], sizes = [8, 32], strides = [1, 1]} : vector<8x128xf32> to vector<8x32xf32>
    %38 = arith.mulf %35, %22 : vector<8x32xf32>
    %39 = arith.mulf %34, %36 : vector<8x32xf32>
    %40 = arith.addf %38, %39 : vector<8x32xf32>
    %41 = math.tanh %40 : vector<8x32xf32>
    %42 = arith.mulf %37, %41 : vector<8x32xf32>
    %43 = arith.index_cast %24 : i32 to index
    %c0_17 = arith.constant 0 : index
    %44 = vector.load %arg17[%43, %c0_17] : memref<64x32xf32, #tpu.memory_space<vmem>>, vector<8x32xf32>
    tpu.vector_store %arg17[%43, %c0_17], %42 {strides = array<i32>} : memref<64x32xf32, #tpu.memory_space<vmem>>, vector<8x32xf32>,
    %c1_i32 = arith.constant 1 : i32
    %c8_i32_18 = arith.constant 8 : i32
    %45 = arith.muli %c1_i32, %c8_i32_18 : i32
    %46 = tpu.assume_multiple %45, 8 : i32
    %47 = arith.index_cast %46 : i32 to index
    %c0_19 = arith.constant 0 : index
    %48 = vector.load %arg16[%47, %c0_19] : memref<64x128xf32, #tpu.memory_space<vmem>>, vector<8x128xf32>
    %49 = arith.truncf %42 : vector<8x32xf32> to vector<8x32xbf16>
    %cst_20 = arith.constant dense<0.000000e+00> : vector<8x128xf32>
    %50 = tpu.matmul %49, %8, %cst_20 {dimension_numbers = #tpu.dot_dimension_numbers<[1], [0], [0], [1], [0, 0, 1, 1], [], []>} : vector<8x32xbf16>, vector<32x128xbf16>, vector<8x128xf32> -> vector<8x128xf32>
    %51 = arith.addf %48, %50 : vector<8x128xf32>
    %52 = arith.mulf %17, %51 : vector<8x128xf32>
    %53 = math.tanh %52 : vector<8x128xf32>
    %54 = arith.mulf %17, %53 : vector<8x128xf32>
    %55 = arith.addf %54, %20 : vector<8x128xf32>
    %56 = vector.extract_strided_slice %55 {offsets = [0, 0], sizes = [8, 32], strides = [1, 1]} : vector<8x128xf32> to vector<8x32xf32>
    %57 = vector.extract_strided_slice %55 {offsets = [0, 32], sizes = [8, 32], strides = [1, 1]} : vector<8x128xf32> to vector<8x32xf32>
    %58 = vector.extract_strided_slice %55 {offsets = [0, 64], sizes = [8, 32], strides = [1, 1]} : vector<8x128xf32> to vector<8x32xf32>
    %59 = vector.extract_strided_slice %55 {offsets = [0, 96], sizes = [8, 32], strides = [1, 1]} : vector<8x128xf32> to vector<8x32xf32>
    %60 = arith.mulf %57, %40 : vector<8x32xf32>
    %61 = arith.mulf %56, %58 : vector<8x32xf32>
    %62 = arith.addf %60, %61 : vector<8x32xf32>
    %63 = math.tanh %62 : vector<8x32xf32>
    %64 = arith.mulf %59, %63 : vector<8x32xf32>
    %65 = arith.index_cast %46 : i32 to index
    %c0_21 = arith.constant 0 : index
    %66 = vector.load %arg17[%65, %c0_21] : memref<64x32xf32, #tpu.memory_space<vmem>>, vector<8x32xf32>
    tpu.vector_store %arg17[%65, %c0_21], %64 {strides = array<i32>} : memref<64x32xf32, #tpu.memory_space<vmem>>, vector<8x32xf32>,
    %c2_i32 = arith.constant 2 : i32
    %c8_i32_22 = arith.constant 8 : i32
    %67 = arith.muli %c2_i32, %c8_i32_22 : i32
    %68 = tpu.assume_multiple %67, 8 : i32
    %69 = arith.index_cast %68 : i32 to index
    %c0_23 = arith.constant 0 : index
    %70 = vector.load %arg16[%69, %c0_23] : memref<64x128xf32, #tpu.memory_space<vmem>>, vector<8x128xf32>
    %71 = arith.truncf %64 : vector<8x32xf32> to vector<8x32xbf16>
    %cst_24 = arith.constant dense<0.000000e+00> : vector<8x128xf32>
    %72 = tpu.matmul %71, %8, %cst_24 {dimension_numbers = #tpu.dot_dimension_numbers<[1], [0], [0], [1], [0, 0, 1, 1], [], []>} : vector<8x32xbf16>, vector<32x128xbf16>, vector<8x128xf32> -> vector<8x128xf32>
    %73 = arith.addf %70, %72 : vector<8x128xf32>
    %74 = arith.mulf %17, %73 : vector<8x128xf32>
    %75 = math.tanh %74 : vector<8x128xf32>
    %76 = arith.mulf %17, %75 : vector<8x128xf32>
    %77 = arith.addf %76, %20 : vector<8x128xf32>
    %78 = vector.extract_strided_slice %77 {offsets = [0, 0], sizes = [8, 32], strides = [1, 1]} : vector<8x128xf32> to vector<8x32xf32>
    %79 = vector.extract_strided_slice %77 {offsets = [0, 32], sizes = [8, 32], strides = [1, 1]} : vector<8x128xf32> to vector<8x32xf32>
    %80 = vector.extract_strided_slice %77 {offsets = [0, 64], sizes = [8, 32], strides = [1, 1]} : vector<8x128xf32> to vector<8x32xf32>
    %81 = vector.extract_strided_slice %77 {offsets = [0, 96], sizes = [8, 32], strides = [1, 1]} : vector<8x128xf32> to vector<8x32xf32>
    %82 = arith.mulf %79, %62 : vector<8x32xf32>
    %83 = arith.mulf %78, %80 : vector<8x32xf32>
    %84 = arith.addf %82, %83 : vector<8x32xf32>
    %85 = math.tanh %84 : vector<8x32xf32>
    %86 = arith.mulf %81, %85 : vector<8x32xf32>
    %87 = arith.index_cast %68 : i32 to index
    %c0_25 = arith.constant 0 : index
    %88 = vector.load %arg17[%87, %c0_25] : memref<64x32xf32, #tpu.memory_space<vmem>>, vector<8x32xf32>
    tpu.vector_store %arg17[%87, %c0_25], %86 {strides = array<i32>} : memref<64x32xf32, #tpu.memory_space<vmem>>, vector<8x32xf32>,
    %c3_i32 = arith.constant 3 : i32
    %c8_i32_26 = arith.constant 8 : i32
    %89 = arith.muli %c3_i32, %c8_i32_26 : i32
    %90 = tpu.assume_multiple %89, 8 : i32
    %91 = arith.index_cast %90 : i32 to index
    %c0_27 = arith.constant 0 : index
    %92 = vector.load %arg16[%91, %c0_27] : memref<64x128xf32, #tpu.memory_space<vmem>>, vector<8x128xf32>
    %93 = arith.truncf %86 : vector<8x32xf32> to vector<8x32xbf16>
    %cst_28 = arith.constant dense<0.000000e+00> : vector<8x128xf32>
    %94 = tpu.matmul %93, %8, %cst_28 {dimension_numbers = #tpu.dot_dimension_numbers<[1], [0], [0], [1], [0, 0, 1, 1], [], []>} : vector<8x32xbf16>, vector<32x128xbf16>, vector<8x128xf32> -> vector<8x128xf32>
    %95 = arith.addf %92, %94 : vector<8x128xf32>
    %96 = arith.mulf %17, %95 : vector<8x128xf32>
    %97 = math.tanh %96 : vector<8x128xf32>
    %98 = arith.mulf %17, %97 : vector<8x128xf32>
    %99 = arith.addf %98, %20 : vector<8x128xf32>
    %100 = vector.extract_strided_slice %99 {offsets = [0, 0], sizes = [8, 32], strides = [1, 1]} : vector<8x128xf32> to vector<8x32xf32>
    %101 = vector.extract_strided_slice %99 {offsets = [0, 32], sizes = [8, 32], strides = [1, 1]} : vector<8x128xf32> to vector<8x32xf32>
    %102 = vector.extract_strided_slice %99 {offsets = [0, 64], sizes = [8, 32], strides = [1, 1]} : vector<8x128xf32> to vector<8x32xf32>
    %103 = vector.extract_strided_slice %99 {offsets = [0, 96], sizes = [8, 32], strides = [1, 1]} : vector<8x128xf32> to vector<8x32xf32>
    %104 = arith.mulf %101, %84 : vector<8x32xf32>
    %105 = arith.mulf %100, %102 : vector<8x32xf32>
    %106 = arith.addf %104, %105 : vector<8x32xf32>
    %107 = math.tanh %106 : vector<8x32xf32>
    %108 = arith.mulf %103, %107 : vector<8x32xf32>
    %109 = arith.index_cast %90 : i32 to index
    %c0_29 = arith.constant 0 : index
    %110 = vector.load %arg17[%109, %c0_29] : memref<64x32xf32, #tpu.memory_space<vmem>>, vector<8x32xf32>
    tpu.vector_store %arg17[%109, %c0_29], %108 {strides = array<i32>} : memref<64x32xf32, #tpu.memory_space<vmem>>, vector<8x32xf32>,
    %c4_i32 = arith.constant 4 : i32
    %c8_i32_30 = arith.constant 8 : i32
    %111 = arith.muli %c4_i32, %c8_i32_30 : i32
    %112 = tpu.assume_multiple %111, 8 : i32
    %113 = arith.index_cast %112 : i32 to index
    %c0_31 = arith.constant 0 : index
    %114 = vector.load %arg16[%113, %c0_31] : memref<64x128xf32, #tpu.memory_space<vmem>>, vector<8x128xf32>
    %115 = arith.truncf %108 : vector<8x32xf32> to vector<8x32xbf16>
    %cst_32 = arith.constant dense<0.000000e+00> : vector<8x128xf32>
    %116 = tpu.matmul %115, %8, %cst_32 {dimension_numbers = #tpu.dot_dimension_numbers<[1], [0], [0], [1], [0, 0, 1, 1], [], []>} : vector<8x32xbf16>, vector<32x128xbf16>, vector<8x128xf32> -> vector<8x128xf32>
    %117 = arith.addf %114, %116 : vector<8x128xf32>
    %118 = arith.mulf %17, %117 : vector<8x128xf32>
    %119 = math.tanh %118 : vector<8x128xf32>
    %120 = arith.mulf %17, %119 : vector<8x128xf32>
    %121 = arith.addf %120, %20 : vector<8x128xf32>
    %122 = vector.extract_strided_slice %121 {offsets = [0, 0], sizes = [8, 32], strides = [1, 1]} : vector<8x128xf32> to vector<8x32xf32>
    %123 = vector.extract_strided_slice %121 {offsets = [0, 32], sizes = [8, 32], strides = [1, 1]} : vector<8x128xf32> to vector<8x32xf32>
    %124 = vector.extract_strided_slice %121 {offsets = [0, 64], sizes = [8, 32], strides = [1, 1]} : vector<8x128xf32> to vector<8x32xf32>
    %125 = vector.extract_strided_slice %121 {offsets = [0, 96], sizes = [8, 32], strides = [1, 1]} : vector<8x128xf32> to vector<8x32xf32>
    %126 = arith.mulf %123, %106 : vector<8x32xf32>
    %127 = arith.mulf %122, %124 : vector<8x32xf32>
    %128 = arith.addf %126, %127 : vector<8x32xf32>
    %129 = math.tanh %128 : vector<8x32xf32>
    %130 = arith.mulf %125, %129 : vector<8x32xf32>
    %131 = arith.index_cast %112 : i32 to index
    %c0_33 = arith.constant 0 : index
    %132 = vector.load %arg17[%131, %c0_33] : memref<64x32xf32, #tpu.memory_space<vmem>>, vector<8x32xf32>
    tpu.vector_store %arg17[%131, %c0_33], %130 {strides = array<i32>} : memref<64x32xf32, #tpu.memory_space<vmem>>, vector<8x32xf32>,
    %c5_i32 = arith.constant 5 : i32
    %c8_i32_34 = arith.constant 8 : i32
    %133 = arith.muli %c5_i32, %c8_i32_34 : i32
    %134 = tpu.assume_multiple %133, 8 : i32
    %135 = arith.index_cast %134 : i32 to index
    %c0_35 = arith.constant 0 : index
    %136 = vector.load %arg16[%135, %c0_35] : memref<64x128xf32, #tpu.memory_space<vmem>>, vector<8x128xf32>
    %137 = arith.truncf %130 : vector<8x32xf32> to vector<8x32xbf16>
    %cst_36 = arith.constant dense<0.000000e+00> : vector<8x128xf32>
    %138 = tpu.matmul %137, %8, %cst_36 {dimension_numbers = #tpu.dot_dimension_numbers<[1], [0], [0], [1], [0, 0, 1, 1], [], []>} : vector<8x32xbf16>, vector<32x128xbf16>, vector<8x128xf32> -> vector<8x128xf32>
    %139 = arith.addf %136, %138 : vector<8x128xf32>
    %140 = arith.mulf %17, %139 : vector<8x128xf32>
    %141 = math.tanh %140 : vector<8x128xf32>
    %142 = arith.mulf %17, %141 : vector<8x128xf32>
    %143 = arith.addf %142, %20 : vector<8x128xf32>
    %144 = vector.extract_strided_slice %143 {offsets = [0, 0], sizes = [8, 32], strides = [1, 1]} : vector<8x128xf32> to vector<8x32xf32>
    %145 = vector.extract_strided_slice %143 {offsets = [0, 32], sizes = [8, 32], strides = [1, 1]} : vector<8x128xf32> to vector<8x32xf32>
    %146 = vector.extract_strided_slice %143 {offsets = [0, 64], sizes = [8, 32], strides = [1, 1]} : vector<8x128xf32> to vector<8x32xf32>
    %147 = vector.extract_strided_slice %143 {offsets = [0, 96], sizes = [8, 32], strides = [1, 1]} : vector<8x128xf32> to vector<8x32xf32>
    %148 = arith.mulf %145, %128 : vector<8x32xf32>
    %149 = arith.mulf %144, %146 : vector<8x32xf32>
    %150 = arith.addf %148, %149 : vector<8x32xf32>
    %151 = math.tanh %150 : vector<8x32xf32>
    %152 = arith.mulf %147, %151 : vector<8x32xf32>
    %153 = arith.index_cast %134 : i32 to index
    %c0_37 = arith.constant 0 : index
    %154 = vector.load %arg17[%153, %c0_37] : memref<64x32xf32, #tpu.memory_space<vmem>>, vector<8x32xf32>
    tpu.vector_store %arg17[%153, %c0_37], %152 {strides = array<i32>} : memref<64x32xf32, #tpu.memory_space<vmem>>, vector<8x32xf32>,
    %c6_i32 = arith.constant 6 : i32
    %c8_i32_38 = arith.constant 8 : i32
    %155 = arith.muli %c6_i32, %c8_i32_38 : i32
    %156 = tpu.assume_multiple %155, 8 : i32
    %157 = arith.index_cast %156 : i32 to index
    %c0_39 = arith.constant 0 : index
    %158 = vector.load %arg16[%157, %c0_39] : memref<64x128xf32, #tpu.memory_space<vmem>>, vector<8x128xf32>
    %159 = arith.truncf %152 : vector<8x32xf32> to vector<8x32xbf16>
    %cst_40 = arith.constant dense<0.000000e+00> : vector<8x128xf32>
    %160 = tpu.matmul %159, %8, %cst_40 {dimension_numbers = #tpu.dot_dimension_numbers<[1], [0], [0], [1], [0, 0, 1, 1], [], []>} : vector<8x32xbf16>, vector<32x128xbf16>, vector<8x128xf32> -> vector<8x128xf32>
    %161 = arith.addf %158, %160 : vector<8x128xf32>
    %162 = arith.mulf %17, %161 : vector<8x128xf32>
    %163 = math.tanh %162 : vector<8x128xf32>
    %164 = arith.mulf %17, %163 : vector<8x128xf32>
    %165 = arith.addf %164, %20 : vector<8x128xf32>
    %166 = vector.extract_strided_slice %165 {offsets = [0, 0], sizes = [8, 32], strides = [1, 1]} : vector<8x128xf32> to vector<8x32xf32>
    %167 = vector.extract_strided_slice %165 {offsets = [0, 32], sizes = [8, 32], strides = [1, 1]} : vector<8x128xf32> to vector<8x32xf32>
    %168 = vector.extract_strided_slice %165 {offsets = [0, 64], sizes = [8, 32], strides = [1, 1]} : vector<8x128xf32> to vector<8x32xf32>
    %169 = vector.extract_strided_slice %165 {offsets = [0, 96], sizes = [8, 32], strides = [1, 1]} : vector<8x128xf32> to vector<8x32xf32>
    %170 = arith.mulf %167, %150 : vector<8x32xf32>
    %171 = arith.mulf %166, %168 : vector<8x32xf32>
    %172 = arith.addf %170, %171 : vector<8x32xf32>
    %173 = math.tanh %172 : vector<8x32xf32>
    %174 = arith.mulf %169, %173 : vector<8x32xf32>
    %175 = arith.index_cast %156 : i32 to index
    %c0_41 = arith.constant 0 : index
    %176 = vector.load %arg17[%175, %c0_41] : memref<64x32xf32, #tpu.memory_space<vmem>>, vector<8x32xf32>
    tpu.vector_store %arg17[%175, %c0_41], %174 {strides = array<i32>} : memref<64x32xf32, #tpu.memory_space<vmem>>, vector<8x32xf32>,
    %c7_i32 = arith.constant 7 : i32
    %c8_i32_42 = arith.constant 8 : i32
    %177 = arith.muli %c7_i32, %c8_i32_42 : i32
    %178 = tpu.assume_multiple %177, 8 : i32
    %179 = arith.index_cast %178 : i32 to index
    %c0_43 = arith.constant 0 : index
    %180 = vector.load %arg16[%179, %c0_43] : memref<64x128xf32, #tpu.memory_space<vmem>>, vector<8x128xf32>
    %181 = arith.truncf %174 : vector<8x32xf32> to vector<8x32xbf16>
    %cst_44 = arith.constant dense<0.000000e+00> : vector<8x128xf32>
    %182 = tpu.matmul %181, %8, %cst_44 {dimension_numbers = #tpu.dot_dimension_numbers<[1], [0], [0], [1], [0, 0, 1, 1], [], []>} : vector<8x32xbf16>, vector<32x128xbf16>, vector<8x128xf32> -> vector<8x128xf32>
    %183 = arith.addf %180, %182 : vector<8x128xf32>
    %184 = arith.mulf %17, %183 : vector<8x128xf32>
    %185 = math.tanh %184 : vector<8x128xf32>
    %186 = arith.mulf %17, %185 : vector<8x128xf32>
    %187 = arith.addf %186, %20 : vector<8x128xf32>
    %188 = vector.extract_strided_slice %187 {offsets = [0, 0], sizes = [8, 32], strides = [1, 1]} : vector<8x128xf32> to vector<8x32xf32>
    %189 = vector.extract_strided_slice %187 {offsets = [0, 32], sizes = [8, 32], strides = [1, 1]} : vector<8x128xf32> to vector<8x32xf32>
    %190 = vector.extract_strided_slice %187 {offsets = [0, 64], sizes = [8, 32], strides = [1, 1]} : vector<8x128xf32> to vector<8x32xf32>
    %191 = vector.extract_strided_slice %187 {offsets = [0, 96], sizes = [8, 32], strides = [1, 1]} : vector<8x128xf32> to vector<8x32xf32>
    %192 = arith.mulf %189, %172 : vector<8x32xf32>
    %193 = arith.mulf %188, %190 : vector<8x32xf32>
    %194 = arith.addf %192, %193 : vector<8x32xf32>
    %195 = math.tanh %194 : vector<8x32xf32>
    %196 = arith.mulf %191, %195 : vector<8x32xf32>
    %197 = arith.index_cast %178 : i32 to index
    %c0_45 = arith.constant 0 : index
    %198 = vector.load %arg17[%197, %c0_45] : memref<64x32xf32, #tpu.memory_space<vmem>>, vector<8x32xf32>
    tpu.vector_store %arg17[%197, %c0_45], %196 {strides = array<i32>} : memref<64x32xf32, #tpu.memory_space<vmem>>, vector<8x32xf32>,
    %c8_i32_46 = arith.constant 8 : i32
    %c0_47 = arith.constant 0 : index
    %c0_48 = arith.constant 0 : index
    %199 = vector.load %arg17[%c0_47, %c0_48] : memref<64x32xf32, #tpu.memory_space<vmem>>, vector<64x32xf32>
    %200 = arith.truncf %199 : vector<64x32xf32> to vector<64x32xbf16>
    %c0_49 = arith.constant 0 : index
    %c0_50 = arith.constant 0 : index
    %201 = vector.load %arg4[%c0_49, %c0_50] : memref<32x64xbf16, #tpu.memory_space<vmem>>, vector<32x64xbf16>
    %cst_51 = arith.constant dense<0.000000e+00> : vector<64x64xf32>
    %202 = tpu.matmul %200, %201, %cst_51 {dimension_numbers = #tpu.dot_dimension_numbers<[1], [0], [0], [1], [0, 0, 1, 1], [], []>} : vector<64x32xbf16>, vector<32x64xbf16>, vector<64x64xf32> -> vector<64x64xf32>
    %c0_52 = arith.constant 0 : index
    %c0_53 = arith.constant 0 : index
    %203 = vector.load %arg6[%c0_52, %c0_53] : memref<1x64xf32, #tpu.memory_space<vmem>>, vector<1x64xf32>
    %204 = vector.broadcast %203 : vector<1x64xf32> to vector<64x64xf32>
    %205 = arith.addf %202, %204 : vector<64x64xf32>
    %c0_54 = arith.constant 0 : index
    %c0_55 = arith.constant 0 : index
    %206 = vector.load %arg16[%c0_54, %c0_55] : memref<64x128xf32, #tpu.memory_space<vmem>>, vector<64x64xf32>
    tpu.vector_store %arg16[%c0_54, %c0_55], %205 {strides = array<i32>} : memref<64x128xf32, #tpu.memory_space<vmem>>, vector<64x64xf32>,
    %c0_56 = arith.constant 0 : index
    %c0_57 = arith.constant 0 : index
    %207 = vector.load %arg5[%c0_56, %c0_57] : memref<16x64xbf16, #tpu.memory_space<vmem>>, vector<16x64xbf16>
    %208 = tpu.iota {dimensions = array<i32: 1>} : vector<8x64xi32>
    %c32_i32 = arith.constant 32 : i32
    %209 = vector.broadcast %c32_i32 : i32 to vector<8x64xi32>
    %210 = arith.cmpi sge, %208, %209 : vector<8x64xi32>
    %c48_i32 = arith.constant 48 : i32
    %211 = vector.broadcast %c48_i32 : i32 to vector<8x64xi32>
    %212 = arith.cmpi slt, %208, %211 : vector<8x64xi32>
    %213 = arith.andi %210, %212 : vector<8x64xi1>
    %cst_58 = arith.constant 1.000000e+00 : f32
    %cst_59 = arith.constant 5.000000e-01 : f32
    %214 = vector.broadcast %cst_58 : f32 to vector<8x64xf32>
    %215 = vector.broadcast %cst_59 : f32 to vector<8x64xf32>
    %216 = arith.select %213, %214, %215 : vector<8x64xi1>, vector<8x64xf32>
    %cst_60 = arith.constant 0.000000e+00 : f32
    %cst_61 = arith.constant 5.000000e-01 : f32
    %217 = vector.broadcast %cst_60 : f32 to vector<8x64xf32>
    %218 = vector.broadcast %cst_61 : f32 to vector<8x64xf32>
    %219 = arith.select %213, %217, %218 : vector<8x64xi1>, vector<8x64xf32>
    %cst_62 = arith.constant 0.000000e+00 : f32
    %220 = vector.broadcast %cst_62 : f32 to vector<8x16xf32>
    %cst_63 = arith.constant 0.000000e+00 : f32
    %221 = vector.broadcast %cst_63 : f32 to vector<8x16xf32>
    %c0_i32_64 = arith.constant 0 : i32
    %c8_i32_65 = arith.constant 8 : i32
    %222 = arith.muli %c0_i32_64, %c8_i32_65 : i32
    %223 = tpu.assume_multiple %222, 8 : i32
    %224 = arith.index_cast %223 : i32 to index
    %c0_66 = arith.constant 0 : index
    %225 = vector.load %arg16[%224, %c0_66] : memref<64x128xf32, #tpu.memory_space<vmem>>, vector<8x64xf32>
    %226 = arith.truncf %220 : vector<8x16xf32> to vector<8x16xbf16>
    %cst_67 = arith.constant dense<0.000000e+00> : vector<8x64xf32>
    %227 = tpu.matmul %226, %207, %cst_67 {dimension_numbers = #tpu.dot_dimension_numbers<[1], [0], [0], [1], [0, 0, 1, 1], [], []>} : vector<8x16xbf16>, vector<16x64xbf16>, vector<8x64xf32> -> vector<8x64xf32>
    %228 = arith.addf %225, %227 : vector<8x64xf32>
    %229 = arith.mulf %216, %228 : vector<8x64xf32>
    %230 = math.tanh %229 : vector<8x64xf32>
    %231 = arith.mulf %216, %230 : vector<8x64xf32>
    %232 = arith.addf %231, %219 : vector<8x64xf32>
    %233 = vector.extract_strided_slice %232 {offsets = [0, 0], sizes = [8, 16], strides = [1, 1]} : vector<8x64xf32> to vector<8x16xf32>
    %234 = vector.extract_strided_slice %232 {offsets = [0, 16], sizes = [8, 16], strides = [1, 1]} : vector<8x64xf32> to vector<8x16xf32>
    %235 = vector.extract_strided_slice %232 {offsets = [0, 32], sizes = [8, 16], strides = [1, 1]} : vector<8x64xf32> to vector<8x16xf32>
    %236 = vector.extract_strided_slice %232 {offsets = [0, 48], sizes = [8, 16], strides = [1, 1]} : vector<8x64xf32> to vector<8x16xf32>
    %237 = arith.mulf %234, %221 : vector<8x16xf32>
    %238 = arith.mulf %233, %235 : vector<8x16xf32>
    %239 = arith.addf %237, %238 : vector<8x16xf32>
    %240 = math.tanh %239 : vector<8x16xf32>
    %241 = arith.mulf %236, %240 : vector<8x16xf32>
    %242 = arith.index_cast %223 : i32 to index
    %c0_68 = arith.constant 0 : index
    %243 = vector.load %arg18[%242, %c0_68] : memref<64x32xf32, #tpu.memory_space<vmem>>, vector<8x16xf32>
    tpu.vector_store %arg18[%242, %c0_68], %241 {strides = array<i32>} : memref<64x32xf32, #tpu.memory_space<vmem>>, vector<8x16xf32>,
    %c1_i32_69 = arith.constant 1 : i32
    %c8_i32_70 = arith.constant 8 : i32
    %244 = arith.muli %c1_i32_69, %c8_i32_70 : i32
    %245 = tpu.assume_multiple %244, 8 : i32
    %246 = arith.index_cast %245 : i32 to index
    %c0_71 = arith.constant 0 : index
    %247 = vector.load %arg16[%246, %c0_71] : memref<64x128xf32, #tpu.memory_space<vmem>>, vector<8x64xf32>
    %248 = arith.truncf %241 : vector<8x16xf32> to vector<8x16xbf16>
    %cst_72 = arith.constant dense<0.000000e+00> : vector<8x64xf32>
    %249 = tpu.matmul %248, %207, %cst_72 {dimension_numbers = #tpu.dot_dimension_numbers<[1], [0], [0], [1], [0, 0, 1, 1], [], []>} : vector<8x16xbf16>, vector<16x64xbf16>, vector<8x64xf32> -> vector<8x64xf32>
    %250 = arith.addf %247, %249 : vector<8x64xf32>
    %251 = arith.mulf %216, %250 : vector<8x64xf32>
    %252 = math.tanh %251 : vector<8x64xf32>
    %253 = arith.mulf %216, %252 : vector<8x64xf32>
    %254 = arith.addf %253, %219 : vector<8x64xf32>
    %255 = vector.extract_strided_slice %254 {offsets = [0, 0], sizes = [8, 16], strides = [1, 1]} : vector<8x64xf32> to vector<8x16xf32>
    %256 = vector.extract_strided_slice %254 {offsets = [0, 16], sizes = [8, 16], strides = [1, 1]} : vector<8x64xf32> to vector<8x16xf32>
    %257 = vector.extract_strided_slice %254 {offsets = [0, 32], sizes = [8, 16], strides = [1, 1]} : vector<8x64xf32> to vector<8x16xf32>
    %258 = vector.extract_strided_slice %254 {offsets = [0, 48], sizes = [8, 16], strides = [1, 1]} : vector<8x64xf32> to vector<8x16xf32>
    %259 = arith.mulf %256, %239 : vector<8x16xf32>
    %260 = arith.mulf %255, %257 : vector<8x16xf32>
    %261 = arith.addf %259, %260 : vector<8x16xf32>
    %262 = math.tanh %261 : vector<8x16xf32>
    %263 = arith.mulf %258, %262 : vector<8x16xf32>
    %264 = arith.index_cast %245 : i32 to index
    %c0_73 = arith.constant 0 : index
    %265 = vector.load %arg18[%264, %c0_73] : memref<64x32xf32, #tpu.memory_space<vmem>>, vector<8x16xf32>
    tpu.vector_store %arg18[%264, %c0_73], %263 {strides = array<i32>} : memref<64x32xf32, #tpu.memory_space<vmem>>, vector<8x16xf32>,
    %c2_i32_74 = arith.constant 2 : i32
    %c8_i32_75 = arith.constant 8 : i32
    %266 = arith.muli %c2_i32_74, %c8_i32_75 : i32
    %267 = tpu.assume_multiple %266, 8 : i32
    %268 = arith.index_cast %267 : i32 to index
    %c0_76 = arith.constant 0 : index
    %269 = vector.load %arg16[%268, %c0_76] : memref<64x128xf32, #tpu.memory_space<vmem>>, vector<8x64xf32>
    %270 = arith.truncf %263 : vector<8x16xf32> to vector<8x16xbf16>
    %cst_77 = arith.constant dense<0.000000e+00> : vector<8x64xf32>
    %271 = tpu.matmul %270, %207, %cst_77 {dimension_numbers = #tpu.dot_dimension_numbers<[1], [0], [0], [1], [0, 0, 1, 1], [], []>} : vector<8x16xbf16>, vector<16x64xbf16>, vector<8x64xf32> -> vector<8x64xf32>
    %272 = arith.addf %269, %271 : vector<8x64xf32>
    %273 = arith.mulf %216, %272 : vector<8x64xf32>
    %274 = math.tanh %273 : vector<8x64xf32>
    %275 = arith.mulf %216, %274 : vector<8x64xf32>
    %276 = arith.addf %275, %219 : vector<8x64xf32>
    %277 = vector.extract_strided_slice %276 {offsets = [0, 0], sizes = [8, 16], strides = [1, 1]} : vector<8x64xf32> to vector<8x16xf32>
    %278 = vector.extract_strided_slice %276 {offsets = [0, 16], sizes = [8, 16], strides = [1, 1]} : vector<8x64xf32> to vector<8x16xf32>
    %279 = vector.extract_strided_slice %276 {offsets = [0, 32], sizes = [8, 16], strides = [1, 1]} : vector<8x64xf32> to vector<8x16xf32>
    %280 = vector.extract_strided_slice %276 {offsets = [0, 48], sizes = [8, 16], strides = [1, 1]} : vector<8x64xf32> to vector<8x16xf32>
    %281 = arith.mulf %278, %261 : vector<8x16xf32>
    %282 = arith.mulf %277, %279 : vector<8x16xf32>
    %283 = arith.addf %281, %282 : vector<8x16xf32>
    %284 = math.tanh %283 : vector<8x16xf32>
    %285 = arith.mulf %280, %284 : vector<8x16xf32>
    %286 = arith.index_cast %267 : i32 to index
    %c0_78 = arith.constant 0 : index
    %287 = vector.load %arg18[%286, %c0_78] : memref<64x32xf32, #tpu.memory_space<vmem>>, vector<8x16xf32>
    tpu.vector_store %arg18[%286, %c0_78], %285 {strides = array<i32>} : memref<64x32xf32, #tpu.memory_space<vmem>>, vector<8x16xf32>,
    %c3_i32_79 = arith.constant 3 : i32
    %c8_i32_80 = arith.constant 8 : i32
    %288 = arith.muli %c3_i32_79, %c8_i32_80 : i32
    %289 = tpu.assume_multiple %288, 8 : i32
    %290 = arith.index_cast %289 : i32 to index
    %c0_81 = arith.constant 0 : index
    %291 = vector.load %arg16[%290, %c0_81] : memref<64x128xf32, #tpu.memory_space<vmem>>, vector<8x64xf32>
    %292 = arith.truncf %285 : vector<8x16xf32> to vector<8x16xbf16>
    %cst_82 = arith.constant dense<0.000000e+00> : vector<8x64xf32>
    %293 = tpu.matmul %292, %207, %cst_82 {dimension_numbers = #tpu.dot_dimension_numbers<[1], [0], [0], [1], [0, 0, 1, 1], [], []>} : vector<8x16xbf16>, vector<16x64xbf16>, vector<8x64xf32> -> vector<8x64xf32>
    %294 = arith.addf %291, %293 : vector<8x64xf32>
    %295 = arith.mulf %216, %294 : vector<8x64xf32>
    %296 = math.tanh %295 : vector<8x64xf32>
    %297 = arith.mulf %216, %296 : vector<8x64xf32>
    %298 = arith.addf %297, %219 : vector<8x64xf32>
    %299 = vector.extract_strided_slice %298 {offsets = [0, 0], sizes = [8, 16], strides = [1, 1]} : vector<8x64xf32> to vector<8x16xf32>
    %300 = vector.extract_strided_slice %298 {offsets = [0, 16], sizes = [8, 16], strides = [1, 1]} : vector<8x64xf32> to vector<8x16xf32>
    %301 = vector.extract_strided_slice %298 {offsets = [0, 32], sizes = [8, 16], strides = [1, 1]} : vector<8x64xf32> to vector<8x16xf32>
    %302 = vector.extract_strided_slice %298 {offsets = [0, 48], sizes = [8, 16], strides = [1, 1]} : vector<8x64xf32> to vector<8x16xf32>
    %303 = arith.mulf %300, %283 : vector<8x16xf32>
    %304 = arith.mulf %299, %301 : vector<8x16xf32>
    %305 = arith.addf %303, %304 : vector<8x16xf32>
    %306 = math.tanh %305 : vector<8x16xf32>
    %307 = arith.mulf %302, %306 : vector<8x16xf32>
    %308 = arith.index_cast %289 : i32 to index
    %c0_83 = arith.constant 0 : index
    %309 = vector.load %arg18[%308, %c0_83] : memref<64x32xf32, #tpu.memory_space<vmem>>, vector<8x16xf32>
    tpu.vector_store %arg18[%308, %c0_83], %307 {strides = array<i32>} : memref<64x32xf32, #tpu.memory_space<vmem>>, vector<8x16xf32>,
    %c4_i32_84 = arith.constant 4 : i32
    %c8_i32_85 = arith.constant 8 : i32
    %310 = arith.muli %c4_i32_84, %c8_i32_85 : i32
    %311 = tpu.assume_multiple %310, 8 : i32
    %312 = arith.index_cast %311 : i32 to index
    %c0_86 = arith.constant 0 : index
    %313 = vector.load %arg16[%312, %c0_86] : memref<64x128xf32, #tpu.memory_space<vmem>>, vector<8x64xf32>
    %314 = arith.truncf %307 : vector<8x16xf32> to vector<8x16xbf16>
    %cst_87 = arith.constant dense<0.000000e+00> : vector<8x64xf32>
    %315 = tpu.matmul %314, %207, %cst_87 {dimension_numbers = #tpu.dot_dimension_numbers<[1], [0], [0], [1], [0, 0, 1, 1], [], []>} : vector<8x16xbf16>, vector<16x64xbf16>, vector<8x64xf32> -> vector<8x64xf32>
    %316 = arith.addf %313, %315 : vector<8x64xf32>
    %317 = arith.mulf %216, %316 : vector<8x64xf32>
    %318 = math.tanh %317 : vector<8x64xf32>
    %319 = arith.mulf %216, %318 : vector<8x64xf32>
    %320 = arith.addf %319, %219 : vector<8x64xf32>
    %321 = vector.extract_strided_slice %320 {offsets = [0, 0], sizes = [8, 16], strides = [1, 1]} : vector<8x64xf32> to vector<8x16xf32>
    %322 = vector.extract_strided_slice %320 {offsets = [0, 16], sizes = [8, 16], strides = [1, 1]} : vector<8x64xf32> to vector<8x16xf32>
    %323 = vector.extract_strided_slice %320 {offsets = [0, 32], sizes = [8, 16], strides = [1, 1]} : vector<8x64xf32> to vector<8x16xf32>
    %324 = vector.extract_strided_slice %320 {offsets = [0, 48], sizes = [8, 16], strides = [1, 1]} : vector<8x64xf32> to vector<8x16xf32>
    %325 = arith.mulf %322, %305 : vector<8x16xf32>
    %326 = arith.mulf %321, %323 : vector<8x16xf32>
    %327 = arith.addf %325, %326 : vector<8x16xf32>
    %328 = math.tanh %327 : vector<8x16xf32>
    %329 = arith.mulf %324, %328 : vector<8x16xf32>
    %330 = arith.index_cast %311 : i32 to index
    %c0_88 = arith.constant 0 : index
    %331 = vector.load %arg18[%330, %c0_88] : memref<64x32xf32, #tpu.memory_space<vmem>>, vector<8x16xf32>
    tpu.vector_store %arg18[%330, %c0_88], %329 {strides = array<i32>} : memref<64x32xf32, #tpu.memory_space<vmem>>, vector<8x16xf32>,
    %c5_i32_89 = arith.constant 5 : i32
    %c8_i32_90 = arith.constant 8 : i32
    %332 = arith.muli %c5_i32_89, %c8_i32_90 : i32
    %333 = tpu.assume_multiple %332, 8 : i32
    %334 = arith.index_cast %333 : i32 to index
    %c0_91 = arith.constant 0 : index
    %335 = vector.load %arg16[%334, %c0_91] : memref<64x128xf32, #tpu.memory_space<vmem>>, vector<8x64xf32>
    %336 = arith.truncf %329 : vector<8x16xf32> to vector<8x16xbf16>
    %cst_92 = arith.constant dense<0.000000e+00> : vector<8x64xf32>
    %337 = tpu.matmul %336, %207, %cst_92 {dimension_numbers = #tpu.dot_dimension_numbers<[1], [0], [0], [1], [0, 0, 1, 1], [], []>} : vector<8x16xbf16>, vector<16x64xbf16>, vector<8x64xf32> -> vector<8x64xf32>
    %338 = arith.addf %335, %337 : vector<8x64xf32>
    %339 = arith.mulf %216, %338 : vector<8x64xf32>
    %340 = math.tanh %339 : vector<8x64xf32>
    %341 = arith.mulf %216, %340 : vector<8x64xf32>
    %342 = arith.addf %341, %219 : vector<8x64xf32>
    %343 = vector.extract_strided_slice %342 {offsets = [0, 0], sizes = [8, 16], strides = [1, 1]} : vector<8x64xf32> to vector<8x16xf32>
    %344 = vector.extract_strided_slice %342 {offsets = [0, 16], sizes = [8, 16], strides = [1, 1]} : vector<8x64xf32> to vector<8x16xf32>
    %345 = vector.extract_strided_slice %342 {offsets = [0, 32], sizes = [8, 16], strides = [1, 1]} : vector<8x64xf32> to vector<8x16xf32>
    %346 = vector.extract_strided_slice %342 {offsets = [0, 48], sizes = [8, 16], strides = [1, 1]} : vector<8x64xf32> to vector<8x16xf32>
    %347 = arith.mulf %344, %327 : vector<8x16xf32>
    %348 = arith.mulf %343, %345 : vector<8x16xf32>
    %349 = arith.addf %347, %348 : vector<8x16xf32>
    %350 = math.tanh %349 : vector<8x16xf32>
    %351 = arith.mulf %346, %350 : vector<8x16xf32>
    %352 = arith.index_cast %333 : i32 to index
    %c0_93 = arith.constant 0 : index
    %353 = vector.load %arg18[%352, %c0_93] : memref<64x32xf32, #tpu.memory_space<vmem>>, vector<8x16xf32>
    tpu.vector_store %arg18[%352, %c0_93], %351 {strides = array<i32>} : memref<64x32xf32, #tpu.memory_space<vmem>>, vector<8x16xf32>,
    %c6_i32_94 = arith.constant 6 : i32
    %c8_i32_95 = arith.constant 8 : i32
    %354 = arith.muli %c6_i32_94, %c8_i32_95 : i32
    %355 = tpu.assume_multiple %354, 8 : i32
    %356 = arith.index_cast %355 : i32 to index
    %c0_96 = arith.constant 0 : index
    %357 = vector.load %arg16[%356, %c0_96] : memref<64x128xf32, #tpu.memory_space<vmem>>, vector<8x64xf32>
    %358 = arith.truncf %351 : vector<8x16xf32> to vector<8x16xbf16>
    %cst_97 = arith.constant dense<0.000000e+00> : vector<8x64xf32>
    %359 = tpu.matmul %358, %207, %cst_97 {dimension_numbers = #tpu.dot_dimension_numbers<[1], [0], [0], [1], [0, 0, 1, 1], [], []>} : vector<8x16xbf16>, vector<16x64xbf16>, vector<8x64xf32> -> vector<8x64xf32>
    %360 = arith.addf %357, %359 : vector<8x64xf32>
    %361 = arith.mulf %216, %360 : vector<8x64xf32>
    %362 = math.tanh %361 : vector<8x64xf32>
    %363 = arith.mulf %216, %362 : vector<8x64xf32>
    %364 = arith.addf %363, %219 : vector<8x64xf32>
    %365 = vector.extract_strided_slice %364 {offsets = [0, 0], sizes = [8, 16], strides = [1, 1]} : vector<8x64xf32> to vector<8x16xf32>
    %366 = vector.extract_strided_slice %364 {offsets = [0, 16], sizes = [8, 16], strides = [1, 1]} : vector<8x64xf32> to vector<8x16xf32>
    %367 = vector.extract_strided_slice %364 {offsets = [0, 32], sizes = [8, 16], strides = [1, 1]} : vector<8x64xf32> to vector<8x16xf32>
    %368 = vector.extract_strided_slice %364 {offsets = [0, 48], sizes = [8, 16], strides = [1, 1]} : vector<8x64xf32> to vector<8x16xf32>
    %369 = arith.mulf %366, %349 : vector<8x16xf32>
    %370 = arith.mulf %365, %367 : vector<8x16xf32>
    %371 = arith.addf %369, %370 : vector<8x16xf32>
    %372 = math.tanh %371 : vector<8x16xf32>
    %373 = arith.mulf %368, %372 : vector<8x16xf32>
    %374 = arith.index_cast %355 : i32 to index
    %c0_98 = arith.constant 0 : index
    %375 = vector.load %arg18[%374, %c0_98] : memref<64x32xf32, #tpu.memory_space<vmem>>, vector<8x16xf32>
    tpu.vector_store %arg18[%374, %c0_98], %373 {strides = array<i32>} : memref<64x32xf32, #tpu.memory_space<vmem>>, vector<8x16xf32>,
    %c7_i32_99 = arith.constant 7 : i32
    %c8_i32_100 = arith.constant 8 : i32
    %376 = arith.muli %c7_i32_99, %c8_i32_100 : i32
    %377 = tpu.assume_multiple %376, 8 : i32
    %378 = arith.index_cast %377 : i32 to index
    %c0_101 = arith.constant 0 : index
    %379 = vector.load %arg16[%378, %c0_101] : memref<64x128xf32, #tpu.memory_space<vmem>>, vector<8x64xf32>
    %380 = arith.truncf %373 : vector<8x16xf32> to vector<8x16xbf16>
    %cst_102 = arith.constant dense<0.000000e+00> : vector<8x64xf32>
    %381 = tpu.matmul %380, %207, %cst_102 {dimension_numbers = #tpu.dot_dimension_numbers<[1], [0], [0], [1], [0, 0, 1, 1], [], []>} : vector<8x16xbf16>, vector<16x64xbf16>, vector<8x64xf32> -> vector<8x64xf32>
    %382 = arith.addf %379, %381 : vector<8x64xf32>
    %383 = arith.mulf %216, %382 : vector<8x64xf32>
    %384 = math.tanh %383 : vector<8x64xf32>
    %385 = arith.mulf %216, %384 : vector<8x64xf32>
    %386 = arith.addf %385, %219 : vector<8x64xf32>
    %387 = vector.extract_strided_slice %386 {offsets = [0, 0], sizes = [8, 16], strides = [1, 1]} : vector<8x64xf32> to vector<8x16xf32>
    %388 = vector.extract_strided_slice %386 {offsets = [0, 16], sizes = [8, 16], strides = [1, 1]} : vector<8x64xf32> to vector<8x16xf32>
    %389 = vector.extract_strided_slice %386 {offsets = [0, 32], sizes = [8, 16], strides = [1, 1]} : vector<8x64xf32> to vector<8x16xf32>
    %390 = vector.extract_strided_slice %386 {offsets = [0, 48], sizes = [8, 16], strides = [1, 1]} : vector<8x64xf32> to vector<8x16xf32>
    %391 = arith.mulf %388, %371 : vector<8x16xf32>
    %392 = arith.mulf %387, %389 : vector<8x16xf32>
    %393 = arith.addf %391, %392 : vector<8x16xf32>
    %394 = math.tanh %393 : vector<8x16xf32>
    %395 = arith.mulf %390, %394 : vector<8x16xf32>
    %396 = arith.index_cast %377 : i32 to index
    %c0_103 = arith.constant 0 : index
    %397 = vector.load %arg18[%396, %c0_103] : memref<64x32xf32, #tpu.memory_space<vmem>>, vector<8x16xf32>
    tpu.vector_store %arg18[%396, %c0_103], %395 {strides = array<i32>} : memref<64x32xf32, #tpu.memory_space<vmem>>, vector<8x16xf32>,
    %c8_i32_104 = arith.constant 8 : i32
    %c0_105 = arith.constant 0 : index
    %c0_106 = arith.constant 0 : index
    %398 = vector.load %arg18[%c0_105, %c0_106] : memref<64x32xf32, #tpu.memory_space<vmem>>, vector<64x16xf32>
    %399 = arith.truncf %398 : vector<64x16xf32> to vector<64x16xbf16>
    %c0_107 = arith.constant 0 : index
    %c0_108 = arith.constant 0 : index
    %400 = vector.load %arg7[%c0_107, %c0_108] : memref<16x128xbf16, #tpu.memory_space<vmem>>, vector<16x128xbf16>
    %cst_109 = arith.constant dense<0.000000e+00> : vector<64x128xf32>
    %401 = tpu.matmul %399, %400, %cst_109 {dimension_numbers = #tpu.dot_dimension_numbers<[1], [0], [0], [1], [0, 0, 1, 1], [], []>} : vector<64x16xbf16>, vector<16x128xbf16>, vector<64x128xf32> -> vector<64x128xf32>
    %c0_110 = arith.constant 0 : index
    %c0_111 = arith.constant 0 : index
    %402 = vector.load %arg9[%c0_110, %c0_111] : memref<1x128xf32, #tpu.memory_space<vmem>>, vector<1x128xf32>
    %403 = vector.broadcast %402 : vector<1x128xf32> to vector<64x128xf32>
    %404 = arith.addf %401, %403 : vector<64x128xf32>
    %c0_112 = arith.constant 0 : index
    %c0_113 = arith.constant 0 : index
    %405 = vector.load %arg16[%c0_112, %c0_113] : memref<64x128xf32, #tpu.memory_space<vmem>>, vector<64x128xf32>
    tpu.vector_store %arg16[%c0_112, %c0_113], %404 {strides = array<i32>} : memref<64x128xf32, #tpu.memory_space<vmem>>, vector<64x128xf32>,
    %c0_114 = arith.constant 0 : index
    %c0_115 = arith.constant 0 : index
    %406 = vector.load %arg8[%c0_114, %c0_115] : memref<32x128xbf16, #tpu.memory_space<vmem>>, vector<32x128xbf16>
    %407 = tpu.iota {dimensions = array<i32: 1>} : vector<8x128xi32>
    %c64_i32_116 = arith.constant 64 : i32
    %408 = vector.broadcast %c64_i32_116 : i32 to vector<8x128xi32>
    %409 = arith.cmpi sge, %407, %408 : vector<8x128xi32>
    %c96_i32_117 = arith.constant 96 : i32
    %410 = vector.broadcast %c96_i32_117 : i32 to vector<8x128xi32>
    %411 = arith.cmpi slt, %407, %410 : vector<8x128xi32>
    %412 = arith.andi %409, %411 : vector<8x128xi1>
    %cst_118 = arith.constant 1.000000e+00 : f32
    %cst_119 = arith.constant 5.000000e-01 : f32
    %413 = vector.broadcast %cst_118 : f32 to vector<8x128xf32>
    %414 = vector.broadcast %cst_119 : f32 to vector<8x128xf32>
    %415 = arith.select %412, %413, %414 : vector<8x128xi1>, vector<8x128xf32>
    %cst_120 = arith.constant 0.000000e+00 : f32
    %cst_121 = arith.constant 5.000000e-01 : f32
    %416 = vector.broadcast %cst_120 : f32 to vector<8x128xf32>
    %417 = vector.broadcast %cst_121 : f32 to vector<8x128xf32>
    %418 = arith.select %412, %416, %417 : vector<8x128xi1>, vector<8x128xf32>
    %cst_122 = arith.constant 0.000000e+00 : f32
    %419 = vector.broadcast %cst_122 : f32 to vector<8x32xf32>
    %cst_123 = arith.constant 0.000000e+00 : f32
    %420 = vector.broadcast %cst_123 : f32 to vector<8x32xf32>
    %c0_i32_124 = arith.constant 0 : i32
    %c8_i32_125 = arith.constant 8 : i32
    %421 = arith.muli %c0_i32_124, %c8_i32_125 : i32
    %422 = tpu.assume_multiple %421, 8 : i32
    %423 = arith.index_cast %422 : i32 to index
    %c0_126 = arith.constant 0 : index
    %424 = vector.load %arg16[%423, %c0_126] : memref<64x128xf32, #tpu.memory_space<vmem>>, vector<8x128xf32>
    %425 = arith.truncf %419 : vector<8x32xf32> to vector<8x32xbf16>
    %cst_127 = arith.constant dense<0.000000e+00> : vector<8x128xf32>
    %426 = tpu.matmul %425, %406, %cst_127 {dimension_numbers = #tpu.dot_dimension_numbers<[1], [0], [0], [1], [0, 0, 1, 1], [], []>} : vector<8x32xbf16>, vector<32x128xbf16>, vector<8x128xf32> -> vector<8x128xf32>
    %427 = arith.addf %424, %426 : vector<8x128xf32>
    %428 = arith.mulf %415, %427 : vector<8x128xf32>
    %429 = math.tanh %428 : vector<8x128xf32>
    %430 = arith.mulf %415, %429 : vector<8x128xf32>
    %431 = arith.addf %430, %418 : vector<8x128xf32>
    %432 = vector.extract_strided_slice %431 {offsets = [0, 0], sizes = [8, 32], strides = [1, 1]} : vector<8x128xf32> to vector<8x32xf32>
    %433 = vector.extract_strided_slice %431 {offsets = [0, 32], sizes = [8, 32], strides = [1, 1]} : vector<8x128xf32> to vector<8x32xf32>
    %434 = vector.extract_strided_slice %431 {offsets = [0, 64], sizes = [8, 32], strides = [1, 1]} : vector<8x128xf32> to vector<8x32xf32>
    %435 = vector.extract_strided_slice %431 {offsets = [0, 96], sizes = [8, 32], strides = [1, 1]} : vector<8x128xf32> to vector<8x32xf32>
    %436 = arith.mulf %433, %420 : vector<8x32xf32>
    %437 = arith.mulf %432, %434 : vector<8x32xf32>
    %438 = arith.addf %436, %437 : vector<8x32xf32>
    %439 = math.tanh %438 : vector<8x32xf32>
    %440 = arith.mulf %435, %439 : vector<8x32xf32>
    %441 = arith.index_cast %422 : i32 to index
    %c0_128 = arith.constant 0 : index
    %442 = vector.load %arg17[%441, %c0_128] : memref<64x32xf32, #tpu.memory_space<vmem>>, vector<8x32xf32>
    tpu.vector_store %arg17[%441, %c0_128], %440 {strides = array<i32>} : memref<64x32xf32, #tpu.memory_space<vmem>>, vector<8x32xf32>,
    %c1_i32_129 = arith.constant 1 : i32
    %c8_i32_130 = arith.constant 8 : i32
    %443 = arith.muli %c1_i32_129, %c8_i32_130 : i32
    %444 = tpu.assume_multiple %443, 8 : i32
    %445 = arith.index_cast %444 : i32 to index
    %c0_131 = arith.constant 0 : index
    %446 = vector.load %arg16[%445, %c0_131] : memref<64x128xf32, #tpu.memory_space<vmem>>, vector<8x128xf32>
    %447 = arith.truncf %440 : vector<8x32xf32> to vector<8x32xbf16>
    %cst_132 = arith.constant dense<0.000000e+00> : vector<8x128xf32>
    %448 = tpu.matmul %447, %406, %cst_132 {dimension_numbers = #tpu.dot_dimension_numbers<[1], [0], [0], [1], [0, 0, 1, 1], [], []>} : vector<8x32xbf16>, vector<32x128xbf16>, vector<8x128xf32> -> vector<8x128xf32>
    %449 = arith.addf %446, %448 : vector<8x128xf32>
    %450 = arith.mulf %415, %449 : vector<8x128xf32>
    %451 = math.tanh %450 : vector<8x128xf32>
    %452 = arith.mulf %415, %451 : vector<8x128xf32>
    %453 = arith.addf %452, %418 : vector<8x128xf32>
    %454 = vector.extract_strided_slice %453 {offsets = [0, 0], sizes = [8, 32], strides = [1, 1]} : vector<8x128xf32> to vector<8x32xf32>
    %455 = vector.extract_strided_slice %453 {offsets = [0, 32], sizes = [8, 32], strides = [1, 1]} : vector<8x128xf32> to vector<8x32xf32>
    %456 = vector.extract_strided_slice %453 {offsets = [0, 64], sizes = [8, 32], strides = [1, 1]} : vector<8x128xf32> to vector<8x32xf32>
    %457 = vector.extract_strided_slice %453 {offsets = [0, 96], sizes = [8, 32], strides = [1, 1]} : vector<8x128xf32> to vector<8x32xf32>
    %458 = arith.mulf %455, %438 : vector<8x32xf32>
    %459 = arith.mulf %454, %456 : vector<8x32xf32>
    %460 = arith.addf %458, %459 : vector<8x32xf32>
    %461 = math.tanh %460 : vector<8x32xf32>
    %462 = arith.mulf %457, %461 : vector<8x32xf32>
    %463 = arith.index_cast %444 : i32 to index
    %c0_133 = arith.constant 0 : index
    %464 = vector.load %arg17[%463, %c0_133] : memref<64x32xf32, #tpu.memory_space<vmem>>, vector<8x32xf32>
    tpu.vector_store %arg17[%463, %c0_133], %462 {strides = array<i32>} : memref<64x32xf32, #tpu.memory_space<vmem>>, vector<8x32xf32>,
    %c2_i32_134 = arith.constant 2 : i32
    %c8_i32_135 = arith.constant 8 : i32
    %465 = arith.muli %c2_i32_134, %c8_i32_135 : i32
    %466 = tpu.assume_multiple %465, 8 : i32
    %467 = arith.index_cast %466 : i32 to index
    %c0_136 = arith.constant 0 : index
    %468 = vector.load %arg16[%467, %c0_136] : memref<64x128xf32, #tpu.memory_space<vmem>>, vector<8x128xf32>
    %469 = arith.truncf %462 : vector<8x32xf32> to vector<8x32xbf16>
    %cst_137 = arith.constant dense<0.000000e+00> : vector<8x128xf32>
    %470 = tpu.matmul %469, %406, %cst_137 {dimension_numbers = #tpu.dot_dimension_numbers<[1], [0], [0], [1], [0, 0, 1, 1], [], []>} : vector<8x32xbf16>, vector<32x128xbf16>, vector<8x128xf32> -> vector<8x128xf32>
    %471 = arith.addf %468, %470 : vector<8x128xf32>
    %472 = arith.mulf %415, %471 : vector<8x128xf32>
    %473 = math.tanh %472 : vector<8x128xf32>
    %474 = arith.mulf %415, %473 : vector<8x128xf32>
    %475 = arith.addf %474, %418 : vector<8x128xf32>
    %476 = vector.extract_strided_slice %475 {offsets = [0, 0], sizes = [8, 32], strides = [1, 1]} : vector<8x128xf32> to vector<8x32xf32>
    %477 = vector.extract_strided_slice %475 {offsets = [0, 32], sizes = [8, 32], strides = [1, 1]} : vector<8x128xf32> to vector<8x32xf32>
    %478 = vector.extract_strided_slice %475 {offsets = [0, 64], sizes = [8, 32], strides = [1, 1]} : vector<8x128xf32> to vector<8x32xf32>
    %479 = vector.extract_strided_slice %475 {offsets = [0, 96], sizes = [8, 32], strides = [1, 1]} : vector<8x128xf32> to vector<8x32xf32>
    %480 = arith.mulf %477, %460 : vector<8x32xf32>
    %481 = arith.mulf %476, %478 : vector<8x32xf32>
    %482 = arith.addf %480, %481 : vector<8x32xf32>
    %483 = math.tanh %482 : vector<8x32xf32>
    %484 = arith.mulf %479, %483 : vector<8x32xf32>
    %485 = arith.index_cast %466 : i32 to index
    %c0_138 = arith.constant 0 : index
    %486 = vector.load %arg17[%485, %c0_138] : memref<64x32xf32, #tpu.memory_space<vmem>>, vector<8x32xf32>
    tpu.vector_store %arg17[%485, %c0_138], %484 {strides = array<i32>} : memref<64x32xf32, #tpu.memory_space<vmem>>, vector<8x32xf32>,
    %c3_i32_139 = arith.constant 3 : i32
    %c8_i32_140 = arith.constant 8 : i32
    %487 = arith.muli %c3_i32_139, %c8_i32_140 : i32
    %488 = tpu.assume_multiple %487, 8 : i32
    %489 = arith.index_cast %488 : i32 to index
    %c0_141 = arith.constant 0 : index
    %490 = vector.load %arg16[%489, %c0_141] : memref<64x128xf32, #tpu.memory_space<vmem>>, vector<8x128xf32>
    %491 = arith.truncf %484 : vector<8x32xf32> to vector<8x32xbf16>
    %cst_142 = arith.constant dense<0.000000e+00> : vector<8x128xf32>
    %492 = tpu.matmul %491, %406, %cst_142 {dimension_numbers = #tpu.dot_dimension_numbers<[1], [0], [0], [1], [0, 0, 1, 1], [], []>} : vector<8x32xbf16>, vector<32x128xbf16>, vector<8x128xf32> -> vector<8x128xf32>
    %493 = arith.addf %490, %492 : vector<8x128xf32>
    %494 = arith.mulf %415, %493 : vector<8x128xf32>
    %495 = math.tanh %494 : vector<8x128xf32>
    %496 = arith.mulf %415, %495 : vector<8x128xf32>
    %497 = arith.addf %496, %418 : vector<8x128xf32>
    %498 = vector.extract_strided_slice %497 {offsets = [0, 0], sizes = [8, 32], strides = [1, 1]} : vector<8x128xf32> to vector<8x32xf32>
    %499 = vector.extract_strided_slice %497 {offsets = [0, 32], sizes = [8, 32], strides = [1, 1]} : vector<8x128xf32> to vector<8x32xf32>
    %500 = vector.extract_strided_slice %497 {offsets = [0, 64], sizes = [8, 32], strides = [1, 1]} : vector<8x128xf32> to vector<8x32xf32>
    %501 = vector.extract_strided_slice %497 {offsets = [0, 96], sizes = [8, 32], strides = [1, 1]} : vector<8x128xf32> to vector<8x32xf32>
    %502 = arith.mulf %499, %482 : vector<8x32xf32>
    %503 = arith.mulf %498, %500 : vector<8x32xf32>
    %504 = arith.addf %502, %503 : vector<8x32xf32>
    %505 = math.tanh %504 : vector<8x32xf32>
    %506 = arith.mulf %501, %505 : vector<8x32xf32>
    %507 = arith.index_cast %488 : i32 to index
    %c0_143 = arith.constant 0 : index
    %508 = vector.load %arg17[%507, %c0_143] : memref<64x32xf32, #tpu.memory_space<vmem>>, vector<8x32xf32>
    tpu.vector_store %arg17[%507, %c0_143], %506 {strides = array<i32>} : memref<64x32xf32, #tpu.memory_space<vmem>>, vector<8x32xf32>,
    %c4_i32_144 = arith.constant 4 : i32
    %c8_i32_145 = arith.constant 8 : i32
    %509 = arith.muli %c4_i32_144, %c8_i32_145 : i32
    %510 = tpu.assume_multiple %509, 8 : i32
    %511 = arith.index_cast %510 : i32 to index
    %c0_146 = arith.constant 0 : index
    %512 = vector.load %arg16[%511, %c0_146] : memref<64x128xf32, #tpu.memory_space<vmem>>, vector<8x128xf32>
    %513 = arith.truncf %506 : vector<8x32xf32> to vector<8x32xbf16>
    %cst_147 = arith.constant dense<0.000000e+00> : vector<8x128xf32>
    %514 = tpu.matmul %513, %406, %cst_147 {dimension_numbers = #tpu.dot_dimension_numbers<[1], [0], [0], [1], [0, 0, 1, 1], [], []>} : vector<8x32xbf16>, vector<32x128xbf16>, vector<8x128xf32> -> vector<8x128xf32>
    %515 = arith.addf %512, %514 : vector<8x128xf32>
    %516 = arith.mulf %415, %515 : vector<8x128xf32>
    %517 = math.tanh %516 : vector<8x128xf32>
    %518 = arith.mulf %415, %517 : vector<8x128xf32>
    %519 = arith.addf %518, %418 : vector<8x128xf32>
    %520 = vector.extract_strided_slice %519 {offsets = [0, 0], sizes = [8, 32], strides = [1, 1]} : vector<8x128xf32> to vector<8x32xf32>
    %521 = vector.extract_strided_slice %519 {offsets = [0, 32], sizes = [8, 32], strides = [1, 1]} : vector<8x128xf32> to vector<8x32xf32>
    %522 = vector.extract_strided_slice %519 {offsets = [0, 64], sizes = [8, 32], strides = [1, 1]} : vector<8x128xf32> to vector<8x32xf32>
    %523 = vector.extract_strided_slice %519 {offsets = [0, 96], sizes = [8, 32], strides = [1, 1]} : vector<8x128xf32> to vector<8x32xf32>
    %524 = arith.mulf %521, %504 : vector<8x32xf32>
    %525 = arith.mulf %520, %522 : vector<8x32xf32>
    %526 = arith.addf %524, %525 : vector<8x32xf32>
    %527 = math.tanh %526 : vector<8x32xf32>
    %528 = arith.mulf %523, %527 : vector<8x32xf32>
    %529 = arith.index_cast %510 : i32 to index
    %c0_148 = arith.constant 0 : index
    %530 = vector.load %arg17[%529, %c0_148] : memref<64x32xf32, #tpu.memory_space<vmem>>, vector<8x32xf32>
    tpu.vector_store %arg17[%529, %c0_148], %528 {strides = array<i32>} : memref<64x32xf32, #tpu.memory_space<vmem>>, vector<8x32xf32>,
    %c5_i32_149 = arith.constant 5 : i32
    %c8_i32_150 = arith.constant 8 : i32
    %531 = arith.muli %c5_i32_149, %c8_i32_150 : i32
    %532 = tpu.assume_multiple %531, 8 : i32
    %533 = arith.index_cast %532 : i32 to index
    %c0_151 = arith.constant 0 : index
    %534 = vector.load %arg16[%533, %c0_151] : memref<64x128xf32, #tpu.memory_space<vmem>>, vector<8x128xf32>
    %535 = arith.truncf %528 : vector<8x32xf32> to vector<8x32xbf16>
    %cst_152 = arith.constant dense<0.000000e+00> : vector<8x128xf32>
    %536 = tpu.matmul %535, %406, %cst_152 {dimension_numbers = #tpu.dot_dimension_numbers<[1], [0], [0], [1], [0, 0, 1, 1], [], []>} : vector<8x32xbf16>, vector<32x128xbf16>, vector<8x128xf32> -> vector<8x128xf32>
    %537 = arith.addf %534, %536 : vector<8x128xf32>
    %538 = arith.mulf %415, %537 : vector<8x128xf32>
    %539 = math.tanh %538 : vector<8x128xf32>
    %540 = arith.mulf %415, %539 : vector<8x128xf32>
    %541 = arith.addf %540, %418 : vector<8x128xf32>
    %542 = vector.extract_strided_slice %541 {offsets = [0, 0], sizes = [8, 32], strides = [1, 1]} : vector<8x128xf32> to vector<8x32xf32>
    %543 = vector.extract_strided_slice %541 {offsets = [0, 32], sizes = [8, 32], strides = [1, 1]} : vector<8x128xf32> to vector<8x32xf32>
    %544 = vector.extract_strided_slice %541 {offsets = [0, 64], sizes = [8, 32], strides = [1, 1]} : vector<8x128xf32> to vector<8x32xf32>
    %545 = vector.extract_strided_slice %541 {offsets = [0, 96], sizes = [8, 32], strides = [1, 1]} : vector<8x128xf32> to vector<8x32xf32>
    %546 = arith.mulf %543, %526 : vector<8x32xf32>
    %547 = arith.mulf %542, %544 : vector<8x32xf32>
    %548 = arith.addf %546, %547 : vector<8x32xf32>
    %549 = math.tanh %548 : vector<8x32xf32>
    %550 = arith.mulf %545, %549 : vector<8x32xf32>
    %551 = arith.index_cast %532 : i32 to index
    %c0_153 = arith.constant 0 : index
    %552 = vector.load %arg17[%551, %c0_153] : memref<64x32xf32, #tpu.memory_space<vmem>>, vector<8x32xf32>
    tpu.vector_store %arg17[%551, %c0_153], %550 {strides = array<i32>} : memref<64x32xf32, #tpu.memory_space<vmem>>, vector<8x32xf32>,
    %c6_i32_154 = arith.constant 6 : i32
    %c8_i32_155 = arith.constant 8 : i32
    %553 = arith.muli %c6_i32_154, %c8_i32_155 : i32
    %554 = tpu.assume_multiple %553, 8 : i32
    %555 = arith.index_cast %554 : i32 to index
    %c0_156 = arith.constant 0 : index
    %556 = vector.load %arg16[%555, %c0_156] : memref<64x128xf32, #tpu.memory_space<vmem>>, vector<8x128xf32>
    %557 = arith.truncf %550 : vector<8x32xf32> to vector<8x32xbf16>
    %cst_157 = arith.constant dense<0.000000e+00> : vector<8x128xf32>
    %558 = tpu.matmul %557, %406, %cst_157 {dimension_numbers = #tpu.dot_dimension_numbers<[1], [0], [0], [1], [0, 0, 1, 1], [], []>} : vector<8x32xbf16>, vector<32x128xbf16>, vector<8x128xf32> -> vector<8x128xf32>
    %559 = arith.addf %556, %558 : vector<8x128xf32>
    %560 = arith.mulf %415, %559 : vector<8x128xf32>
    %561 = math.tanh %560 : vector<8x128xf32>
    %562 = arith.mulf %415, %561 : vector<8x128xf32>
    %563 = arith.addf %562, %418 : vector<8x128xf32>
    %564 = vector.extract_strided_slice %563 {offsets = [0, 0], sizes = [8, 32], strides = [1, 1]} : vector<8x128xf32> to vector<8x32xf32>
    %565 = vector.extract_strided_slice %563 {offsets = [0, 32], sizes = [8, 32], strides = [1, 1]} : vector<8x128xf32> to vector<8x32xf32>
    %566 = vector.extract_strided_slice %563 {offsets = [0, 64], sizes = [8, 32], strides = [1, 1]} : vector<8x128xf32> to vector<8x32xf32>
    %567 = vector.extract_strided_slice %563 {offsets = [0, 96], sizes = [8, 32], strides = [1, 1]} : vector<8x128xf32> to vector<8x32xf32>
    %568 = arith.mulf %565, %548 : vector<8x32xf32>
    %569 = arith.mulf %564, %566 : vector<8x32xf32>
    %570 = arith.addf %568, %569 : vector<8x32xf32>
    %571 = math.tanh %570 : vector<8x32xf32>
    %572 = arith.mulf %567, %571 : vector<8x32xf32>
    %573 = arith.index_cast %554 : i32 to index
    %c0_158 = arith.constant 0 : index
    %574 = vector.load %arg17[%573, %c0_158] : memref<64x32xf32, #tpu.memory_space<vmem>>, vector<8x32xf32>
    tpu.vector_store %arg17[%573, %c0_158], %572 {strides = array<i32>} : memref<64x32xf32, #tpu.memory_space<vmem>>, vector<8x32xf32>,
    %c7_i32_159 = arith.constant 7 : i32
    %c8_i32_160 = arith.constant 8 : i32
    %575 = arith.muli %c7_i32_159, %c8_i32_160 : i32
    %576 = tpu.assume_multiple %575, 8 : i32
    %577 = arith.index_cast %576 : i32 to index
    %c0_161 = arith.constant 0 : index
    %578 = vector.load %arg16[%577, %c0_161] : memref<64x128xf32, #tpu.memory_space<vmem>>, vector<8x128xf32>
    %579 = arith.truncf %572 : vector<8x32xf32> to vector<8x32xbf16>
    %cst_162 = arith.constant dense<0.000000e+00> : vector<8x128xf32>
    %580 = tpu.matmul %579, %406, %cst_162 {dimension_numbers = #tpu.dot_dimension_numbers<[1], [0], [0], [1], [0, 0, 1, 1], [], []>} : vector<8x32xbf16>, vector<32x128xbf16>, vector<8x128xf32> -> vector<8x128xf32>
    %581 = arith.addf %578, %580 : vector<8x128xf32>
    %582 = arith.mulf %415, %581 : vector<8x128xf32>
    %583 = math.tanh %582 : vector<8x128xf32>
    %584 = arith.mulf %415, %583 : vector<8x128xf32>
    %585 = arith.addf %584, %418 : vector<8x128xf32>
    %586 = vector.extract_strided_slice %585 {offsets = [0, 0], sizes = [8, 32], strides = [1, 1]} : vector<8x128xf32> to vector<8x32xf32>
    %587 = vector.extract_strided_slice %585 {offsets = [0, 32], sizes = [8, 32], strides = [1, 1]} : vector<8x128xf32> to vector<8x32xf32>
    %588 = vector.extract_strided_slice %585 {offsets = [0, 64], sizes = [8, 32], strides = [1, 1]} : vector<8x128xf32> to vector<8x32xf32>
    %589 = vector.extract_strided_slice %585 {offsets = [0, 96], sizes = [8, 32], strides = [1, 1]} : vector<8x128xf32> to vector<8x32xf32>
    %590 = arith.mulf %587, %570 : vector<8x32xf32>
    %591 = arith.mulf %586, %588 : vector<8x32xf32>
    %592 = arith.addf %590, %591 : vector<8x32xf32>
    %593 = math.tanh %592 : vector<8x32xf32>
    %594 = arith.mulf %589, %593 : vector<8x32xf32>
    %595 = arith.index_cast %576 : i32 to index
    %c0_163 = arith.constant 0 : index
    %596 = vector.load %arg17[%595, %c0_163] : memref<64x32xf32, #tpu.memory_space<vmem>>, vector<8x32xf32>
    tpu.vector_store %arg17[%595, %c0_163], %594 {strides = array<i32>} : memref<64x32xf32, #tpu.memory_space<vmem>>, vector<8x32xf32>,
    %c8_i32_164 = arith.constant 8 : i32
    %c0_165 = arith.constant 0 : index
    %c0_166 = arith.constant 0 : index
    %597 = vector.load %arg17[%c0_165, %c0_166] : memref<64x32xf32, #tpu.memory_space<vmem>>, vector<64x32xf32>
    %598 = arith.truncf %597 : vector<64x32xf32> to vector<64x32xbf16>
    %c0_167 = arith.constant 0 : index
    %c0_168 = arith.constant 0 : index
    %599 = vector.load %arg10[%c0_167, %c0_168] : memref<32x128xbf16, #tpu.memory_space<vmem>>, vector<32x128xbf16>
    %cst_169 = arith.constant dense<0.000000e+00> : vector<64x128xf32>
    %600 = tpu.matmul %598, %599, %cst_169 {dimension_numbers = #tpu.dot_dimension_numbers<[1], [0], [0], [1], [0, 0, 1, 1], [], []>} : vector<64x32xbf16>, vector<32x128xbf16>, vector<64x128xf32> -> vector<64x128xf32>
    %c0_170 = arith.constant 0 : index
    %c0_171 = arith.constant 0 : index
    %601 = vector.load %arg12[%c0_170, %c0_171] : memref<1x128xf32, #tpu.memory_space<vmem>>, vector<1x128xf32>
    %602 = vector.broadcast %601 : vector<1x128xf32> to vector<64x128xf32>
    %603 = arith.addf %600, %602 : vector<64x128xf32>
    %c0_172 = arith.constant 0 : index
    %c0_173 = arith.constant 0 : index
    %604 = vector.load %arg16[%c0_172, %c0_173] : memref<64x128xf32, #tpu.memory_space<vmem>>, vector<64x128xf32>
    tpu.vector_store %arg16[%c0_172, %c0_173], %603 {strides = array<i32>} : memref<64x128xf32, #tpu.memory_space<vmem>>, vector<64x128xf32>,
    %c0_174 = arith.constant 0 : index
    %c0_175 = arith.constant 0 : index
    %605 = vector.load %arg11[%c0_174, %c0_175] : memref<32x128xbf16, #tpu.memory_space<vmem>>, vector<32x128xbf16>
    %606 = tpu.iota {dimensions = array<i32: 1>} : vector<8x128xi32>
    %c64_i32_176 = arith.constant 64 : i32
    %607 = vector.broadcast %c64_i32_176 : i32 to vector<8x128xi32>
    %608 = arith.cmpi sge, %606, %607 : vector<8x128xi32>
    %c96_i32_177 = arith.constant 96 : i32
    %609 = vector.broadcast %c96_i32_177 : i32 to vector<8x128xi32>
    %610 = arith.cmpi slt, %606, %609 : vector<8x128xi32>
    %611 = arith.andi %608, %610 : vector<8x128xi1>
    %cst_178 = arith.constant 1.000000e+00 : f32
    %cst_179 = arith.constant 5.000000e-01 : f32
    %612 = vector.broadcast %cst_178 : f32 to vector<8x128xf32>
    %613 = vector.broadcast %cst_179 : f32 to vector<8x128xf32>
    %614 = arith.select %611, %612, %613 : vector<8x128xi1>, vector<8x128xf32>
    %cst_180 = arith.constant 0.000000e+00 : f32
    %cst_181 = arith.constant 5.000000e-01 : f32
    %615 = vector.broadcast %cst_180 : f32 to vector<8x128xf32>
    %616 = vector.broadcast %cst_181 : f32 to vector<8x128xf32>
    %617 = arith.select %611, %615, %616 : vector<8x128xi1>, vector<8x128xf32>
    %cst_182 = arith.constant 0.000000e+00 : f32
    %618 = vector.broadcast %cst_182 : f32 to vector<8x32xf32>
    %cst_183 = arith.constant 0.000000e+00 : f32
    %619 = vector.broadcast %cst_183 : f32 to vector<8x32xf32>
    %c0_i32_184 = arith.constant 0 : i32
    %c8_i32_185 = arith.constant 8 : i32
    %620 = arith.muli %c0_i32_184, %c8_i32_185 : i32
    %621 = tpu.assume_multiple %620, 8 : i32
    %622 = arith.index_cast %621 : i32 to index
    %c0_186 = arith.constant 0 : index
    %623 = vector.load %arg16[%622, %c0_186] : memref<64x128xf32, #tpu.memory_space<vmem>>, vector<8x128xf32>
    %624 = arith.truncf %618 : vector<8x32xf32> to vector<8x32xbf16>
    %cst_187 = arith.constant dense<0.000000e+00> : vector<8x128xf32>
    %625 = tpu.matmul %624, %605, %cst_187 {dimension_numbers = #tpu.dot_dimension_numbers<[1], [0], [0], [1], [0, 0, 1, 1], [], []>} : vector<8x32xbf16>, vector<32x128xbf16>, vector<8x128xf32> -> vector<8x128xf32>
    %626 = arith.addf %623, %625 : vector<8x128xf32>
    %627 = arith.mulf %614, %626 : vector<8x128xf32>
    %628 = math.tanh %627 : vector<8x128xf32>
    %629 = arith.mulf %614, %628 : vector<8x128xf32>
    %630 = arith.addf %629, %617 : vector<8x128xf32>
    %631 = vector.extract_strided_slice %630 {offsets = [0, 0], sizes = [8, 32], strides = [1, 1]} : vector<8x128xf32> to vector<8x32xf32>
    %632 = vector.extract_strided_slice %630 {offsets = [0, 32], sizes = [8, 32], strides = [1, 1]} : vector<8x128xf32> to vector<8x32xf32>
    %633 = vector.extract_strided_slice %630 {offsets = [0, 64], sizes = [8, 32], strides = [1, 1]} : vector<8x128xf32> to vector<8x32xf32>
    %634 = vector.extract_strided_slice %630 {offsets = [0, 96], sizes = [8, 32], strides = [1, 1]} : vector<8x128xf32> to vector<8x32xf32>
    %635 = arith.mulf %632, %619 : vector<8x32xf32>
    %636 = arith.mulf %631, %633 : vector<8x32xf32>
    %637 = arith.addf %635, %636 : vector<8x32xf32>
    %638 = math.tanh %637 : vector<8x32xf32>
    %639 = arith.mulf %634, %638 : vector<8x32xf32>
    %640 = arith.index_cast %621 : i32 to index
    %c0_188 = arith.constant 0 : index
    %641 = vector.load %arg18[%640, %c0_188] : memref<64x32xf32, #tpu.memory_space<vmem>>, vector<8x32xf32>
    tpu.vector_store %arg18[%640, %c0_188], %639 {strides = array<i32>} : memref<64x32xf32, #tpu.memory_space<vmem>>, vector<8x32xf32>,
    %c1_i32_189 = arith.constant 1 : i32
    %c8_i32_190 = arith.constant 8 : i32
    %642 = arith.muli %c1_i32_189, %c8_i32_190 : i32
    %643 = tpu.assume_multiple %642, 8 : i32
    %644 = arith.index_cast %643 : i32 to index
    %c0_191 = arith.constant 0 : index
    %645 = vector.load %arg16[%644, %c0_191] : memref<64x128xf32, #tpu.memory_space<vmem>>, vector<8x128xf32>
    %646 = arith.truncf %639 : vector<8x32xf32> to vector<8x32xbf16>
    %cst_192 = arith.constant dense<0.000000e+00> : vector<8x128xf32>
    %647 = tpu.matmul %646, %605, %cst_192 {dimension_numbers = #tpu.dot_dimension_numbers<[1], [0], [0], [1], [0, 0, 1, 1], [], []>} : vector<8x32xbf16>, vector<32x128xbf16>, vector<8x128xf32> -> vector<8x128xf32>
    %648 = arith.addf %645, %647 : vector<8x128xf32>
    %649 = arith.mulf %614, %648 : vector<8x128xf32>
    %650 = math.tanh %649 : vector<8x128xf32>
    %651 = arith.mulf %614, %650 : vector<8x128xf32>
    %652 = arith.addf %651, %617 : vector<8x128xf32>
    %653 = vector.extract_strided_slice %652 {offsets = [0, 0], sizes = [8, 32], strides = [1, 1]} : vector<8x128xf32> to vector<8x32xf32>
    %654 = vector.extract_strided_slice %652 {offsets = [0, 32], sizes = [8, 32], strides = [1, 1]} : vector<8x128xf32> to vector<8x32xf32>
    %655 = vector.extract_strided_slice %652 {offsets = [0, 64], sizes = [8, 32], strides = [1, 1]} : vector<8x128xf32> to vector<8x32xf32>
    %656 = vector.extract_strided_slice %652 {offsets = [0, 96], sizes = [8, 32], strides = [1, 1]} : vector<8x128xf32> to vector<8x32xf32>
    %657 = arith.mulf %654, %637 : vector<8x32xf32>
    %658 = arith.mulf %653, %655 : vector<8x32xf32>
    %659 = arith.addf %657, %658 : vector<8x32xf32>
    %660 = math.tanh %659 : vector<8x32xf32>
    %661 = arith.mulf %656, %660 : vector<8x32xf32>
    %662 = arith.index_cast %643 : i32 to index
    %c0_193 = arith.constant 0 : index
    %663 = vector.load %arg18[%662, %c0_193] : memref<64x32xf32, #tpu.memory_space<vmem>>, vector<8x32xf32>
    tpu.vector_store %arg18[%662, %c0_193], %661 {strides = array<i32>} : memref<64x32xf32, #tpu.memory_space<vmem>>, vector<8x32xf32>,
    %c2_i32_194 = arith.constant 2 : i32
    %c8_i32_195 = arith.constant 8 : i32
    %664 = arith.muli %c2_i32_194, %c8_i32_195 : i32
    %665 = tpu.assume_multiple %664, 8 : i32
    %666 = arith.index_cast %665 : i32 to index
    %c0_196 = arith.constant 0 : index
    %667 = vector.load %arg16[%666, %c0_196] : memref<64x128xf32, #tpu.memory_space<vmem>>, vector<8x128xf32>
    %668 = arith.truncf %661 : vector<8x32xf32> to vector<8x32xbf16>
    %cst_197 = arith.constant dense<0.000000e+00> : vector<8x128xf32>
    %669 = tpu.matmul %668, %605, %cst_197 {dimension_numbers = #tpu.dot_dimension_numbers<[1], [0], [0], [1], [0, 0, 1, 1], [], []>} : vector<8x32xbf16>, vector<32x128xbf16>, vector<8x128xf32> -> vector<8x128xf32>
    %670 = arith.addf %667, %669 : vector<8x128xf32>
    %671 = arith.mulf %614, %670 : vector<8x128xf32>
    %672 = math.tanh %671 : vector<8x128xf32>
    %673 = arith.mulf %614, %672 : vector<8x128xf32>
    %674 = arith.addf %673, %617 : vector<8x128xf32>
    %675 = vector.extract_strided_slice %674 {offsets = [0, 0], sizes = [8, 32], strides = [1, 1]} : vector<8x128xf32> to vector<8x32xf32>
    %676 = vector.extract_strided_slice %674 {offsets = [0, 32], sizes = [8, 32], strides = [1, 1]} : vector<8x128xf32> to vector<8x32xf32>
    %677 = vector.extract_strided_slice %674 {offsets = [0, 64], sizes = [8, 32], strides = [1, 1]} : vector<8x128xf32> to vector<8x32xf32>
    %678 = vector.extract_strided_slice %674 {offsets = [0, 96], sizes = [8, 32], strides = [1, 1]} : vector<8x128xf32> to vector<8x32xf32>
    %679 = arith.mulf %676, %659 : vector<8x32xf32>
    %680 = arith.mulf %675, %677 : vector<8x32xf32>
    %681 = arith.addf %679, %680 : vector<8x32xf32>
    %682 = math.tanh %681 : vector<8x32xf32>
    %683 = arith.mulf %678, %682 : vector<8x32xf32>
    %684 = arith.index_cast %665 : i32 to index
    %c0_198 = arith.constant 0 : index
    %685 = vector.load %arg18[%684, %c0_198] : memref<64x32xf32, #tpu.memory_space<vmem>>, vector<8x32xf32>
    tpu.vector_store %arg18[%684, %c0_198], %683 {strides = array<i32>} : memref<64x32xf32, #tpu.memory_space<vmem>>, vector<8x32xf32>,
    %c3_i32_199 = arith.constant 3 : i32
    %c8_i32_200 = arith.constant 8 : i32
    %686 = arith.muli %c3_i32_199, %c8_i32_200 : i32
    %687 = tpu.assume_multiple %686, 8 : i32
    %688 = arith.index_cast %687 : i32 to index
    %c0_201 = arith.constant 0 : index
    %689 = vector.load %arg16[%688, %c0_201] : memref<64x128xf32, #tpu.memory_space<vmem>>, vector<8x128xf32>
    %690 = arith.truncf %683 : vector<8x32xf32> to vector<8x32xbf16>
    %cst_202 = arith.constant dense<0.000000e+00> : vector<8x128xf32>
    %691 = tpu.matmul %690, %605, %cst_202 {dimension_numbers = #tpu.dot_dimension_numbers<[1], [0], [0], [1], [0, 0, 1, 1], [], []>} : vector<8x32xbf16>, vector<32x128xbf16>, vector<8x128xf32> -> vector<8x128xf32>
    %692 = arith.addf %689, %691 : vector<8x128xf32>
    %693 = arith.mulf %614, %692 : vector<8x128xf32>
    %694 = math.tanh %693 : vector<8x128xf32>
    %695 = arith.mulf %614, %694 : vector<8x128xf32>
    %696 = arith.addf %695, %617 : vector<8x128xf32>
    %697 = vector.extract_strided_slice %696 {offsets = [0, 0], sizes = [8, 32], strides = [1, 1]} : vector<8x128xf32> to vector<8x32xf32>
    %698 = vector.extract_strided_slice %696 {offsets = [0, 32], sizes = [8, 32], strides = [1, 1]} : vector<8x128xf32> to vector<8x32xf32>
    %699 = vector.extract_strided_slice %696 {offsets = [0, 64], sizes = [8, 32], strides = [1, 1]} : vector<8x128xf32> to vector<8x32xf32>
    %700 = vector.extract_strided_slice %696 {offsets = [0, 96], sizes = [8, 32], strides = [1, 1]} : vector<8x128xf32> to vector<8x32xf32>
    %701 = arith.mulf %698, %681 : vector<8x32xf32>
    %702 = arith.mulf %697, %699 : vector<8x32xf32>
    %703 = arith.addf %701, %702 : vector<8x32xf32>
    %704 = math.tanh %703 : vector<8x32xf32>
    %705 = arith.mulf %700, %704 : vector<8x32xf32>
    %706 = arith.index_cast %687 : i32 to index
    %c0_203 = arith.constant 0 : index
    %707 = vector.load %arg18[%706, %c0_203] : memref<64x32xf32, #tpu.memory_space<vmem>>, vector<8x32xf32>
    tpu.vector_store %arg18[%706, %c0_203], %705 {strides = array<i32>} : memref<64x32xf32, #tpu.memory_space<vmem>>, vector<8x32xf32>,
    %c4_i32_204 = arith.constant 4 : i32
    %c8_i32_205 = arith.constant 8 : i32
    %708 = arith.muli %c4_i32_204, %c8_i32_205 : i32
    %709 = tpu.assume_multiple %708, 8 : i32
    %710 = arith.index_cast %709 : i32 to index
    %c0_206 = arith.constant 0 : index
    %711 = vector.load %arg16[%710, %c0_206] : memref<64x128xf32, #tpu.memory_space<vmem>>, vector<8x128xf32>
    %712 = arith.truncf %705 : vector<8x32xf32> to vector<8x32xbf16>
    %cst_207 = arith.constant dense<0.000000e+00> : vector<8x128xf32>
    %713 = tpu.matmul %712, %605, %cst_207 {dimension_numbers = #tpu.dot_dimension_numbers<[1], [0], [0], [1], [0, 0, 1, 1], [], []>} : vector<8x32xbf16>, vector<32x128xbf16>, vector<8x128xf32> -> vector<8x128xf32>
    %714 = arith.addf %711, %713 : vector<8x128xf32>
    %715 = arith.mulf %614, %714 : vector<8x128xf32>
    %716 = math.tanh %715 : vector<8x128xf32>
    %717 = arith.mulf %614, %716 : vector<8x128xf32>
    %718 = arith.addf %717, %617 : vector<8x128xf32>
    %719 = vector.extract_strided_slice %718 {offsets = [0, 0], sizes = [8, 32], strides = [1, 1]} : vector<8x128xf32> to vector<8x32xf32>
    %720 = vector.extract_strided_slice %718 {offsets = [0, 32], sizes = [8, 32], strides = [1, 1]} : vector<8x128xf32> to vector<8x32xf32>
    %721 = vector.extract_strided_slice %718 {offsets = [0, 64], sizes = [8, 32], strides = [1, 1]} : vector<8x128xf32> to vector<8x32xf32>
    %722 = vector.extract_strided_slice %718 {offsets = [0, 96], sizes = [8, 32], strides = [1, 1]} : vector<8x128xf32> to vector<8x32xf32>
    %723 = arith.mulf %720, %703 : vector<8x32xf32>
    %724 = arith.mulf %719, %721 : vector<8x32xf32>
    %725 = arith.addf %723, %724 : vector<8x32xf32>
    %726 = math.tanh %725 : vector<8x32xf32>
    %727 = arith.mulf %722, %726 : vector<8x32xf32>
    %728 = arith.index_cast %709 : i32 to index
    %c0_208 = arith.constant 0 : index
    %729 = vector.load %arg18[%728, %c0_208] : memref<64x32xf32, #tpu.memory_space<vmem>>, vector<8x32xf32>
    tpu.vector_store %arg18[%728, %c0_208], %727 {strides = array<i32>} : memref<64x32xf32, #tpu.memory_space<vmem>>, vector<8x32xf32>,
    %c5_i32_209 = arith.constant 5 : i32
    %c8_i32_210 = arith.constant 8 : i32
    %730 = arith.muli %c5_i32_209, %c8_i32_210 : i32
    %731 = tpu.assume_multiple %730, 8 : i32
    %732 = arith.index_cast %731 : i32 to index
    %c0_211 = arith.constant 0 : index
    %733 = vector.load %arg16[%732, %c0_211] : memref<64x128xf32, #tpu.memory_space<vmem>>, vector<8x128xf32>
    %734 = arith.truncf %727 : vector<8x32xf32> to vector<8x32xbf16>
    %cst_212 = arith.constant dense<0.000000e+00> : vector<8x128xf32>
    %735 = tpu.matmul %734, %605, %cst_212 {dimension_numbers = #tpu.dot_dimension_numbers<[1], [0], [0], [1], [0, 0, 1, 1], [], []>} : vector<8x32xbf16>, vector<32x128xbf16>, vector<8x128xf32> -> vector<8x128xf32>
    %736 = arith.addf %733, %735 : vector<8x128xf32>
    %737 = arith.mulf %614, %736 : vector<8x128xf32>
    %738 = math.tanh %737 : vector<8x128xf32>
    %739 = arith.mulf %614, %738 : vector<8x128xf32>
    %740 = arith.addf %739, %617 : vector<8x128xf32>
    %741 = vector.extract_strided_slice %740 {offsets = [0, 0], sizes = [8, 32], strides = [1, 1]} : vector<8x128xf32> to vector<8x32xf32>
    %742 = vector.extract_strided_slice %740 {offsets = [0, 32], sizes = [8, 32], strides = [1, 1]} : vector<8x128xf32> to vector<8x32xf32>
    %743 = vector.extract_strided_slice %740 {offsets = [0, 64], sizes = [8, 32], strides = [1, 1]} : vector<8x128xf32> to vector<8x32xf32>
    %744 = vector.extract_strided_slice %740 {offsets = [0, 96], sizes = [8, 32], strides = [1, 1]} : vector<8x128xf32> to vector<8x32xf32>
    %745 = arith.mulf %742, %725 : vector<8x32xf32>
    %746 = arith.mulf %741, %743 : vector<8x32xf32>
    %747 = arith.addf %745, %746 : vector<8x32xf32>
    %748 = math.tanh %747 : vector<8x32xf32>
    %749 = arith.mulf %744, %748 : vector<8x32xf32>
    %750 = arith.index_cast %731 : i32 to index
    %c0_213 = arith.constant 0 : index
    %751 = vector.load %arg18[%750, %c0_213] : memref<64x32xf32, #tpu.memory_space<vmem>>, vector<8x32xf32>
    tpu.vector_store %arg18[%750, %c0_213], %749 {strides = array<i32>} : memref<64x32xf32, #tpu.memory_space<vmem>>, vector<8x32xf32>,
    %c6_i32_214 = arith.constant 6 : i32
    %c8_i32_215 = arith.constant 8 : i32
    %752 = arith.muli %c6_i32_214, %c8_i32_215 : i32
    %753 = tpu.assume_multiple %752, 8 : i32
    %754 = arith.index_cast %753 : i32 to index
    %c0_216 = arith.constant 0 : index
    %755 = vector.load %arg16[%754, %c0_216] : memref<64x128xf32, #tpu.memory_space<vmem>>, vector<8x128xf32>
    %756 = arith.truncf %749 : vector<8x32xf32> to vector<8x32xbf16>
    %cst_217 = arith.constant dense<0.000000e+00> : vector<8x128xf32>
    %757 = tpu.matmul %756, %605, %cst_217 {dimension_numbers = #tpu.dot_dimension_numbers<[1], [0], [0], [1], [0, 0, 1, 1], [], []>} : vector<8x32xbf16>, vector<32x128xbf16>, vector<8x128xf32> -> vector<8x128xf32>
    %758 = arith.addf %755, %757 : vector<8x128xf32>
    %759 = arith.mulf %614, %758 : vector<8x128xf32>
    %760 = math.tanh %759 : vector<8x128xf32>
    %761 = arith.mulf %614, %760 : vector<8x128xf32>
    %762 = arith.addf %761, %617 : vector<8x128xf32>
    %763 = vector.extract_strided_slice %762 {offsets = [0, 0], sizes = [8, 32], strides = [1, 1]} : vector<8x128xf32> to vector<8x32xf32>
    %764 = vector.extract_strided_slice %762 {offsets = [0, 32], sizes = [8, 32], strides = [1, 1]} : vector<8x128xf32> to vector<8x32xf32>
    %765 = vector.extract_strided_slice %762 {offsets = [0, 64], sizes = [8, 32], strides = [1, 1]} : vector<8x128xf32> to vector<8x32xf32>
    %766 = vector.extract_strided_slice %762 {offsets = [0, 96], sizes = [8, 32], strides = [1, 1]} : vector<8x128xf32> to vector<8x32xf32>
    %767 = arith.mulf %764, %747 : vector<8x32xf32>
    %768 = arith.mulf %763, %765 : vector<8x32xf32>
    %769 = arith.addf %767, %768 : vector<8x32xf32>
    %770 = math.tanh %769 : vector<8x32xf32>
    %771 = arith.mulf %766, %770 : vector<8x32xf32>
    %772 = arith.index_cast %753 : i32 to index
    %c0_218 = arith.constant 0 : index
    %773 = vector.load %arg18[%772, %c0_218] : memref<64x32xf32, #tpu.memory_space<vmem>>, vector<8x32xf32>
    tpu.vector_store %arg18[%772, %c0_218], %771 {strides = array<i32>} : memref<64x32xf32, #tpu.memory_space<vmem>>, vector<8x32xf32>,
    %c7_i32_219 = arith.constant 7 : i32
    %c8_i32_220 = arith.constant 8 : i32
    %774 = arith.muli %c7_i32_219, %c8_i32_220 : i32
    %775 = tpu.assume_multiple %774, 8 : i32
    %776 = arith.index_cast %775 : i32 to index
    %c0_221 = arith.constant 0 : index
    %777 = vector.load %arg16[%776, %c0_221] : memref<64x128xf32, #tpu.memory_space<vmem>>, vector<8x128xf32>
    %778 = arith.truncf %771 : vector<8x32xf32> to vector<8x32xbf16>
    %cst_222 = arith.constant dense<0.000000e+00> : vector<8x128xf32>
    %779 = tpu.matmul %778, %605, %cst_222 {dimension_numbers = #tpu.dot_dimension_numbers<[1], [0], [0], [1], [0, 0, 1, 1], [], []>} : vector<8x32xbf16>, vector<32x128xbf16>, vector<8x128xf32> -> vector<8x128xf32>
    %780 = arith.addf %777, %779 : vector<8x128xf32>
    %781 = arith.mulf %614, %780 : vector<8x128xf32>
    %782 = math.tanh %781 : vector<8x128xf32>
    %783 = arith.mulf %614, %782 : vector<8x128xf32>
    %784 = arith.addf %783, %617 : vector<8x128xf32>
    %785 = vector.extract_strided_slice %784 {offsets = [0, 0], sizes = [8, 32], strides = [1, 1]} : vector<8x128xf32> to vector<8x32xf32>
    %786 = vector.extract_strided_slice %784 {offsets = [0, 32], sizes = [8, 32], strides = [1, 1]} : vector<8x128xf32> to vector<8x32xf32>
    %787 = vector.extract_strided_slice %784 {offsets = [0, 64], sizes = [8, 32], strides = [1, 1]} : vector<8x128xf32> to vector<8x32xf32>
    %788 = vector.extract_strided_slice %784 {offsets = [0, 96], sizes = [8, 32], strides = [1, 1]} : vector<8x128xf32> to vector<8x32xf32>
    %789 = arith.mulf %786, %769 : vector<8x32xf32>
    %790 = arith.mulf %785, %787 : vector<8x32xf32>
    %791 = arith.addf %789, %790 : vector<8x32xf32>
    %792 = math.tanh %791 : vector<8x32xf32>
    %793 = arith.mulf %788, %792 : vector<8x32xf32>
    %794 = arith.index_cast %775 : i32 to index
    %c0_223 = arith.constant 0 : index
    %795 = vector.load %arg18[%794, %c0_223] : memref<64x32xf32, #tpu.memory_space<vmem>>, vector<8x32xf32>
    tpu.vector_store %arg18[%794, %c0_223], %793 {strides = array<i32>} : memref<64x32xf32, #tpu.memory_space<vmem>>, vector<8x32xf32>,
    %c8_i32_224 = arith.constant 8 : i32
    %c0_225 = arith.constant 0 : index
    %c0_226 = arith.constant 0 : index
    %796 = vector.load %arg18[%c0_225, %c0_226] : memref<64x32xf32, #tpu.memory_space<vmem>>, vector<64x32xf32>
    %797 = arith.truncf %796 : vector<64x32xf32> to vector<64x32xbf16>
    %c0_227 = arith.constant 0 : index
    %c0_228 = arith.constant 0 : index
    %798 = vector.load %arg13[%c0_227, %c0_228] : memref<32x128xbf16, #tpu.memory_space<vmem>>, vector<32x128xbf16>
    %cst_229 = arith.constant dense<0.000000e+00> : vector<64x128xf32>
    %799 = tpu.matmul %797, %798, %cst_229 {dimension_numbers = #tpu.dot_dimension_numbers<[1], [0], [0], [1], [0, 0, 1, 1], [], []>} : vector<64x32xbf16>, vector<32x128xbf16>, vector<64x128xf32> -> vector<64x128xf32>
    %c0_230 = arith.constant 0 : index
    %c0_231 = arith.constant 0 : index
    %800 = vector.load %arg14[%c0_230, %c0_231] : memref<1x128xf32, #tpu.memory_space<vmem>>, vector<1x128xf32>
    %801 = vector.broadcast %800 : vector<1x128xf32> to vector<64x128xf32>
    %802 = arith.addf %799, %801 : vector<64x128xf32>
    %cst_232 = arith.constant dense<0xFF800000> : vector<64xf32>
    %803 = vector.multi_reduction <maximumf>, %802, %cst_232 [1] : vector<64x128xf32> to vector<64xf32>
    %804 = vector.shape_cast %803 : vector<64xf32> to vector<64x1xf32>
    %805 = vector.broadcast %804 : vector<64x1xf32> to vector<64x128xf32>
    %806 = arith.subf %802, %805 : vector<64x128xf32>
    %807 = math.exp %806 : vector<64x128xf32>
    %cst_233 = arith.constant dense<0.000000e+00> : vector<64xf32>
    %808 = vector.multi_reduction <add>, %807, %cst_233 [1] : vector<64x128xf32> to vector<64xf32>
    %809 = vector.shape_cast %808 : vector<64xf32> to vector<64x1xf32>
    %810 = math.log %809 : vector<64x1xf32>
    %811 = vector.broadcast %810 : vector<64x1xf32> to vector<64x128xf32>
    %812 = arith.subf %806, %811 : vector<64x128xf32>
    %c0_234 = arith.constant 0 : index
    %c0_235 = arith.constant 0 : index
    %813 = vector.load %arg15[%c0_234, %c0_235] : memref<64x128xf32, #tpu.memory_space<vmem>>, vector<64x128xf32>
    tpu.vector_store %arg15[%c0_234, %c0_235], %812 {strides = array<i32>} : memref<64x128xf32, #tpu.memory_space<vmem>>, vector<64x128xf32>,
    return
  }
}

</mosaic_0001>

<llo_original>
// kernel: tpu_custom_call.1
$region0: #{tpu_custom_call.1}
  #allocation0 [shape = 'u32[]', space=smem, size = 0x4, offset = 0x4, fixed_abs, tag = 'smem constant byte address 0x4 - core index']
  #allocation1 [shape = 'u32[144,128]{1,0:T(1,128)}', space=vmem, size = 0x12000, scoped, tag = 'internal scratch']
  #allocation2 [shape = 'f32[64,128]{1,0:T(8,128)}', space=vmem, size = 0x8000, scoped, tag = 'scratch operand']
  #allocation3 [shape = 'f32[64,32]{1,0:T(8,128)}', space=vmem, size = 0x8000, scoped, tag = 'scratch operand']
  #allocation4 [shape = 'f32[64,32]{1,0:T(8,128)}', space=vmem, size = 0x8000, scoped, tag = 'scratch operand']
  %s0 = inlined_call_operand.vmem [shape: f32[64,8], index: 0, kind: input, shape index: {}]
  %s1 = inlined_call_operand.hbm [shape: bf16[8,128], index: 1, kind: input, shape index: {}]
  %s2 = inlined_call_operand.vmem [shape: bf16[32,128], index: 2, kind: input, shape index: {}]
  %s3 = inlined_call_operand.vmem [shape: f32[1,128], index: 3, kind: input, shape index: {}]
  %s4 = inlined_call_operand.vmem [shape: bf16[32,64], index: 4, kind: input, shape index: {}]
  %s5 = inlined_call_operand.hbm [shape: bf16[16,64], index: 5, kind: input, shape index: {}]
  %s6 = inlined_call_operand.vmem [shape: f32[1,64], index: 6, kind: input, shape index: {}]
  %s7 = inlined_call_operand.hbm [shape: bf16[16,128], index: 7, kind: input, shape index: {}]
  %s8 = inlined_call_operand.vmem [shape: bf16[32,128], index: 8, kind: input, shape index: {}]
  %s9 = inlined_call_operand.vmem [shape: f32[1,128], index: 9, kind: input, shape index: {}]
  %s10 = inlined_call_operand.vmem [shape: bf16[32,128], index: 10, kind: input, shape index: {}]
  %s11 = inlined_call_operand.vmem [shape: bf16[32,128], index: 11, kind: input, shape index: {}]
  %s12 = inlined_call_operand.vmem [shape: f32[1,128], index: 12, kind: input, shape index: {}]
  %s13 = inlined_call_operand.vmem [shape: bf16[32,128], index: 13, kind: input, shape index: {}]
  %s14 = inlined_call_operand.vmem [shape: f32[1,128], index: 14, kind: input, shape index: {}]
  %s15 = inlined_call_operand.hbm [shape: f32[64,128], index: 15, kind: output, shape index: {}]
  %s16 = sld [smem:[#allocation0]]
  $region82: #{tpu_custom_call.1} parent=0
    _
  %s18 = ssub.s32 1, %s16
  %s19 = scalar_select 0, %s18, %s16
  $region1: #{tpu_custom_call.1} parent=0
    #allocation5 [shape = 'u8[2048]{0}', space=vmem, size = 0x800, scoped, tag = 'input window, operand 1, single buffered']
    #allocation6 [shape = 's32[1]{0}', space=sflag, size = 0x4, scoped, tag = 'scoped memory for tpu_custom_call.1']
    #allocation7 [shape = 's32[1]{0}', space=sflag, size = 0x4, scoped, tag = 'scoped memory for tpu_custom_call.1']
    #allocation8 [shape = 'u8[4096]{0}', space=vmem, size = 0x1000, scoped, tag = 'input window, operand 5, single buffered']
    #allocation9 [shape = 's32[1]{0}', space=sflag, size = 0x4, scoped, tag = 'scoped memory for tpu_custom_call.1']
    #allocation10 [shape = 'u8[4096]{0}', space=vmem, size = 0x1000, scoped, tag = 'input window, operand 7, single buffered']
    #allocation11 [shape = 'u8[32768]{0}', space=vmem, size = 0x8000, scoped, tag = 'output window, operand 0, single buffered']
    %20 = vsyncpa [#allocation6], 0
    %21 = vsyncpa [#allocation9], 0
    %22 = vsyncpa [#allocation7], 0
    // Predicated region
    $region2: #{tpu_custom_call.1} parent=1 // pred_check
      _
    $region3: #{tpu_custom_call.1} parent=1 // pred_check_branch
      %24 = sbr.rel (0) target = $region5
    $region4: #{tpu_custom_call.1} parent=1 // pred_region
      _
    $region5: #{tpu_custom_call.1} parent=1 // pred_fallthru
      _
    // Predicated region
    $region6: #{tpu_custom_call.1} parent=1 // pred_check
      _
    $region7: #{tpu_custom_call.1} parent=1 // pred_check_branch
      %26 = sbr.rel (0) target = $region9
    $region8: #{tpu_custom_call.1} parent=1 // pred_region
      %s28 = ssub.s32 64, 64
      %29 = vsyncadd [#allocation6], %s28
      %s31 = sshll.u32 [#allocation5], 4
      %s32 = int_to_ptr.vmem [resolvable:$true] %s31
      %34 = dma.hbm_to_vmem [thread:$0]  %s1, 64, %s32, [#allocation6]
    $region9: #{tpu_custom_call.1} parent=1 // pred_fallthru
      _
    // Predicated region
    $region10: #{tpu_custom_call.1} parent=1 // pred_check
      _
    $region11: #{tpu_custom_call.1} parent=1 // pred_check_branch
      %36 = sbr.rel (0) target = $region13
    $region12: #{tpu_custom_call.1} parent=1 // pred_region
      _
    $region13: #{tpu_custom_call.1} parent=1 // pred_fallthru
      _
    // Predicated region
    $region14: #{tpu_custom_call.1} parent=1 // pred_check
      _
    $region15: #{tpu_custom_call.1} parent=1 // pred_check_branch
      %38 = sbr.rel (0) target = $region17
    $region16: #{tpu_custom_call.1} parent=1 // pred_region
      _
    $region17: #{tpu_custom_call.1} parent=1 // pred_fallthru
      _
    // Predicated region
    $region18: #{tpu_custom_call.1} parent=1 // pred_check
      _
    $region19: #{tpu_custom_call.1} parent=1 // pred_check_branch
      %40 = sbr.rel (0) target = $region21
    $region20: #{tpu_custom_call.1} parent=1 // pred_region
      _
    $region21: #{tpu_custom_call.1} parent=1 // pred_fallthru
      _
    // Predicated region
    $region22: #{tpu_custom_call.1} parent=1 // pred_check
      _
    $region23: #{tpu_custom_call.1} parent=1 // pred_check_branch
      %42 = sbr.rel (0) target = $region25
    $region24: #{tpu_custom_call.1} parent=1 // pred_region
      %s44 = ssub.s32 128, 128
      %45 = vsyncadd [#allocation9], %s44
      %s46 = sshll.u32 [#allocation8], 4
      %s47 = int_to_ptr.vmem [resolvable:$true] %s46
      %52 = dma.hbm_to_vmem [thread:$0]  %s5, 128, %s47, [#allocation9], 64, 64, 4
    $region25: #{tpu_custom_call.1} parent=1 // pred_fallthru
      _
    // Predicated region
    $region26: #{tpu_custom_call.1} parent=1 // pred_check
      _
    $region27: #{tpu_custom_call.1} parent=1 // pred_check_branch
      %54 = sbr.rel (0) target = $region29
    $region28: #{tpu_custom_call.1} parent=1 // pred_region
      _
    $region29: #{tpu_custom_call.1} parent=1 // pred_fallthru
      _
    // Predicated region
    $region30: #{tpu_custom_call.1} parent=1 // pred_check
      _
    $region31: #{tpu_custom_call.1} parent=1 // pred_check_branch
      %56 = sbr.rel (0) target = $region33
    $region32: #{tpu_custom_call.1} parent=1 // pred_region
      %s58 = ssub.s32 128, 128
      %59 = vsyncadd [#allocation9], %s58
      %s60 = sshll.u32 [#allocation10], 4
      %s61 = int_to_ptr.vmem [resolvable:$true] %s60
      %66 = dma.hbm_to_vmem [thread:$0]  %s7, 128, %s61, [#allocation9], 64, 64, 4
    $region33: #{tpu_custom_call.1} parent=1 // pred_fallthru
      _
    // Predicated region
    $region34: #{tpu_custom_call.1} parent=1 // pred_check
      _
    $region35: #{tpu_custom_call.1} parent=1 // pred_check_branch
      %68 = sbr.rel (0) target = $region37
    $region36: #{tpu_custom_call.1} parent=1 // pred_region
      _
    $region37: #{tpu_custom_call.1} parent=1 // pred_fallthru
      _
    // Predicated region
    $region38: #{tpu_custom_call.1} parent=1 // pred_check
      _
    $region39: #{tpu_custom_call.1} parent=1 // pred_check_branch
      %70 = sbr.rel (0) target = $region41
    $region40: #{tpu_custom_call.1} parent=1 // pred_region
      _
    $region41: #{tpu_custom_call.1} parent=1 // pred_fallthru
      _
    // Predicated region
    $region42: #{tpu_custom_call.1} parent=1 // pred_check
      _
    $region43: #{tpu_custom_call.1} parent=1 // pred_check_branch
      %72 = sbr.rel (0) target = $region45
    $region44: #{tpu_custom_call.1} parent=1 // pred_region
      _
    $region45: #{tpu_custom_call.1} parent=1 // pred_fallthru
      _
    // Predicated region
    $region46: #{tpu_custom_call.1} parent=1 // pred_check
      _
    $region47: #{tpu_custom_call.1} parent=1 // pred_check_branch
      %74 = sbr.rel (0) target = $region49
    $region48: #{tpu_custom_call.1} parent=1 // pred_region
      _
    $region49: #{tpu_custom_call.1} parent=1 // pred_fallthru
      _
    // Predicated region
    $region50: #{tpu_custom_call.1} parent=1 // pred_check
      _
    $region51: #{tpu_custom_call.1} parent=1 // pred_check_branch
      %76 = sbr.rel (0) target = $region53
    $region52: #{tpu_custom_call.1} parent=1 // pred_region
      _
    $region53: #{tpu_custom_call.1} parent=1 // pred_fallthru
      _
    // Predicated region
    $region54: #{tpu_custom_call.1} parent=1 // pred_check
      _
    $region55: #{tpu_custom_call.1} parent=1 // pred_check_branch
      %78 = sbr.rel (0) target = $region57
    $region56: #{tpu_custom_call.1} parent=1 // pred_region
      _
    $region57: #{tpu_custom_call.1} parent=1 // pred_fallthru
      _
    // Predicated region
    $region58: #{tpu_custom_call.1} parent=1 // pred_check
      _
    $region59: #{tpu_custom_call.1} parent=1 // pred_check_branch
      %80 = sbr.rel (0) target = $region61
    $region60: #{tpu_custom_call.1} parent=1 // pred_region
      _
    $region61: #{tpu_custom_call.1} parent=1 // pred_fallthru
      _
    // Predicated region
    $region62: #{tpu_custom_call.1} parent=1 // pred_check
      _
    $region63: #{tpu_custom_call.1} parent=1 // pred_check_branch
      %82 = sbr.rel (0) target = $region65
    $region64: #{tpu_custom_call.1} parent=1 // pred_region
      %83 = dma.done [#allocation6], 64
    $region65: #{tpu_custom_call.1} parent=1 // pred_fallthru
      _
    // Predicated region
    $region66: #{tpu_custom_call.1} parent=1 // pred_check
      _
    $region67: #{tpu_custom_call.1} parent=1 // pred_check_branch
      %85 = sbr.rel (0) target = $region69
    $region68: #{tpu_custom_call.1} parent=1 // pred_region
      %86 = dma.done [#allocation9], 128
    $region69: #{tpu_custom_call.1} parent=1 // pred_fallthru
      _
    // Predicated region
    $region70: #{tpu_custom_call.1} parent=1 // pred_check
      _
    $region71: #{tpu_custom_call.1} parent=1 // pred_check_branch
      %88 = sbr.rel (0) target = $region73
    $region72: #{tpu_custom_call.1} parent=1 // pred_region
      %89 = dma.done [#allocation9], 128
    $region73: #{tpu_custom_call.1} parent=1 // pred_fallthru
      _
    %v91 = vld [vmem:[%s0] sm:$0xff]
    %v92 = vld [vmem:[%s0 + $0x8] sm:$0xff]
    %v93 = vld [vmem:[%s0 + $0x10] sm:$0xff]
    %v94 = vld [vmem:[%s0 + $0x18] sm:$0xff]
    %v95 = vld [vmem:[%s0 + $0x20] sm:$0xff]
    %v96 = vld [vmem:[%s0 + $0x28] sm:$0xff]
    %v97 = vld [vmem:[%s0 + $0x30] sm:$0xff]
    %v98 = vld [vmem:[%s0 + $0x38] sm:$0xff]
    %v99 = vpack.c.bf16 %v92, %v91
    %v100 = vpack.c.bf16 %v94, %v93
    %v101 = vpack.c.bf16 %v96, %v95
    %v102 = vpack.c.bf16 %v98, %v97
    %v103 = vld [vmem:[#allocation5] sm:$0xf]
    %v104 = vld [vmem:[%s3] sm:$0x1]
    %v106 = vlaneseq
    %v107 = vshrl.u32 %v106, 7
    %v108 = vsub.s32 0, %v107
    %v109 = vrot.slane %v104, %v108
    %vm111 = vcmask 64512
    %v113 = vsel %vm111, %v99, 0
    %v116 = vsel %vm111, %v100, 0
    %v119 = vsel %vm111, %v101, 0
    %v122 = vsel %vm111, %v102, 0
    %vm124 = vcmask 1043456
    %v126 = vsel %vm124, %v103, 0
    %128 = vmatprep.subr.bf16.mxu0 0
    %129 = vmatpush1.bf16.msra.mxu0 %v126
    %130 = vmatprep.subr.bf16.mxu0 0
    %131 = vmatpush1.bf16.msra.mxu0 0
    %132 = vmatprep.subr.bf16.mxu0 0
    %133 = vmatpush1.bf16.msra.mxu0 0
    %134 = vmatprep.subr.bf16.mxu0 0
    %135 = vmatpush1.bf16.msra.mxu0 0
    %136 = vmatprep.subr.bf16.mxu0 0
    %137 = vmatpush1.bf16.msra.mxu0 0
    %138 = vmatprep.subr.bf16.mxu0 0
    %139 = vmatpush1.bf16.msra.mxu0 0
    %140 = vmatprep.subr.bf16.mxu0 0
    %141 = vmatpush1.bf16.msra.mxu0 0
    %142 = vmatprep.subr.bf16.mxu0 0
    %143 = vmatpush1.bf16.msra.mxu0 0
    %144 = vmatprep.subr.bf16.mxu0 0
    %145 = vmatpush1.bf16.msra.mxu0 0
    %146 = vmatprep.subr.bf16.mxu0 0
    %147 = vmatpush1.bf16.msra.mxu0 0
    %148 = vmatprep.subr.bf16.mxu0 0
    %149 = vmatpush1.bf16.msra.mxu0 0
    %150 = vmatprep.subr.bf16.mxu0 0
    %151 = vmatpush1.bf16.msra.mxu0 0
    %152 = vmatprep.subr.bf16.mxu0 0
    %153 = vmatpush1.bf16.msra.mxu0 0
    %154 = vmatprep.subr.bf16.mxu0 0
    %155 = vmatpush1.bf16.msra.mxu0 0
    %156 = vmatprep.subr.bf16.mxu0 0
    %157 = vmatpush1.bf16.msra.mxu0 0
    %158 = vmatprep.subr.bf16.mxu0 0
    %159 = vmatpush1.bf16.msra.mxu0 0
    %160 = vmatprep.mubr.bf16.mxu0 0
    %161 = vmatmul.mubr.bf16.gmra.mrb[0].mxu0 %v113
    %v162 = vpop.f32.mrb[0].mxu0
    %v163 = vadd.f32 %v109, %v162
    %v164 = vpop.f32.mrb[0].mxu0
    %v165 = vpop.f32.mrb[0].mxu0
    %v166 = vadd.f32 %v109, %v165
    %v167 = vpop.f32.mrb[0].mxu0
    %168 = vmatprep.mubr.bf16.mxu0 0
    %169 = vmatmul.mubr.bf16.gmra.mrb[0].mxu0 %v116
    %v170 = vpop.f32.mrb[0].mxu0
    %v171 = vadd.f32 %v109, %v170
    %v172 = vpop.f32.mrb[0].mxu0
    %v173 = vpop.f32.mrb[0].mxu0
    %v174 = vadd.f32 %v109, %v173
    %v175 = vpop.f32.mrb[0].mxu0
    %176 = vmatprep.mubr.bf16.mxu0 0
    %177 = vmatmul.mubr.bf16.gmra.mrb[0].mxu0 %v119
    %v178 = vpop.f32.mrb[0].mxu0
    %v179 = vadd.f32 %v109, %v178
    %v180 = vpop.f32.mrb[0].mxu0
    %v181 = vpop.f32.mrb[0].mxu0
    %v182 = vadd.f32 %v109, %v181
    %v183 = vpop.f32.mrb[0].mxu0
    %184 = vmatprep.mubr.bf16.mxu0 0
    %185 = vmatmul.mubr.bf16.gmra.mrb[0].mxu0 %v122
    %v186 = vpop.f32.mrb[0].mxu0
    %v187 = vadd.f32 %v109, %v186
    %v188 = vpop.f32.mrb[0].mxu0
    %v189 = vpop.f32.mrb[0].mxu0
    %v190 = vadd.f32 %v109, %v189
    %v191 = vpop.f32.mrb[0].mxu0
    %192 = vdwg.mxu0
    %193 = vst [vmem:[#allocation2] sm:$0xff] %v163
    %194 = vst [vmem:[#allocation2 + $0x8] sm:$0xff] %v166
    %195 = vst [vmem:[#allocation2 + $0x10] sm:$0xff] %v171
    %196 = vst [vmem:[#allocation2 + $0x18] sm:$0xff] %v174
    %197 = vst [vmem:[#allocation2 + $0x20] sm:$0xff] %v179
    %198 = vst [vmem:[#allocation2 + $0x28] sm:$0xff] %v182
    %199 = vst [vmem:[#allocation2 + $0x30] sm:$0xff] %v187
    %200 = vst [vmem:[#allocation2 + $0x38] sm:$0xff] %v190
    %v201 = vld [vmem:[%s2] sm:$0xf]
    %v202 = vld [vmem:[%s2 + $0x4] sm:$0xf]
    %v203 = vld [vmem:[%s2 + $0x8] sm:$0xf]
    %v204 = vld [vmem:[%s2 + $0xc] sm:$0xf]
    %v205 = vlaneseq
    %v206 = vand.u32 %v205, 127
    %vm207 = vcmp.ge.s32.totalorder %v206, 64
    %vm208 = vcmp.lt.s32.totalorder %v206, 96
    %vm209 = vmand %vm207, %vm208
    %v210 = vsel %vm209, 1.0, 0.5
    %v211 = vsel %vm209, 0.0, 0.5
    %v212 = vld [vmem:[#allocation2] sm:$0xff]
    %v217 = vunpack.c.l.b16 %v201
    %v218 = vunpack.c.l.b16 %v202
    %v219 = vunpack.c.l.b16 %v203
    %v220 = vunpack.c.l.b16 %v204
    %v221 = vpack.c.b16 %v218, %v217
    %v222 = vpack.c.b16 %v220, %v219
    %vm225 = vcmask 261120
    %v227 = vsel %vm225, 0, 0
    %229 = vmatprep.subr.bf16.mxu0 0
    %230 = vmatpush1.bf16.msra.mxu0 %v221
    %231 = vmatprep.subr.bf16.mxu0 0
    %232 = vmatpush1.bf16.msra.mxu0 %v222
    %233 = vmatprep.subr.bf16.mxu0 0
    %234 = vmatpush1.bf16.msra.mxu0 0
    %235 = vmatprep.subr.bf16.mxu0 0
    %236 = vmatpush1.bf16.msra.mxu0 0
    %237 = vmatprep.subr.bf16.mxu0 0
    %238 = vmatpush1.bf16.msra.mxu0 0
    %239 = vmatprep.subr.bf16.mxu0 0
    %240 = vmatpush1.bf16.msra.mxu0 0
    %241 = vmatprep.subr.bf16.mxu0 0
    %242 = vmatpush1.bf16.msra.mxu0 0
    %243 = vmatprep.subr.bf16.mxu0 0
    %244 = vmatpush1.bf16.msra.mxu0 0
    %245 = vmatprep.subr.bf16.mxu0 0
    %246 = vmatpush1.bf16.msra.mxu0 0
    %247 = vmatprep.subr.bf16.mxu0 0
    %248 = vmatpush1.bf16.msra.mxu0 0
    %249 = vmatprep.subr.bf16.mxu0 0
    %250 = vmatpush1.bf16.msra.mxu0 0
    %251 = vmatprep.subr.bf16.mxu0 0
    %252 = vmatpush1.bf16.msra.mxu0 0
    %253 = vmatprep.subr.bf16.mxu0 0
    %254 = vmatpush1.bf16.msra.mxu0 0
    %255 = vmatprep.subr.bf16.mxu0 0
    %256 = vmatpush1.bf16.msra.mxu0 0
    %257 = vmatprep.subr.bf16.mxu0 0
    %258 = vmatpush1.bf16.msra.mxu0 0
    %259 = vmatprep.subr.bf16.mxu0 0
    %260 = vmatpush1.bf16.msra.mxu0 0
    %261 = vmatprep.mubr.bf16.mxu0 0
    %262 = vmatmul.mubr.bf16.gmra.mrb[0].mxu0 %v227
    %v263 = vpop.f32.mrb[0].mxu0
    %v264 = vadd.f32 0.0, %v263
    %v265 = vpop.f32.mrb[0].mxu0
    %v266 = vpop.f32.mrb[0].mxu0
    %v267 = vpop.f32.mrb[0].mxu0
    %268 = vdwg.mxu0
    %v269 = vadd.f32 %v212, %v264
    %v270 = vmul.f32 %v210, %v269
    %v271 = vtanh.pop %v270
    %v272 = vmul.f32 %v210, %v271
    %v273 = vadd.f32 %v272, %v211
    %v274 = vmul.f32 %v273, 0.0
    %276 = vrot.lane.b32.xlu0 %v273, 64
    %v277 = vpop.permute.xlu0 %276
    %v279 = vmul.f32 %v273, %v277
    %281 = vrot.lane.b32.xlu0 %v279, 32
    %v282 = vpop.permute.xlu0 %281
    %v284 = vadd.f32 %v274, %v282
    %v285 = vtanh.pop %v284
    %287 = vrot.lane.b32.xlu0 %v285, 64
    %v288 = vpop.permute.xlu0 %287
    %v290 = vmul.f32 %v273, %v288
    %292 = vrot.lane.b32.xlu0 %v290, 32
    %v293 = vpop.permute.xlu0 %292
    %295 = vst.msk [vmem:[#allocation3] sm:$0xff] %vm225, %v293
    %s296 = scalar_lea.vmem [#allocation2], 8
    %v297 = vld [vmem:[%s296] sm:$0xff]
    %v298 = vpack.c.bf16 %v290, %v290
    %300 = vrot.lane.b32.xlu0 %v298, 32
    %v301 = vpop.permute.xlu0 %300
    %v303 = vsel %vm225, %v301, 0
    %305 = vmatprep.subr.bf16.mxu0 0
    %306 = vmatpush1.bf16.msra.mxu0 %v221
    %307 = vmatprep.subr.bf16.mxu0 0
    %308 = vmatpush1.bf16.msra.mxu0 %v222
    %309 = vmatprep.subr.bf16.mxu0 0
    %310 = vmatpush1.bf16.msra.mxu0 0
    %311 = vmatprep.subr.bf16.mxu0 0
    %312 = vmatpush1.bf16.msra.mxu0 0
    %313 = vmatprep.subr.bf16.mxu0 0
    %314 = vmatpush1.bf16.msra.mxu0 0
    %315 = vmatprep.subr.bf16.mxu0 0
    %316 = vmatpush1.bf16.msra.mxu0 0
    %317 = vmatprep.subr.bf16.mxu0 0
    %318 = vmatpush1.bf16.msra.mxu0 0
    %319 = vmatprep.subr.bf16.mxu0 0
    %320 = vmatpush1.bf16.msra.mxu0 0
    %321 = vmatprep.subr.bf16.mxu0 0
    %322 = vmatpush1.bf16.msra.mxu0 0
    %323 = vmatprep.subr.bf16.mxu0 0
    %324 = vmatpush1.bf16.msra.mxu0 0
    %325 = vmatprep.subr.bf16.mxu0 0
    %326 = vmatpush1.bf16.msra.mxu0 0
    %327 = vmatprep.subr.bf16.mxu0 0
    %328 = vmatpush1.bf16.msra.mxu0 0
    %329 = vmatprep.subr.bf16.mxu0 0
    %330 = vmatpush1.bf16.msra.mxu0 0
    %331 = vmatprep.subr.bf16.mxu0 0
    %332 = vmatpush1.bf16.msra.mxu0 0
    %333 = vmatprep.subr.bf16.mxu0 0
    %334 = vmatpush1.bf16.msra.mxu0 0
    %335 = vmatprep.subr.bf16.mxu0 0
    %336 = vmatpush1.bf16.msra.mxu0 0
    %337 = vmatprep.mubr.bf16.mxu0 0
    %338 = vmatmul.mubr.bf16.gmra.mrb[0].mxu0 %v303
    %v339 = vpop.f32.mrb[0].mxu0
    %v340 = vadd.f32 0.0, %v339
    %v341 = vpop.f32.mrb[0].mxu0
    %v342 = vpop.f32.mrb[0].mxu0
    %v343 = vpop.f32.mrb[0].mxu0
    %344 = vdwg.mxu0
    %v345 = vadd.f32 %v297, %v340
    %v346 = vmul.f32 %v210, %v345
    %v347 = vtanh.pop %v346
    %v348 = vmul.f32 %v210, %v347
    %v349 = vadd.f32 %v348, %v211
    %v350 = vmul.f32 %v349, %v284
    %352 = vrot.lane.b32.xlu0 %v349, 64
    %v353 = vpop.permute.xlu0 %352
    %v355 = vmul.f32 %v349, %v353
    %357 = vrot.lane.b32.xlu0 %v355, 32
    %v358 = vpop.permute.xlu0 %357
    %v360 = vadd.f32 %v350, %v358
    %v361 = vtanh.pop %v360
    %363 = vrot.lane.b32.xlu0 %v361, 64
    %v364 = vpop.permute.xlu0 %363
    %v366 = vmul.f32 %v349, %v364
    %368 = vrot.lane.b32.xlu0 %v366, 32
    %v369 = vpop.permute.xlu0 %368
    %s371 = scalar_lea.vmem [#allocation3], 8
    %372 = vst.msk [vmem:[%s371] sm:$0xff] %vm225, %v369
    %s373 = scalar_lea.vmem [#allocation2], 16
    %v374 = vld [vmem:[%s373] sm:$0xff]
    %v375 = vpack.c.bf16 %v366, %v366
    %377 = vrot.lane.b32.xlu0 %v375, 32
    %v378 = vpop.permute.xlu0 %377
    %v380 = vsel %vm225, %v378, 0
    %382 = vmatprep.subr.bf16.mxu0 0
    %383 = vmatpush1.bf16.msra.mxu0 %v221
    %384 = vmatprep.subr.bf16.mxu0 0
    %385 = vmatpush1.bf16.msra.mxu0 %v222
    %386 = vmatprep.subr.bf16.mxu0 0
    %387 = vmatpush1.bf16.msra.mxu0 0
    %388 = vmatprep.subr.bf16.mxu0 0
    %389 = vmatpush1.bf16.msra.mxu0 0
    %390 = vmatprep.subr.bf16.mxu0 0
    %391 = vmatpush1.bf16.msra.mxu0 0
    %392 = vmatprep.subr.bf16.mxu0 0
    %393 = vmatpush1.bf16.msra.mxu0 0
    %394 = vmatprep.subr.bf16.mxu0 0
    %395 = vmatpush1.bf16.msra.mxu0 0
    %396 = vmatprep.subr.bf16.mxu0 0
    %397 = vmatpush1.bf16.msra.mxu0 0
    %398 = vmatprep.subr.bf16.mxu0 0
    %399 = vmatpush1.bf16.msra.mxu0 0
    %400 = vmatprep.subr.bf16.mxu0 0
    %401 = vmatpush1.bf16.msra.mxu0 0
    %402 = vmatprep.subr.bf16.mxu0 0
    %403 = vmatpush1.bf16.msra.mxu0 0
    %404 = vmatprep.subr.bf16.mxu0 0
    %405 = vmatpush1.bf16.msra.mxu0 0
    %406 = vmatprep.subr.bf16.mxu0 0
    %407 = vmatpush1.bf16.msra.mxu0 0
    %408 = vmatprep.subr.bf16.mxu0 0
    %409 = vmatpush1.bf16.msra.mxu0 0
    %410 = vmatprep.subr.bf16.mxu0 0
    %411 = vmatpush1.bf16.msra.mxu0 0
    %412 = vmatprep.subr.bf16.mxu0 0
    %413 = vmatpush1.bf16.msra.mxu0 0
    %414 = vmatprep.mubr.bf16.mxu0 0
    %415 = vmatmul.mubr.bf16.gmra.mrb[0].mxu0 %v380
    %v416 = vpop.f32.mrb[0].mxu0
    %v417 = vadd.f32 0.0, %v416
    %v418 = vpop.f32.mrb[0].mxu0
    %v419 = vpop.f32.mrb[0].mxu0
    %v420 = vpop.f32.mrb[0].mxu0
    %421 = vdwg.mxu0
    %v422 = vadd.f32 %v374, %v417
    %v423 = vmul.f32 %v210, %v422
    %v424 = vtanh.pop %v423
    %v425 = vmul.f32 %v210, %v424
    %v426 = vadd.f32 %v425, %v211
    %v427 = vmul.f32 %v426, %v360
    %429 = vrot.lane.b32.xlu0 %v426, 64
    %v430 = vpop.permute.xlu0 %429
    %v432 = vmul.f32 %v426, %v430
    %434 = vrot.lane.b32.xlu0 %v432, 32
    %v435 = vpop.permute.xlu0 %434
    %v437 = vadd.f32 %v427, %v435
    %v438 = vtanh.pop %v437
    %440 = vrot.lane.b32.xlu0 %v438, 64
    %v441 = vpop.permute.xlu0 %440
    %v443 = vmul.f32 %v426, %v441
    %445 = vrot.lane.b32.xlu0 %v443, 32
    %v446 = vpop.permute.xlu0 %445
    %s448 = scalar_lea.vmem [#allocation3], 16
    %449 = vst.msk [vmem:[%s448] sm:$0xff] %vm225, %v446
    %s450 = scalar_lea.vmem [#allocation2], 24
    %v451 = vld [vmem:[%s450] sm:$0xff]
    %v452 = vpack.c.bf16 %v443, %v443
    %454 = vrot.lane.b32.xlu0 %v452, 32
    %v455 = vpop.permute.xlu0 %454
    %v457 = vsel %vm225, %v455, 0
    %459 = vmatprep.subr.bf16.mxu0 0
    %460 = vmatpush1.bf16.msra.mxu0 %v221
    %461 = vmatprep.subr.bf16.mxu0 0
    %462 = vmatpush1.bf16.msra.mxu0 %v222
    %463 = vmatprep.subr.bf16.mxu0 0
    %464 = vmatpush1.bf16.msra.mxu0 0
    %465 = vmatprep.subr.bf16.mxu0 0
    %466 = vmatpush1.bf16.msra.mxu0 0
    %467 = vmatprep.subr.bf16.mxu0 0
    %468 = vmatpush1.bf16.msra.mxu0 0
    %469 = vmatprep.subr.bf16.mxu0 0
    %470 = vmatpush1.bf16.msra.mxu0 0
    %471 = vmatprep.subr.bf16.mxu0 0
    %472 = vmatpush1.bf16.msra.mxu0 0
    %473 = vmatprep.subr.bf16.mxu0 0
    %474 = vmatpush1.bf16.msra.mxu0 0
    %475 = vmatprep.subr.bf16.mxu0 0
    %476 = vmatpush1.bf16.msra.mxu0 0
    %477 = vmatprep.subr.bf16.mxu0 0
    %478 = vmatpush1.bf16.msra.mxu0 0
    %479 = vmatprep.subr.bf16.mxu0 0
    %480 = vmatpush1.bf16.msra.mxu0 0
    %481 = vmatprep.subr.bf16.mxu0 0
    %482 = vmatpush1.bf16.msra.mxu0 0
    %483 = vmatprep.subr.bf16.mxu0 0
    %484 = vmatpush1.bf16.msra.mxu0 0
    %485 = vmatprep.subr.bf16.mxu0 0
    %486 = vmatpush1.bf16.msra.mxu0 0
    %487 = vmatprep.subr.bf16.mxu0 0
    %488 = vmatpush1.bf16.msra.mxu0 0
    %489 = vmatprep.subr.bf16.mxu0 0
    %490 = vmatpush1.bf16.msra.mxu0 0
    %491 = vmatprep.mubr.bf16.mxu0 0
    %492 = vmatmul.mubr.bf16.gmra.mrb[0].mxu0 %v457
    %v493 = vpop.f32.mrb[0].mxu0
    %v494 = vadd.f32 0.0, %v493
    %v495 = vpop.f32.mrb[0].mxu0
    %v496 = vpop.f32.mrb[0].mxu0
    %v497 = vpop.f32.mrb[0].mxu0
    %498 = vdwg.mxu0
    %v499 = vadd.f32 %v451, %v494
    %v500 = vmul.f32 %v210, %v499
    %v501 = vtanh.pop %v500
    %v502 = vmul.f32 %v210, %v501
    %v503 = vadd.f32 %v502, %v211
    %v504 = vmul.f32 %v503, %v437
    %506 = vrot.lane.b32.xlu0 %v503, 64
    %v507 = vpop.permute.xlu0 %506
    %v509 = vmul.f32 %v503, %v507
    %511 = vrot.lane.b32.xlu0 %v509, 32
    %v512 = vpop.permute.xlu0 %511
    %v514 = vadd.f32 %v504, %v512
    %v515 = vtanh.pop %v514
    %517 = vrot.lane.b32.xlu0 %v515, 64
    %v518 = vpop.permute.xlu0 %517
    %v520 = vmul.f32 %v503, %v518
    %522 = vrot.lane.b32.xlu0 %v520, 32
    %v523 = vpop.permute.xlu0 %522
    %s525 = scalar_lea.vmem [#allocation3], 24
    %526 = vst.msk [vmem:[%s525] sm:$0xff] %vm225, %v523
    %s527 = scalar_lea.vmem [#allocation2], 32
    %v528 = vld [vmem:[%s527] sm:$0xff]
    %v529 = vpack.c.bf16 %v520, %v520
    %531 = vrot.lane.b32.xlu0 %v529, 32
    %v532 = vpop.permute.xlu0 %531
    %v534 = vsel %vm225, %v532, 0
    %536 = vmatprep.subr.bf16.mxu0 0
    %537 = vmatpush1.bf16.msra.mxu0 %v221
    %538 = vmatprep.subr.bf16.mxu0 0
    %539 = vmatpush1.bf16.msra.mxu0 %v222
    %540 = vmatprep.subr.bf16.mxu0 0
    %541 = vmatpush1.bf16.msra.mxu0 0
    %542 = vmatprep.subr.bf16.mxu0 0
    %543 = vmatpush1.bf16.msra.mxu0 0
    %544 = vmatprep.subr.bf16.mxu0 0
    %545 = vmatpush1.bf16.msra.mxu0 0
    %546 = vmatprep.subr.bf16.mxu0 0
    %547 = vmatpush1.bf16.msra.mxu0 0
    %548 = vmatprep.subr.bf16.mxu0 0
    %549 = vmatpush1.bf16.msra.mxu0 0
    %550 = vmatprep.subr.bf16.mxu0 0
    %551 = vmatpush1.bf16.msra.mxu0 0
    %552 = vmatprep.subr.bf16.mxu0 0
    %553 = vmatpush1.bf16.msra.mxu0 0
    %554 = vmatprep.subr.bf16.mxu0 0
    %555 = vmatpush1.bf16.msra.mxu0 0
    %556 = vmatprep.subr.bf16.mxu0 0
    %557 = vmatpush1.bf16.msra.mxu0 0
    %558 = vmatprep.subr.bf16.mxu0 0
    %559 = vmatpush1.bf16.msra.mxu0 0
    %560 = vmatprep.subr.bf16.mxu0 0
    %561 = vmatpush1.bf16.msra.mxu0 0
    %562 = vmatprep.subr.bf16.mxu0 0
    %563 = vmatpush1.bf16.msra.mxu0 0
    %564 = vmatprep.subr.bf16.mxu0 0
    %565 = vmatpush1.bf16.msra.mxu0 0
    %566 = vmatprep.subr.bf16.mxu0 0
    %567 = vmatpush1.bf16.msra.mxu0 0
    %568 = vmatprep.mubr.bf16.mxu0 0
    %569 = vmatmul.mubr.bf16.gmra.mrb[0].mxu0 %v534
    %v570 = vpop.f32.mrb[0].mxu0
    %v571 = vadd.f32 0.0, %v570
    %v572 = vpop.f32.mrb[0].mxu0
    %v573 = vpop.f32.mrb[0].mxu0
    %v574 = vpop.f32.mrb[0].mxu0
    %575 = vdwg.mxu0
    %v576 = vadd.f32 %v528, %v571
    %v577 = vmul.f32 %v210, %v576
    %v578 = vtanh.pop %v577
    %v579 = vmul.f32 %v210, %v578
    %v580 = vadd.f32 %v579, %v211
    %v581 = vmul.f32 %v580, %v514
    %583 = vrot.lane.b32.xlu0 %v580, 64
    %v584 = vpop.permute.xlu0 %583
    %v586 = vmul.f32 %v580, %v584
    %588 = vrot.lane.b32.xlu0 %v586, 32
    %v589 = vpop.permute.xlu0 %588
    %v591 = vadd.f32 %v581, %v589
    %v592 = vtanh.pop %v591
    %594 = vrot.lane.b32.xlu0 %v592, 64
    %v595 = vpop.permute.xlu0 %594
    %v597 = vmul.f32 %v580, %v595
    %599 = vrot.lane.b32.xlu0 %v597, 32
    %v600 = vpop.permute.xlu0 %599
    %s602 = scalar_lea.vmem [#allocation3], 32
    %603 = vst.msk [vmem:[%s602] sm:$0xff] %vm225, %v600
    %s604 = scalar_lea.vmem [#allocation2], 40
    %v605 = vld [vmem:[%s604] sm:$0xff]
    %v606 = vpack.c.bf16 %v597, %v597
    %608 = vrot.lane.b32.xlu0 %v606, 32
    %v609 = vpop.permute.xlu0 %608
    %v611 = vsel %vm225, %v609, 0
    %613 = vmatprep.subr.bf16.mxu0 0
    %614 = vmatpush1.bf16.msra.mxu0 %v221
    %615 = vmatprep.subr.bf16.mxu0 0
    %616 = vmatpush1.bf16.msra.mxu0 %v222
    %617 = vmatprep.subr.bf16.mxu0 0
    %618 = vmatpush1.bf16.msra.mxu0 0
    %619 = vmatprep.subr.bf16.mxu0 0
    %620 = vmatpush1.bf16.msra.mxu0 0
    %621 = vmatprep.subr.bf16.mxu0 0
    %622 = vmatpush1.bf16.msra.mxu0 0
    %623 = vmatprep.subr.bf16.mxu0 0
    %624 = vmatpush1.bf16.msra.mxu0 0
    %625 = vmatprep.subr.bf16.mxu0 0
    %626 = vmatpush1.bf16.msra.mxu0 0
    %627 = vmatprep.subr.bf16.mxu0 0
    %628 = vmatpush1.bf16.msra.mxu0 0
    %629 = vmatprep.subr.bf16.mxu0 0
    %630 = vmatpush1.bf16.msra.mxu0 0
    %631 = vmatprep.subr.bf16.mxu0 0
    %632 = vmatpush1.bf16.msra.mxu0 0
    %633 = vmatprep.subr.bf16.mxu0 0
    %634 = vmatpush1.bf16.msra.mxu0 0
    %635 = vmatprep.subr.bf16.mxu0 0
    %636 = vmatpush1.bf16.msra.mxu0 0
    %637 = vmatprep.subr.bf16.mxu0 0
    %638 = vmatpush1.bf16.msra.mxu0 0
    %639 = vmatprep.subr.bf16.mxu0 0
    %640 = vmatpush1.bf16.msra.mxu0 0
    %641 = vmatprep.subr.bf16.mxu0 0
    %642 = vmatpush1.bf16.msra.mxu0 0
    %643 = vmatprep.subr.bf16.mxu0 0
    %644 = vmatpush1.bf16.msra.mxu0 0
    %645 = vmatprep.mubr.bf16.mxu0 0
    %646 = vmatmul.mubr.bf16.gmra.mrb[0].mxu0 %v611
    %v647 = vpop.f32.mrb[0].mxu0
    %v648 = vadd.f32 0.0, %v647
    %v649 = vpop.f32.mrb[0].mxu0
    %v650 = vpop.f32.mrb[0].mxu0
    %v651 = vpop.f32.mrb[0].mxu0
    %652 = vdwg.mxu0
    %v653 = vadd.f32 %v605, %v648
    %v654 = vmul.f32 %v210, %v653
    %v655 = vtanh.pop %v654
    %v656 = vmul.f32 %v210, %v655
    %v657 = vadd.f32 %v656, %v211
    %v658 = vmul.f32 %v657, %v591
    %660 = vrot.lane.b32.xlu0 %v657, 64
    %v661 = vpop.permute.xlu0 %660
    %v663 = vmul.f32 %v657, %v661
    %665 = vrot.lane.b32.xlu0 %v663, 32
    %v666 = vpop.permute.xlu0 %665
    %v668 = vadd.f32 %v658, %v666
    %v669 = vtanh.pop %v668
    %671 = vrot.lane.b32.xlu0 %v669, 64
    %v672 = vpop.permute.xlu0 %671
    %v674 = vmul.f32 %v657, %v672
    %676 = vrot.lane.b32.xlu0 %v674, 32
    %v677 = vpop.permute.xlu0 %676
    %s679 = scalar_lea.vmem [#allocation3], 40
    %680 = vst.msk [vmem:[%s679] sm:$0xff] %vm225, %v677
    %s681 = scalar_lea.vmem [#allocation2], 48
    %v682 = vld [vmem:[%s681] sm:$0xff]
    %v683 = vpack.c.bf16 %v674, %v674
    %685 = vrot.lane.b32.xlu0 %v683, 32
    %v686 = vpop.permute.xlu0 %685
    %v688 = vsel %vm225, %v686, 0
    %690 = vmatprep.subr.bf16.mxu0 0
    %691 = vmatpush1.bf16.msra.mxu0 %v221
    %692 = vmatprep.subr.bf16.mxu0 0
    %693 = vmatpush1.bf16.msra.mxu0 %v222
    %694 = vmatprep.subr.bf16.mxu0 0
    %695 = vmatpush1.bf16.msra.mxu0 0
    %696 = vmatprep.subr.bf16.mxu0 0
    %697 = vmatpush1.bf16.msra.mxu0 0
    %698 = vmatprep.subr.bf16.mxu0 0
    %699 = vmatpush1.bf16.msra.mxu0 0
    %700 = vmatprep.subr.bf16.mxu0 0
    %701 = vmatpush1.bf16.msra.mxu0 0
    %702 = vmatprep.subr.bf16.mxu0 0
    %703 = vmatpush1.bf16.msra.mxu0 0
    %704 = vmatprep.subr.bf16.mxu0 0
    %705 = vmatpush1.bf16.msra.mxu0 0
    %706 = vmatprep.subr.bf16.mxu0 0
    %707 = vmatpush1.bf16.msra.mxu0 0
    %708 = vmatprep.subr.bf16.mxu0 0
    %709 = vmatpush1.bf16.msra.mxu0 0
    %710 = vmatprep.subr.bf16.mxu0 0
    %711 = vmatpush1.bf16.msra.mxu0 0
    %712 = vmatprep.subr.bf16.mxu0 0
    %713 = vmatpush1.bf16.msra.mxu0 0
    %714 = vmatprep.subr.bf16.mxu0 0
    %715 = vmatpush1.bf16.msra.mxu0 0
    %716 = vmatprep.subr.bf16.mxu0 0
    %717 = vmatpush1.bf16.msra.mxu0 0
    %718 = vmatprep.subr.bf16.mxu0 0
    %719 = vmatpush1.bf16.msra.mxu0 0
    %720 = vmatprep.subr.bf16.mxu0 0
    %721 = vmatpush1.bf16.msra.mxu0 0
    %722 = vmatprep.mubr.bf16.mxu0 0
    %723 = vmatmul.mubr.bf16.gmra.mrb[0].mxu0 %v688
    %v724 = vpop.f32.mrb[0].mxu0
    %v725 = vadd.f32 0.0, %v724
    %v726 = vpop.f32.mrb[0].mxu0
    %v727 = vpop.f32.mrb[0].mxu0
    %v728 = vpop.f32.mrb[0].mxu0
    %729 = vdwg.mxu0
    %v730 = vadd.f32 %v682, %v725
    %v731 = vmul.f32 %v210, %v730
    %v732 = vtanh.pop %v731
    %v733 = vmul.f32 %v210, %v732
    %v734 = vadd.f32 %v733, %v211
    %v735 = vmul.f32 %v734, %v668
    %737 = vrot.lane.b32.xlu0 %v734, 64
    %v738 = vpop.permute.xlu0 %737
    %v740 = vmul.f32 %v734, %v738
    %742 = vrot.lane.b32.xlu0 %v740, 32
    %v743 = vpop.permute.xlu0 %742
    %v745 = vadd.f32 %v735, %v743
    %v746 = vtanh.pop %v745
    %748 = vrot.lane.b32.xlu0 %v746, 64
    %v749 = vpop.permute.xlu0 %748
    %v751 = vmul.f32 %v734, %v749
    %753 = vrot.lane.b32.xlu0 %v751, 32
    %v754 = vpop.permute.xlu0 %753
    %s756 = scalar_lea.vmem [#allocation3], 48
    %757 = vst.msk [vmem:[%s756] sm:$0xff] %vm225, %v754
    %s758 = scalar_lea.vmem [#allocation2], 56
    %v759 = vld [vmem:[%s758] sm:$0xff]
    %v760 = vpack.c.bf16 %v751, %v751
    %762 = vrot.lane.b32.xlu0 %v760, 32
    %v763 = vpop.permute.xlu0 %762
    %v765 = vsel %vm225, %v763, 0
    %767 = vmatprep.subr.bf16.mxu0 0
    %768 = vmatpush1.bf16.msra.mxu0 %v221
    %769 = vmatprep.subr.bf16.mxu0 0
    %770 = vmatpush1.bf16.msra.mxu0 %v222
    %771 = vmatprep.subr.bf16.mxu0 0
    %772 = vmatpush1.bf16.msra.mxu0 0
    %773 = vmatprep.subr.bf16.mxu0 0
    %774 = vmatpush1.bf16.msra.mxu0 0
    %775 = vmatprep.subr.bf16.mxu0 0
    %776 = vmatpush1.bf16.msra.mxu0 0
    %777 = vmatprep.subr.bf16.mxu0 0
    %778 = vmatpush1.bf16.msra.mxu0 0
    %779 = vmatprep.subr.bf16.mxu0 0
    %780 = vmatpush1.bf16.msra.mxu0 0
    %781 = vmatprep.subr.bf16.mxu0 0
    %782 = vmatpush1.bf16.msra.mxu0 0
    %783 = vmatprep.subr.bf16.mxu0 0
    %784 = vmatpush1.bf16.msra.mxu0 0
    %785 = vmatprep.subr.bf16.mxu0 0
    %786 = vmatpush1.bf16.msra.mxu0 0
    %787 = vmatprep.subr.bf16.mxu0 0
    %788 = vmatpush1.bf16.msra.mxu0 0
    %789 = vmatprep.subr.bf16.mxu0 0
    %790 = vmatpush1.bf16.msra.mxu0 0
    %791 = vmatprep.subr.bf16.mxu0 0
    %792 = vmatpush1.bf16.msra.mxu0 0
    %793 = vmatprep.subr.bf16.mxu0 0
    %794 = vmatpush1.bf16.msra.mxu0 0
    %795 = vmatprep.subr.bf16.mxu0 0
    %796 = vmatpush1.bf16.msra.mxu0 0
    %797 = vmatprep.subr.bf16.mxu0 0
    %798 = vmatpush1.bf16.msra.mxu0 0
    %799 = vmatprep.mubr.bf16.mxu0 0
    %800 = vmatmul.mubr.bf16.gmra.mrb[0].mxu0 %v765
    %v801 = vpop.f32.mrb[0].mxu0
    %v802 = vadd.f32 0.0, %v801
    %v803 = vpop.f32.mrb[0].mxu0
    %v804 = vpop.f32.mrb[0].mxu0
    %v805 = vpop.f32.mrb[0].mxu0
    %806 = vdwg.mxu0
    %v807 = vadd.f32 %v759, %v802
    %v808 = vmul.f32 %v210, %v807
    %v809 = vtanh.pop %v808
    %v810 = vmul.f32 %v210, %v809
    %v811 = vadd.f32 %v810, %v211
    %v812 = vmul.f32 %v811, %v745
    %814 = vrot.lane.b32.xlu0 %v811, 64
    %v815 = vpop.permute.xlu0 %814
    %v817 = vmul.f32 %v811, %v815
    %819 = vrot.lane.b32.xlu0 %v817, 32
    %v820 = vpop.permute.xlu0 %819
    %v822 = vadd.f32 %v812, %v820
    %v823 = vtanh.pop %v822
    %825 = vrot.lane.b32.xlu0 %v823, 64
    %v826 = vpop.permute.xlu0 %825
    %v828 = vmul.f32 %v811, %v826
    %830 = vrot.lane.b32.xlu0 %v828, 32
    %v831 = vpop.permute.xlu0 %830
    %s833 = scalar_lea.vmem [#allocation3], 56
    %834 = vst.msk [vmem:[%s833] sm:$0xff] %vm225, %v831
    %v835 = vld [vmem:[#allocation3] sm:$0xff]
    %v836 = vld [vmem:[#allocation3 + $0x8] sm:$0xff]
    %v837 = vld [vmem:[#allocation3 + $0x10] sm:$0xff]
    %v838 = vld [vmem:[#allocation3 + $0x18] sm:$0xff]
    %v839 = vld [vmem:[#allocation3 + $0x20] sm:$0xff]
    %v840 = vld [vmem:[#allocation3 + $0x28] sm:$0xff]
    %v841 = vld [vmem:[#allocation3 + $0x30] sm:$0xff]
    %v842 = vld [vmem:[#allocation3 + $0x38] sm:$0xff]
    %v843 = vpack.c.bf16 %v836, %v835
    %v844 = vpack.c.bf16 %v838, %v837
    %v845 = vpack.c.bf16 %v840, %v839
    %v846 = vpack.c.bf16 %v842, %v841
    %v847 = vld [vmem:[%s4] sm:$0xf]
    %v848 = vld [vmem:[%s4 + $0x4] sm:$0xf]
    %v849 = vld [vmem:[%s4 + $0x8] sm:$0xf]
    %v850 = vld [vmem:[%s4 + $0xc] sm:$0xf]
    %v851 = vld [vmem:[%s6] sm:$0x1]
    %v853 = vlaneseq
    %v854 = vshrl.u32 %v853, 7
    %v855 = vsub.s32 0, %v854
    %v856 = vrot.slane %v851, %v855
    %v862 = vunpack.c.l.b16 %v847
    %v863 = vunpack.c.l.b16 %v848
    %v864 = vunpack.c.l.b16 %v849
    %v865 = vunpack.c.l.b16 %v850
    %v866 = vpack.c.b16 %v863, %v862
    %v867 = vpack.c.b16 %v865, %v864
    %v871 = vsel %vm225, %v843, 0
    %v874 = vsel %vm225, %v844, 0
    %v877 = vsel %vm225, %v845, 0
    %v880 = vsel %vm225, %v846, 0
    %882 = vmatprep.subr.bf16.mxu0 0
    %883 = vmatpush1.bf16.msra.mxu0 %v866
    %884 = vmatprep.subr.bf16.mxu0 0
    %885 = vmatpush1.bf16.msra.mxu0 %v867
    %886 = vmatprep.subr.bf16.mxu0 0
    %887 = vmatpush1.bf16.msra.mxu0 0
    %888 = vmatprep.subr.bf16.mxu0 0
    %889 = vmatpush1.bf16.msra.mxu0 0
    %890 = vmatprep.subr.bf16.mxu0 0
    %891 = vmatpush1.bf16.msra.mxu0 0
    %892 = vmatprep.subr.bf16.mxu0 0
    %893 = vmatpush1.bf16.msra.mxu0 0
    %894 = vmatprep.subr.bf16.mxu0 0
    %895 = vmatpush1.bf16.msra.mxu0 0
    %896 = vmatprep.subr.bf16.mxu0 0
    %897 = vmatpush1.bf16.msra.mxu0 0
    %898 = vmatprep.subr.bf16.mxu0 0
    %899 = vmatpush1.bf16.msra.mxu0 0
    %900 = vmatprep.subr.bf16.mxu0 0
    %901 = vmatpush1.bf16.msra.mxu0 0
    %902 = vmatprep.subr.bf16.mxu0 0
    %903 = vmatpush1.bf16.msra.mxu0 0
    %904 = vmatprep.subr.bf16.mxu0 0
    %905 = vmatpush1.bf16.msra.mxu0 0
    %906 = vmatprep.subr.bf16.mxu0 0
    %907 = vmatpush1.bf16.msra.mxu0 0
    %908 = vmatprep.subr.bf16.mxu0 0
    %909 = vmatpush1.bf16.msra.mxu0 0
    %910 = vmatprep.subr.bf16.mxu0 0
    %911 = vmatpush1.bf16.msra.mxu0 0
    %912 = vmatprep.subr.bf16.mxu0 0
    %913 = vmatpush1.bf16.msra.mxu0 0
    %914 = vmatprep.mubr.bf16.mxu0 0
    %915 = vmatmul.mubr.bf16.gmra.mrb[0].mxu0 %v871
    %v916 = vpop.f32.mrb[0].mxu0
    %v917 = vadd.f32 %v856, %v916
    %v918 = vpop.f32.mrb[0].mxu0
    %v919 = vpop.f32.mrb[0].mxu0
    %v920 = vadd.f32 %v856, %v919
    %v921 = vpop.f32.mrb[0].mxu0
    %922 = vmatprep.mubr.bf16.mxu0 0
    %923 = vmatmul.mubr.bf16.gmra.mrb[0].mxu0 %v874
    %v924 = vpop.f32.mrb[0].mxu0
    %v925 = vadd.f32 %v856, %v924
    %v926 = vpop.f32.mrb[0].mxu0
    %v927 = vpop.f32.mrb[0].mxu0
    %v928 = vadd.f32 %v856, %v927
    %v929 = vpop.f32.mrb[0].mxu0
    %930 = vmatprep.mubr.bf16.mxu0 0
    %931 = vmatmul.mubr.bf16.gmra.mrb[0].mxu0 %v877
    %v932 = vpop.f32.mrb[0].mxu0
    %v933 = vadd.f32 %v856, %v932
    %v934 = vpop.f32.mrb[0].mxu0
    %v935 = vpop.f32.mrb[0].mxu0
    %v936 = vadd.f32 %v856, %v935
    %v937 = vpop.f32.mrb[0].mxu0
    %938 = vmatprep.mubr.bf16.mxu0 0
    %939 = vmatmul.mubr.bf16.gmra.mrb[0].mxu0 %v880
    %v940 = vpop.f32.mrb[0].mxu0
    %v941 = vadd.f32 %v856, %v940
    %v942 = vpop.f32.mrb[0].mxu0
    %v943 = vpop.f32.mrb[0].mxu0
    %v944 = vadd.f32 %v856, %v943
    %v945 = vpop.f32.mrb[0].mxu0
    %946 = vdwg.mxu0
    %vm947 = vcmask 523264
    %948 = vst.msk [vmem:[#allocation2] sm:$0xff] %vm947, %v917
    %949 = vst.msk [vmem:[#allocation2 + $0x8] sm:$0xff] %vm947, %v920
    %950 = vst.msk [vmem:[#allocation2 + $0x10] sm:$0xff] %vm947, %v925
    %951 = vst.msk [vmem:[#allocation2 + $0x18] sm:$0xff] %vm947, %v928
    %952 = vst.msk [vmem:[#allocation2 + $0x20] sm:$0xff] %vm947, %v933
    %953 = vst.msk [vmem:[#allocation2 + $0x28] sm:$0xff] %vm947, %v936
    %954 = vst.msk [vmem:[#allocation2 + $0x30] sm:$0xff] %vm947, %v941
    %955 = vst.msk [vmem:[#allocation2 + $0x38] sm:$0xff] %vm947, %v944
    %v956 = vld [vmem:[#allocation8] sm:$0xf]
    %v957 = vld [vmem:[#allocation8 + $0x4] sm:$0xf]
    %vm958 = vcmp.ge.s32.totalorder %v206, 32
    %vm959 = vcmp.lt.s32.totalorder %v206, 48
    %vm960 = vmand %vm958, %vm959
    %v961 = vsel %vm960, 1.0, 0.5
    %v962 = vsel %vm960, 0.0, 0.5
    %v963 = vld [vmem:[#allocation2] sm:$0xff]
    %v966 = vunpack.c.l.b16 %v956
    %v967 = vunpack.c.l.b16 %v957
    %v968 = vpack.c.b16 %v967, %v966
    %vm970 = vcmask 130048
    %v971 = vsel %vm970, 0, 0
    %973 = vmatprep.subr.bf16.mxu0 0
    %974 = vmatpush1.bf16.msra.mxu0 %v968
    %975 = vmatprep.subr.bf16.mxu0 0
    %976 = vmatpush1.bf16.msra.mxu0 0
    %977 = vmatprep.subr.bf16.mxu0 0
    %978 = vmatpush1.bf16.msra.mxu0 0
    %979 = vmatprep.subr.bf16.mxu0 0
    %980 = vmatpush1.bf16.msra.mxu0 0
    %981 = vmatprep.subr.bf16.mxu0 0
    %982 = vmatpush1.bf16.msra.mxu0 0
    %983 = vmatprep.subr.bf16.mxu0 0
    %984 = vmatpush1.bf16.msra.mxu0 0
    %985 = vmatprep.subr.bf16.mxu0 0
    %986 = vmatpush1.bf16.msra.mxu0 0
    %987 = vmatprep.subr.bf16.mxu0 0
    %988 = vmatpush1.bf16.msra.mxu0 0
    %989 = vmatprep.subr.bf16.mxu0 0
    %990 = vmatpush1.bf16.msra.mxu0 0
    %991 = vmatprep.subr.bf16.mxu0 0
    %992 = vmatpush1.bf16.msra.mxu0 0
    %993 = vmatprep.subr.bf16.mxu0 0
    %994 = vmatpush1.bf16.msra.mxu0 0
    %995 = vmatprep.subr.bf16.mxu0 0
    %996 = vmatpush1.bf16.msra.mxu0 0
    %997 = vmatprep.subr.bf16.mxu0 0
    %998 = vmatpush1.bf16.msra.mxu0 0
    %999 = vmatprep.subr.bf16.mxu0 0
    %1000 = vmatpush1.bf16.msra.mxu0 0
    %1001 = vmatprep.subr.bf16.mxu0 0
    %1002 = vmatpush1.bf16.msra.mxu0 0
    %1003 = vmatprep.subr.bf16.mxu0 0
    %1004 = vmatpush1.bf16.msra.mxu0 0
    %1005 = vmatprep.mubr.bf16.mxu0 0
    %1006 = vmatmul.mubr.bf16.gmra.mrb[0].mxu0 %v971
    %v1007 = vpop.f32.mrb[0].mxu0
    %v1008 = vadd.f32 0.0, %v1007
    %v1009 = vpop.f32.mrb[0].mxu0
    %v1010 = vpop.f32.mrb[0].mxu0
    %v1011 = vpop.f32.mrb[0].mxu0
    %1012 = vdwg.mxu0
    %v1013 = vadd.f32 %v963, %v1008
    %v1014 = vmul.f32 %v961, %v1013
    %v1015 = vtanh.pop %v1014
    %v1016 = vmul.f32 %v961, %v1015
    %v1017 = vadd.f32 %v1016, %v962
    %v1018 = vmul.f32 %v1017, 0.0
    %1020 = vrot.lane.b32.xlu0 %v1017, 96
    %v1021 = vpop.permute.xlu0 %1020
    %v1023 = vmul.f32 %v1017, %v1021
    %1025 = vrot.lane.b32.xlu0 %v1023, 16
    %v1026 = vpop.permute.xlu0 %1025
    %v1028 = vadd.f32 %v1018, %v1026
    %v1029 = vtanh.pop %v1028
    %1031 = vrot.lane.b32.xlu0 %v1029, 32
    %v1032 = vpop.permute.xlu0 %1031
    %v1034 = vmul.f32 %v1017, %v1032
    %1036 = vrot.lane.b32.xlu0 %v1034, 80
    %v1037 = vpop.permute.xlu0 %1036
    %1039 = vst.msk [vmem:[#allocation4] sm:$0xff] %vm970, %v1037
    %v1040 = vld [vmem:[%s296] sm:$0xff]
    %v1041 = vpack.c.bf16 %v1034, %v1034
    %1043 = vrot.lane.b32.xlu0 %v1041, 80
    %v1044 = vpop.permute.xlu0 %1043
    %v1046 = vsel %vm970, %v1044, 0
    %1048 = vmatprep.subr.bf16.mxu0 0
    %1049 = vmatpush1.bf16.msra.mxu0 %v968
    %1050 = vmatprep.subr.bf16.mxu0 0
    %1051 = vmatpush1.bf16.msra.mxu0 0
    %1052 = vmatprep.subr.bf16.mxu0 0
    %1053 = vmatpush1.bf16.msra.mxu0 0
    %1054 = vmatprep.subr.bf16.mxu0 0
    %1055 = vmatpush1.bf16.msra.mxu0 0
    %1056 = vmatprep.subr.bf16.mxu0 0
    %1057 = vmatpush1.bf16.msra.mxu0 0
    %1058 = vmatprep.subr.bf16.mxu0 0
    %1059 = vmatpush1.bf16.msra.mxu0 0
    %1060 = vmatprep.subr.bf16.mxu0 0
    %1061 = vmatpush1.bf16.msra.mxu0 0
    %1062 = vmatprep.subr.bf16.mxu0 0
    %1063 = vmatpush1.bf16.msra.mxu0 0
    %1064 = vmatprep.subr.bf16.mxu0 0
    %1065 = vmatpush1.bf16.msra.mxu0 0
    %1066 = vmatprep.subr.bf16.mxu0 0
    %1067 = vmatpush1.bf16.msra.mxu0 0
    %1068 = vmatprep.subr.bf16.mxu0 0
    %1069 = vmatpush1.bf16.msra.mxu0 0
    %1070 = vmatprep.subr.bf16.mxu0 0
    %1071 = vmatpush1.bf16.msra.mxu0 0
    %1072 = vmatprep.subr.bf16.mxu0 0
    %1073 = vmatpush1.bf16.msra.mxu0 0
    %1074 = vmatprep.subr.bf16.mxu0 0
    %1075 = vmatpush1.bf16.msra.mxu0 0
    %1076 = vmatprep.subr.bf16.mxu0 0
    %1077 = vmatpush1.bf16.msra.mxu0 0
    %1078 = vmatprep.subr.bf16.mxu0 0
    %1079 = vmatpush1.bf16.msra.mxu0 0
    %1080 = vmatprep.mubr.bf16.mxu0 0
    %1081 = vmatmul.mubr.bf16.gmra.mrb[0].mxu0 %v1046
    %v1082 = vpop.f32.mrb[0].mxu0
    %v1083 = vadd.f32 0.0, %v1082
    %v1084 = vpop.f32.mrb[0].mxu0
    %v1085 = vpop.f32.mrb[0].mxu0
    %v1086 = vpop.f32.mrb[0].mxu0
    %1087 = vdwg.mxu0
    %v1088 = vadd.f32 %v1040, %v1083
    %v1089 = vmul.f32 %v961, %v1088
    %v1090 = vtanh.pop %v1089
    %v1091 = vmul.f32 %v961, %v1090
    %v1092 = vadd.f32 %v1091, %v962
    %v1093 = vmul.f32 %v1092, %v1028
    %1095 = vrot.lane.b32.xlu0 %v1092, 96
    %v1096 = vpop.permute.xlu0 %1095
    %v1098 = vmul.f32 %v1092, %v1096
    %1100 = vrot.lane.b32.xlu0 %v1098, 16
    %v1101 = vpop.permute.xlu0 %1100
    %v1103 = vadd.f32 %v1093, %v1101
    %v1104 = vtanh.pop %v1103
    %1106 = vrot.lane.b32.xlu0 %v1104, 32
    %v1107 = vpop.permute.xlu0 %1106
    %v1109 = vmul.f32 %v1092, %v1107
    %1111 = vrot.lane.b32.xlu0 %v1109, 80
    %v1112 = vpop.permute.xlu0 %1111
    %s1114 = scalar_lea.vmem [#allocation4], 8
    %1115 = vst.msk [vmem:[%s1114] sm:$0xff] %vm970, %v1112
    %v1116 = vld [vmem:[%s373] sm:$0xff]
    %v1117 = vpack.c.bf16 %v1109, %v1109
    %1119 = vrot.lane.b32.xlu0 %v1117, 80
    %v1120 = vpop.permute.xlu0 %1119
    %v1122 = vsel %vm970, %v1120, 0
    %1124 = vmatprep.subr.bf16.mxu0 0
    %1125 = vmatpush1.bf16.msra.mxu0 %v968
    %1126 = vmatprep.subr.bf16.mxu0 0
    %1127 = vmatpush1.bf16.msra.mxu0 0
    %1128 = vmatprep.subr.bf16.mxu0 0
    %1129 = vmatpush1.bf16.msra.mxu0 0
    %1130 = vmatprep.subr.bf16.mxu0 0
    %1131 = vmatpush1.bf16.msra.mxu0 0
    %1132 = vmatprep.subr.bf16.mxu0 0
    %1133 = vmatpush1.bf16.msra.mxu0 0
    %1134 = vmatprep.subr.bf16.mxu0 0
    %1135 = vmatpush1.bf16.msra.mxu0 0
    %1136 = vmatprep.subr.bf16.mxu0 0
    %1137 = vmatpush1.bf16.msra.mxu0 0
    %1138 = vmatprep.subr.bf16.mxu0 0
    %1139 = vmatpush1.bf16.msra.mxu0 0
    %1140 = vmatprep.subr.bf16.mxu0 0
    %1141 = vmatpush1.bf16.msra.mxu0 0
    %1142 = vmatprep.subr.bf16.mxu0 0
    %1143 = vmatpush1.bf16.msra.mxu0 0
    %1144 = vmatprep.subr.bf16.mxu0 0
    %1145 = vmatpush1.bf16.msra.mxu0 0
    %1146 = vmatprep.subr.bf16.mxu0 0
    %1147 = vmatpush1.bf16.msra.mxu0 0
    %1148 = vmatprep.subr.bf16.mxu0 0
    %1149 = vmatpush1.bf16.msra.mxu0 0
    %1150 = vmatprep.subr.bf16.mxu0 0
    %1151 = vmatpush1.bf16.msra.mxu0 0
    %1152 = vmatprep.subr.bf16.mxu0 0
    %1153 = vmatpush1.bf16.msra.mxu0 0
    %1154 = vmatprep.subr.bf16.mxu0 0
    %1155 = vmatpush1.bf16.msra.mxu0 0
    %1156 = vmatprep.mubr.bf16.mxu0 0
    %1157 = vmatmul.mubr.bf16.gmra.mrb[0].mxu0 %v1122
    %v1158 = vpop.f32.mrb[0].mxu0
    %v1159 = vadd.f32 0.0, %v1158
    %v1160 = vpop.f32.mrb[0].mxu0
    %v1161 = vpop.f32.mrb[0].mxu0
    %v1162 = vpop.f32.mrb[0].mxu0
    %1163 = vdwg.mxu0
    %v1164 = vadd.f32 %v1116, %v1159
    %v1165 = vmul.f32 %v961, %v1164
    %v1166 = vtanh.pop %v1165
    %v1167 = vmul.f32 %v961, %v1166
    %v1168 = vadd.f32 %v1167, %v962
    %v1169 = vmul.f32 %v1168, %v1103
    %1171 = vrot.lane.b32.xlu0 %v1168, 96
    %v1172 = vpop.permute.xlu0 %1171
    %v1174 = vmul.f32 %v1168, %v1172
    %1176 = vrot.lane.b32.xlu0 %v1174, 16
    %v1177 = vpop.permute.xlu0 %1176
    %v1179 = vadd.f32 %v1169, %v1177
    %v1180 = vtanh.pop %v1179
    %1182 = vrot.lane.b32.xlu0 %v1180, 32
    %v1183 = vpop.permute.xlu0 %1182
    %v1185 = vmul.f32 %v1168, %v1183
    %1187 = vrot.lane.b32.xlu0 %v1185, 80
    %v1188 = vpop.permute.xlu0 %1187
    %s1190 = scalar_lea.vmem [#allocation4], 16
    %1191 = vst.msk [vmem:[%s1190] sm:$0xff] %vm970, %v1188
    %v1192 = vld [vmem:[%s450] sm:$0xff]
    %v1193 = vpack.c.bf16 %v1185, %v1185
    %1195 = vrot.lane.b32.xlu0 %v1193, 80
    %v1196 = vpop.permute.xlu0 %1195
    %v1198 = vsel %vm970, %v1196, 0
    %1200 = vmatprep.subr.bf16.mxu0 0
    %1201 = vmatpush1.bf16.msra.mxu0 %v968
    %1202 = vmatprep.subr.bf16.mxu0 0
    %1203 = vmatpush1.bf16.msra.mxu0 0
    %1204 = vmatprep.subr.bf16.mxu0 0
    %1205 = vmatpush1.bf16.msra.mxu0 0
    %1206 = vmatprep.subr.bf16.mxu0 0
    %1207 = vmatpush1.bf16.msra.mxu0 0
    %1208 = vmatprep.subr.bf16.mxu0 0
    %1209 = vmatpush1.bf16.msra.mxu0 0
    %1210 = vmatprep.subr.bf16.mxu0 0
    %1211 = vmatpush1.bf16.msra.mxu0 0
    %1212 = vmatprep.subr.bf16.mxu0 0
    %1213 = vmatpush1.bf16.msra.mxu0 0
    %1214 = vmatprep.subr.bf16.mxu0 0
    %1215 = vmatpush1.bf16.msra.mxu0 0
    %1216 = vmatprep.subr.bf16.mxu0 0
    %1217 = vmatpush1.bf16.msra.mxu0 0
    %1218 = vmatprep.subr.bf16.mxu0 0
    %1219 = vmatpush1.bf16.msra.mxu0 0
    %1220 = vmatprep.subr.bf16.mxu0 0
    %1221 = vmatpush1.bf16.msra.mxu0 0
    %1222 = vmatprep.subr.bf16.mxu0 0
    %1223 = vmatpush1.bf16.msra.mxu0 0
    %1224 = vmatprep.subr.bf16.mxu0 0
    %1225 = vmatpush1.bf16.msra.mxu0 0
    %1226 = vmatprep.subr.bf16.mxu0 0
    %1227 = vmatpush1.bf16.msra.mxu0 0
    %1228 = vmatprep.subr.bf16.mxu0 0
    %1229 = vmatpush1.bf16.msra.mxu0 0
    %1230 = vmatprep.subr.bf16.mxu0 0
    %1231 = vmatpush1.bf16.msra.mxu0 0
    %1232 = vmatprep.mubr.bf16.mxu0 0
    %1233 = vmatmul.mubr.bf16.gmra.mrb[0].mxu0 %v1198
    %v1234 = vpop.f32.mrb[0].mxu0
    %v1235 = vadd.f32 0.0, %v1234
    %v1236 = vpop.f32.mrb[0].mxu0
    %v1237 = vpop.f32.mrb[0].mxu0
    %v1238 = vpop.f32.mrb[0].mxu0
    %1239 = vdwg.mxu0
    %v1240 = vadd.f32 %v1192, %v1235
    %v1241 = vmul.f32 %v961, %v1240
    %v1242 = vtanh.pop %v1241
    %v1243 = vmul.f32 %v961, %v1242
    %v1244 = vadd.f32 %v1243, %v962
    %v1245 = vmul.f32 %v1244, %v1179
    %1247 = vrot.lane.b32.xlu0 %v1244, 96
    %v1248 = vpop.permute.xlu0 %1247
    %v1250 = vmul.f32 %v1244, %v1248
    %1252 = vrot.lane.b32.xlu0 %v1250, 16
    %v1253 = vpop.permute.xlu0 %1252
    %v1255 = vadd.f32 %v1245, %v1253
    %v1256 = vtanh.pop %v1255
    %1258 = vrot.lane.b32.xlu0 %v1256, 32
    %v1259 = vpop.permute.xlu0 %1258
    %v1261 = vmul.f32 %v1244, %v1259
    %1263 = vrot.lane.b32.xlu0 %v1261, 80
    %v1264 = vpop.permute.xlu0 %1263
    %s1266 = scalar_lea.vmem [#allocation4], 24
    %1267 = vst.msk [vmem:[%s1266] sm:$0xff] %vm970, %v1264
    %v1268 = vld [vmem:[%s527] sm:$0xff]
    %v1269 = vpack.c.bf16 %v1261, %v1261
    %1271 = vrot.lane.b32.xlu0 %v1269, 80
    %v1272 = vpop.permute.xlu0 %1271
    %v1274 = vsel %vm970, %v1272, 0
    %1276 = vmatprep.subr.bf16.mxu0 0
    %1277 = vmatpush1.bf16.msra.mxu0 %v968
    %1278 = vmatprep.subr.bf16.mxu0 0
    %1279 = vmatpush1.bf16.msra.mxu0 0
    %1280 = vmatprep.subr.bf16.mxu0 0
    %1281 = vmatpush1.bf16.msra.mxu0 0
    %1282 = vmatprep.subr.bf16.mxu0 0
    %1283 = vmatpush1.bf16.msra.mxu0 0
    %1284 = vmatprep.subr.bf16.mxu0 0
    %1285 = vmatpush1.bf16.msra.mxu0 0
    %1286 = vmatprep.subr.bf16.mxu0 0
    %1287 = vmatpush1.bf16.msra.mxu0 0
    %1288 = vmatprep.subr.bf16.mxu0 0
    %1289 = vmatpush1.bf16.msra.mxu0 0
    %1290 = vmatprep.subr.bf16.mxu0 0
    %1291 = vmatpush1.bf16.msra.mxu0 0
    %1292 = vmatprep.subr.bf16.mxu0 0
    %1293 = vmatpush1.bf16.msra.mxu0 0
    %1294 = vmatprep.subr.bf16.mxu0 0
    %1295 = vmatpush1.bf16.msra.mxu0 0
    %1296 = vmatprep.subr.bf16.mxu0 0
    %1297 = vmatpush1.bf16.msra.mxu0 0
    %1298 = vmatprep.subr.bf16.mxu0 0
    %1299 = vmatpush1.bf16.msra.mxu0 0
    %1300 = vmatprep.subr.bf16.mxu0 0
    %1301 = vmatpush1.bf16.msra.mxu0 0
    %1302 = vmatprep.subr.bf16.mxu0 0
    %1303 = vmatpush1.bf16.msra.mxu0 0
    %1304 = vmatprep.subr.bf16.mxu0 0
    %1305 = vmatpush1.bf16.msra.mxu0 0
    %1306 = vmatprep.subr.bf16.mxu0 0
    %1307 = vmatpush1.bf16.msra.mxu0 0
    %1308 = vmatprep.mubr.bf16.mxu0 0
    %1309 = vmatmul.mubr.bf16.gmra.mrb[0].mxu0 %v1274
    %v1310 = vpop.f32.mrb[0].mxu0
    %v1311 = vadd.f32 0.0, %v1310
    %v1312 = vpop.f32.mrb[0].mxu0
    %v1313 = vpop.f32.mrb[0].mxu0
    %v1314 = vpop.f32.mrb[0].mxu0
    %1315 = vdwg.mxu0
    %v1316 = vadd.f32 %v1268, %v1311
    %v1317 = vmul.f32 %v961, %v1316
    %v1318 = vtanh.pop %v1317
    %v1319 = vmul.f32 %v961, %v1318
    %v1320 = vadd.f32 %v1319, %v962
    %v1321 = vmul.f32 %v1320, %v1255
    %1323 = vrot.lane.b32.xlu0 %v1320, 96
    %v1324 = vpop.permute.xlu0 %1323
    %v1326 = vmul.f32 %v1320, %v1324
    %1328 = vrot.lane.b32.xlu0 %v1326, 16
    %v1329 = vpop.permute.xlu0 %1328
    %v1331 = vadd.f32 %v1321, %v1329
    %v1332 = vtanh.pop %v1331
    %1334 = vrot.lane.b32.xlu0 %v1332, 32
    %v1335 = vpop.permute.xlu0 %1334
    %v1337 = vmul.f32 %v1320, %v1335
    %1339 = vrot.lane.b32.xlu0 %v1337, 80
    %v1340 = vpop.permute.xlu0 %1339
    %s1342 = scalar_lea.vmem [#allocation4], 32
    %1343 = vst.msk [vmem:[%s1342] sm:$0xff] %vm970, %v1340
    %v1344 = vld [vmem:[%s604] sm:$0xff]
    %v1345 = vpack.c.bf16 %v1337, %v1337
    %1347 = vrot.lane.b32.xlu0 %v1345, 80
    %v1348 = vpop.permute.xlu0 %1347
    %v1350 = vsel %vm970, %v1348, 0
    %1352 = vmatprep.subr.bf16.mxu0 0
    %1353 = vmatpush1.bf16.msra.mxu0 %v968
    %1354 = vmatprep.subr.bf16.mxu0 0
    %1355 = vmatpush1.bf16.msra.mxu0 0
    %1356 = vmatprep.subr.bf16.mxu0 0
    %1357 = vmatpush1.bf16.msra.mxu0 0
    %1358 = vmatprep.subr.bf16.mxu0 0
    %1359 = vmatpush1.bf16.msra.mxu0 0
    %1360 = vmatprep.subr.bf16.mxu0 0
    %1361 = vmatpush1.bf16.msra.mxu0 0
    %1362 = vmatprep.subr.bf16.mxu0 0
    %1363 = vmatpush1.bf16.msra.mxu0 0
    %1364 = vmatprep.subr.bf16.mxu0 0
    %1365 = vmatpush1.bf16.msra.mxu0 0
    %1366 = vmatprep.subr.bf16.mxu0 0
    %1367 = vmatpush1.bf16.msra.mxu0 0
    %1368 = vmatprep.subr.bf16.mxu0 0
    %1369 = vmatpush1.bf16.msra.mxu0 0
    %1370 = vmatprep.subr.bf16.mxu0 0
    %1371 = vmatpush1.bf16.msra.mxu0 0
    %1372 = vmatprep.subr.bf16.mxu0 0
    %1373 = vmatpush1.bf16.msra.mxu0 0
    %1374 = vmatprep.subr.bf16.mxu0 0
    %1375 = vmatpush1.bf16.msra.mxu0 0
    %1376 = vmatprep.subr.bf16.mxu0 0
    %1377 = vmatpush1.bf16.msra.mxu0 0
    %1378 = vmatprep.subr.bf16.mxu0 0
    %1379 = vmatpush1.bf16.msra.mxu0 0
    %1380 = vmatprep.subr.bf16.mxu0 0
    %1381 = vmatpush1.bf16.msra.mxu0 0
    %1382 = vmatprep.subr.bf16.mxu0 0
    %1383 = vmatpush1.bf16.msra.mxu0 0
    %1384 = vmatprep.mubr.bf16.mxu0 0
    %1385 = vmatmul.mubr.bf16.gmra.mrb[0].mxu0 %v1350
    %v1386 = vpop.f32.mrb[0].mxu0
    %v1387 = vadd.f32 0.0, %v1386
    %v1388 = vpop.f32.mrb[0].mxu0
    %v1389 = vpop.f32.mrb[0].mxu0
    %v1390 = vpop.f32.mrb[0].mxu0
    %1391 = vdwg.mxu0
    %v1392 = vadd.f32 %v1344, %v1387
    %v1393 = vmul.f32 %v961, %v1392
    %v1394 = vtanh.pop %v1393
    %v1395 = vmul.f32 %v961, %v1394
    %v1396 = vadd.f32 %v1395, %v962
    %v1397 = vmul.f32 %v1396, %v1331
    %1399 = vrot.lane.b32.xlu0 %v1396, 96
    %v1400 = vpop.permute.xlu0 %1399
    %v1402 = vmul.f32 %v1396, %v1400
    %1404 = vrot.lane.b32.xlu0 %v1402, 16
    %v1405 = vpop.permute.xlu0 %1404
    %v1407 = vadd.f32 %v1397, %v1405
    %v1408 = vtanh.pop %v1407
    %1410 = vrot.lane.b32.xlu0 %v1408, 32
    %v1411 = vpop.permute.xlu0 %1410
    %v1413 = vmul.f32 %v1396, %v1411
    %1415 = vrot.lane.b32.xlu0 %v1413, 80
    %v1416 = vpop.permute.xlu0 %1415
    %s1418 = scalar_lea.vmem [#allocation4], 40
    %1419 = vst.msk [vmem:[%s1418] sm:$0xff] %vm970, %v1416
    %v1420 = vld [vmem:[%s681] sm:$0xff]
    %v1421 = vpack.c.bf16 %v1413, %v1413
    %1423 = vrot.lane.b32.xlu0 %v1421, 80
    %v1424 = vpop.permute.xlu0 %1423
    %v1426 = vsel %vm970, %v1424, 0
    %1428 = vmatprep.subr.bf16.mxu0 0
    %1429 = vmatpush1.bf16.msra.mxu0 %v968
    %1430 = vmatprep.subr.bf16.mxu0 0
    %1431 = vmatpush1.bf16.msra.mxu0 0
    %1432 = vmatprep.subr.bf16.mxu0 0
    %1433 = vmatpush1.bf16.msra.mxu0 0
    %1434 = vmatprep.subr.bf16.mxu0 0
    %1435 = vmatpush1.bf16.msra.mxu0 0
    %1436 = vmatprep.subr.bf16.mxu0 0
    %1437 = vmatpush1.bf16.msra.mxu0 0
    %1438 = vmatprep.subr.bf16.mxu0 0
    %1439 = vmatpush1.bf16.msra.mxu0 0
    %1440 = vmatprep.subr.bf16.mxu0 0
    %1441 = vmatpush1.bf16.msra.mxu0 0
    %1442 = vmatprep.subr.bf16.mxu0 0
    %1443 = vmatpush1.bf16.msra.mxu0 0
    %1444 = vmatprep.subr.bf16.mxu0 0
    %1445 = vmatpush1.bf16.msra.mxu0 0
    %1446 = vmatprep.subr.bf16.mxu0 0
    %1447 = vmatpush1.bf16.msra.mxu0 0
    %1448 = vmatprep.subr.bf16.mxu0 0
    %1449 = vmatpush1.bf16.msra.mxu0 0
    %1450 = vmatprep.subr.bf16.mxu0 0
    %1451 = vmatpush1.bf16.msra.mxu0 0
    %1452 = vmatprep.subr.bf16.mxu0 0
    %1453 = vmatpush1.bf16.msra.mxu0 0
    %1454 = vmatprep.subr.bf16.mxu0 0
    %1455 = vmatpush1.bf16.msra.mxu0 0
    %1456 = vmatprep.subr.bf16.mxu0 0
    %1457 = vmatpush1.bf16.msra.mxu0 0
    %1458 = vmatprep.subr.bf16.mxu0 0
    %1459 = vmatpush1.bf16.msra.mxu0 0
    %1460 = vmatprep.mubr.bf16.mxu0 0
    %1461 = vmatmul.mubr.bf16.gmra.mrb[0].mxu0 %v1426
    %v1462 = vpop.f32.mrb[0].mxu0
    %v1463 = vadd.f32 0.0, %v1462
    %v1464 = vpop.f32.mrb[0].mxu0
    %v1465 = vpop.f32.mrb[0].mxu0
    %v1466 = vpop.f32.mrb[0].mxu0
    %1467 = vdwg.mxu0
    %v1468 = vadd.f32 %v1420, %v1463
    %v1469 = vmul.f32 %v961, %v1468
    %v1470 = vtanh.pop %v1469
    %v1471 = vmul.f32 %v961, %v1470
    %v1472 = vadd.f32 %v1471, %v962
    %v1473 = vmul.f32 %v1472, %v1407
    %1475 = vrot.lane.b32.xlu0 %v1472, 96
    %v1476 = vpop.permute.xlu0 %1475
    %v1478 = vmul.f32 %v1472, %v1476
    %1480 = vrot.lane.b32.xlu0 %v1478, 16
    %v1481 = vpop.permute.xlu0 %1480
    %v1483 = vadd.f32 %v1473, %v1481
    %v1484 = vtanh.pop %v1483
    %1486 = vrot.lane.b32.xlu0 %v1484, 32
    %v1487 = vpop.permute.xlu0 %1486
    %v1489 = vmul.f32 %v1472, %v1487
    %1491 = vrot.lane.b32.xlu0 %v1489, 80
    %v1492 = vpop.permute.xlu0 %1491
    %s1494 = scalar_lea.vmem [#allocation4], 48
    %1495 = vst.msk [vmem:[%s1494] sm:$0xff] %vm970, %v1492
    %v1496 = vld [vmem:[%s758] sm:$0xff]
    %v1497 = vpack.c.bf16 %v1489, %v1489
    %1499 = vrot.lane.b32.xlu0 %v1497, 80
    %v1500 = vpop.permute.xlu0 %1499
    %v1502 = vsel %vm970, %v1500, 0
    %1504 = vmatprep.subr.bf16.mxu0 0
    %1505 = vmatpush1.bf16.msra.mxu0 %v968
    %1506 = vmatprep.subr.bf16.mxu0 0
    %1507 = vmatpush1.bf16.msra.mxu0 0
    %1508 = vmatprep.subr.bf16.mxu0 0
    %1509 = vmatpush1.bf16.msra.mxu0 0
    %1510 = vmatprep.subr.bf16.mxu0 0
    %1511 = vmatpush1.bf16.msra.mxu0 0
    %1512 = vmatprep.subr.bf16.mxu0 0
    %1513 = vmatpush1.bf16.msra.mxu0 0
    %1514 = vmatprep.subr.bf16.mxu0 0
    %1515 = vmatpush1.bf16.msra.mxu0 0
    %1516 = vmatprep.subr.bf16.mxu0 0
    %1517 = vmatpush1.bf16.msra.mxu0 0
    %1518 = vmatprep.subr.bf16.mxu0 0
    %1519 = vmatpush1.bf16.msra.mxu0 0
    %1520 = vmatprep.subr.bf16.mxu0 0
    %1521 = vmatpush1.bf16.msra.mxu0 0
    %1522 = vmatprep.subr.bf16.mxu0 0
    %1523 = vmatpush1.bf16.msra.mxu0 0
    %1524 = vmatprep.subr.bf16.mxu0 0
    %1525 = vmatpush1.bf16.msra.mxu0 0
    %1526 = vmatprep.subr.bf16.mxu0 0
    %1527 = vmatpush1.bf16.msra.mxu0 0
    %1528 = vmatprep.subr.bf16.mxu0 0
    %1529 = vmatpush1.bf16.msra.mxu0 0
    %1530 = vmatprep.subr.bf16.mxu0 0
    %1531 = vmatpush1.bf16.msra.mxu0 0
    %1532 = vmatprep.subr.bf16.mxu0 0
    %1533 = vmatpush1.bf16.msra.mxu0 0
    %1534 = vmatprep.subr.bf16.mxu0 0
    %1535 = vmatpush1.bf16.msra.mxu0 0
    %1536 = vmatprep.mubr.bf16.mxu0 0
    %1537 = vmatmul.mubr.bf16.gmra.mrb[0].mxu0 %v1502
    %v1538 = vpop.f32.mrb[0].mxu0
    %v1539 = vadd.f32 0.0, %v1538
    %v1540 = vpop.f32.mrb[0].mxu0
    %v1541 = vpop.f32.mrb[0].mxu0
    %v1542 = vpop.f32.mrb[0].mxu0
    %1543 = vdwg.mxu0
    %v1544 = vadd.f32 %v1496, %v1539
    %v1545 = vmul.f32 %v961, %v1544
    %v1546 = vtanh.pop %v1545
    %v1547 = vmul.f32 %v961, %v1546
    %v1548 = vadd.f32 %v1547, %v962
    %v1549 = vmul.f32 %v1548, %v1483
    %1551 = vrot.lane.b32.xlu0 %v1548, 96
    %v1552 = vpop.permute.xlu0 %1551
    %v1554 = vmul.f32 %v1548, %v1552
    %1556 = vrot.lane.b32.xlu0 %v1554, 16
    %v1557 = vpop.permute.xlu0 %1556
    %v1559 = vadd.f32 %v1549, %v1557
    %v1560 = vtanh.pop %v1559
    %1562 = vrot.lane.b32.xlu0 %v1560, 32
    %v1563 = vpop.permute.xlu0 %1562
    %v1565 = vmul.f32 %v1548, %v1563
    %1567 = vrot.lane.b32.xlu0 %v1565, 80
    %v1568 = vpop.permute.xlu0 %1567
    %s1570 = scalar_lea.vmem [#allocation4], 56
    %1571 = vst.msk [vmem:[%s1570] sm:$0xff] %vm970, %v1568
    %v1572 = vld [vmem:[#allocation4] sm:$0xff]
    %v1573 = vld [vmem:[#allocation4 + $0x8] sm:$0xff]
    %v1574 = vld [vmem:[#allocation4 + $0x10] sm:$0xff]
    %v1575 = vld [vmem:[#allocation4 + $0x18] sm:$0xff]
    %v1576 = vld [vmem:[#allocation4 + $0x20] sm:$0xff]
    %v1577 = vld [vmem:[#allocation4 + $0x28] sm:$0xff]
    %v1578 = vld [vmem:[#allocation4 + $0x30] sm:$0xff]
    %v1579 = vld [vmem:[#allocation4 + $0x38] sm:$0xff]
    %v1580 = vpack.c.bf16 %v1573, %v1572
    %v1581 = vpack.c.bf16 %v1575, %v1574
    %v1582 = vpack.c.bf16 %v1577, %v1576
    %v1583 = vpack.c.bf16 %v1579, %v1578
    %v1584 = vld [vmem:[#allocation10] sm:$0xf]
    %v1585 = vld [vmem:[#allocation10 + $0x4] sm:$0xf]
    %v1586 = vld [vmem:[%s9] sm:$0x1]
    %v1588 = vlaneseq
    %v1589 = vshrl.u32 %v1588, 7
    %v1590 = vsub.s32 0, %v1589
    %v1591 = vrot.slane %v1586, %v1590
    %v1595 = vunpack.c.l.b16 %v1584
    %v1596 = vunpack.c.l.b16 %v1585
    %v1597 = vpack.c.b16 %v1596, %v1595
    %v1600 = vsel %vm970, %v1580, 0
    %v1603 = vsel %vm970, %v1581, 0
    %v1606 = vsel %vm970, %v1582, 0
    %v1609 = vsel %vm970, %v1583, 0
    %1611 = vmatprep.subr.bf16.mxu0 0
    %1612 = vmatpush1.bf16.msra.mxu0 %v1597
    %1613 = vmatprep.subr.bf16.mxu0 0
    %1614 = vmatpush1.bf16.msra.mxu0 0
    %1615 = vmatprep.subr.bf16.mxu0 0
    %1616 = vmatpush1.bf16.msra.mxu0 0
    %1617 = vmatprep.subr.bf16.mxu0 0
    %1618 = vmatpush1.bf16.msra.mxu0 0
    %1619 = vmatprep.subr.bf16.mxu0 0
    %1620 = vmatpush1.bf16.msra.mxu0 0
    %1621 = vmatprep.subr.bf16.mxu0 0
    %1622 = vmatpush1.bf16.msra.mxu0 0
    %1623 = vmatprep.subr.bf16.mxu0 0
    %1624 = vmatpush1.bf16.msra.mxu0 0
    %1625 = vmatprep.subr.bf16.mxu0 0
    %1626 = vmatpush1.bf16.msra.mxu0 0
    %1627 = vmatprep.subr.bf16.mxu0 0
    %1628 = vmatpush1.bf16.msra.mxu0 0
    %1629 = vmatprep.subr.bf16.mxu0 0
    %1630 = vmatpush1.bf16.msra.mxu0 0
    %1631 = vmatprep.subr.bf16.mxu0 0
    %1632 = vmatpush1.bf16.msra.mxu0 0
    %1633 = vmatprep.subr.bf16.mxu0 0
    %1634 = vmatpush1.bf16.msra.mxu0 0
    %1635 = vmatprep.subr.bf16.mxu0 0
    %1636 = vmatpush1.bf16.msra.mxu0 0
    %1637 = vmatprep.subr.bf16.mxu0 0
    %1638 = vmatpush1.bf16.msra.mxu0 0
    %1639 = vmatprep.subr.bf16.mxu0 0
    %1640 = vmatpush1.bf16.msra.mxu0 0
    %1641 = vmatprep.subr.bf16.mxu0 0
    %1642 = vmatpush1.bf16.msra.mxu0 0
    %1643 = vmatprep.mubr.bf16.mxu0 0
    %1644 = vmatmul.mubr.bf16.gmra.mrb[0].mxu0 %v1600
    %v1645 = vpop.f32.mrb[0].mxu0
    %v1646 = vadd.f32 %v1591, %v1645
    %v1647 = vpop.f32.mrb[0].mxu0
    %v1648 = vpop.f32.mrb[0].mxu0
    %v1649 = vadd.f32 %v1591, %v1648
    %v1650 = vpop.f32.mrb[0].mxu0
    %1651 = vmatprep.mubr.bf16.mxu0 0
    %1652 = vmatmul.mubr.bf16.gmra.mrb[0].mxu0 %v1603
    %v1653 = vpop.f32.mrb[0].mxu0
    %v1654 = vadd.f32 %v1591, %v1653
    %v1655 = vpop.f32.mrb[0].mxu0
    %v1656 = vpop.f32.mrb[0].mxu0
    %v1657 = vadd.f32 %v1591, %v1656
    %v1658 = vpop.f32.mrb[0].mxu0
    %1659 = vmatprep.mubr.bf16.mxu0 0
    %1660 = vmatmul.mubr.bf16.gmra.mrb[0].mxu0 %v1606
    %v1661 = vpop.f32.mrb[0].mxu0
    %v1662 = vadd.f32 %v1591, %v1661
    %v1663 = vpop.f32.mrb[0].mxu0
    %v1664 = vpop.f32.mrb[0].mxu0
    %v1665 = vadd.f32 %v1591, %v1664
    %v1666 = vpop.f32.mrb[0].mxu0
    %1667 = vmatprep.mubr.bf16.mxu0 0
    %1668 = vmatmul.mubr.bf16.gmra.mrb[0].mxu0 %v1609
    %v1669 = vpop.f32.mrb[0].mxu0
    %v1670 = vadd.f32 %v1591, %v1669
    %v1671 = vpop.f32.mrb[0].mxu0
    %v1672 = vpop.f32.mrb[0].mxu0
    %v1673 = vadd.f32 %v1591, %v1672
    %v1674 = vpop.f32.mrb[0].mxu0
    %1675 = vdwg.mxu0
    %1676 = vst [vmem:[#allocation2] sm:$0xff] %v1646
    %1677 = vst [vmem:[#allocation2 + $0x8] sm:$0xff] %v1649
    %1678 = vst [vmem:[#allocation2 + $0x10] sm:$0xff] %v1654
    %1679 = vst [vmem:[#allocation2 + $0x18] sm:$0xff] %v1657
    %1680 = vst [vmem:[#allocation2 + $0x20] sm:$0xff] %v1662
    %1681 = vst [vmem:[#allocation2 + $0x28] sm:$0xff] %v1665
    %1682 = vst [vmem:[#allocation2 + $0x30] sm:$0xff] %v1670
    %1683 = vst [vmem:[#allocation2 + $0x38] sm:$0xff] %v1673
    %v1684 = vld [vmem:[%s8] sm:$0xf]
    %v1685 = vld [vmem:[%s8 + $0x4] sm:$0xf]
    %v1686 = vld [vmem:[%s8 + $0x8] sm:$0xf]
    %v1687 = vld [vmem:[%s8 + $0xc] sm:$0xf]
    %v1688 = vld [vmem:[#allocation2] sm:$0xff]
    %v1693 = vunpack.c.l.b16 %v1684
    %v1694 = vunpack.c.l.b16 %v1685
    %v1695 = vunpack.c.l.b16 %v1686
    %v1696 = vunpack.c.l.b16 %v1687
    %v1697 = vpack.c.b16 %v1694, %v1693
    %v1698 = vpack.c.b16 %v1696, %v1695
    %1701 = vmatprep.subr.bf16.mxu0 0
    %1702 = vmatpush1.bf16.msra.mxu0 %v1697
    %1703 = vmatprep.subr.bf16.mxu0 0
    %1704 = vmatpush1.bf16.msra.mxu0 %v1698
    %1705 = vmatprep.subr.bf16.mxu0 0
    %1706 = vmatpush1.bf16.msra.mxu0 0
    %1707 = vmatprep.subr.bf16.mxu0 0
    %1708 = vmatpush1.bf16.msra.mxu0 0
    %1709 = vmatprep.subr.bf16.mxu0 0
    %1710 = vmatpush1.bf16.msra.mxu0 0
    %1711 = vmatprep.subr.bf16.mxu0 0
    %1712 = vmatpush1.bf16.msra.mxu0 0
    %1713 = vmatprep.subr.bf16.mxu0 0
    %1714 = vmatpush1.bf16.msra.mxu0 0
    %1715 = vmatprep.subr.bf16.mxu0 0
    %1716 = vmatpush1.bf16.msra.mxu0 0
    %1717 = vmatprep.subr.bf16.mxu0 0
    %1718 = vmatpush1.bf16.msra.mxu0 0
    %1719 = vmatprep.subr.bf16.mxu0 0
    %1720 = vmatpush1.bf16.msra.mxu0 0
    %1721 = vmatprep.subr.bf16.mxu0 0
    %1722 = vmatpush1.bf16.msra.mxu0 0
    %1723 = vmatprep.subr.bf16.mxu0 0
    %1724 = vmatpush1.bf16.msra.mxu0 0
    %1725 = vmatprep.subr.bf16.mxu0 0
    %1726 = vmatpush1.bf16.msra.mxu0 0
    %1727 = vmatprep.subr.bf16.mxu0 0
    %1728 = vmatpush1.bf16.msra.mxu0 0
    %1729 = vmatprep.subr.bf16.mxu0 0
    %1730 = vmatpush1.bf16.msra.mxu0 0
    %1731 = vmatprep.subr.bf16.mxu0 0
    %1732 = vmatpush1.bf16.msra.mxu0 0
    %1733 = vmatprep.mubr.bf16.mxu0 0
    %1734 = vmatmul.mubr.bf16.gmra.mrb[0].mxu0 %v227
    %v1735 = vpop.f32.mrb[0].mxu0
    %v1736 = vadd.f32 0.0, %v1735
    %v1737 = vpop.f32.mrb[0].mxu0
    %v1738 = vpop.f32.mrb[0].mxu0
    %v1739 = vpop.f32.mrb[0].mxu0
    %1740 = vdwg.mxu0
    %v1741 = vadd.f32 %v1688, %v1736
    %v1742 = vmul.f32 %v210, %v1741
    %v1743 = vtanh.pop %v1742
    %v1744 = vmul.f32 %v210, %v1743
    %v1745 = vadd.f32 %v1744, %v211
    %v1746 = vmul.f32 %v1745, 0.0
    %1748 = vrot.lane.b32.xlu0 %v1745, 64
    %v1749 = vpop.permute.xlu0 %1748
    %v1751 = vmul.f32 %v1745, %v1749
    %1753 = vrot.lane.b32.xlu0 %v1751, 32
    %v1754 = vpop.permute.xlu0 %1753
    %v1756 = vadd.f32 %v1746, %v1754
    %v1757 = vtanh.pop %v1756
    %1759 = vrot.lane.b32.xlu0 %v1757, 64
    %v1760 = vpop.permute.xlu0 %1759
    %v1762 = vmul.f32 %v1745, %v1760
    %1764 = vrot.lane.b32.xlu0 %v1762, 32
    %v1765 = vpop.permute.xlu0 %1764
    %1767 = vst.msk [vmem:[#allocation3] sm:$0xff] %vm225, %v1765
    %v1768 = vld [vmem:[%s296] sm:$0xff]
    %v1769 = vpack.c.bf16 %v1762, %v1762
    %1771 = vrot.lane.b32.xlu0 %v1769, 32
    %v1772 = vpop.permute.xlu0 %1771
    %v1774 = vsel %vm225, %v1772, 0
    %1776 = vmatprep.subr.bf16.mxu0 0
    %1777 = vmatpush1.bf16.msra.mxu0 %v1697
    %1778 = vmatprep.subr.bf16.mxu0 0
    %1779 = vmatpush1.bf16.msra.mxu0 %v1698
    %1780 = vmatprep.subr.bf16.mxu0 0
    %1781 = vmatpush1.bf16.msra.mxu0 0
    %1782 = vmatprep.subr.bf16.mxu0 0
    %1783 = vmatpush1.bf16.msra.mxu0 0
    %1784 = vmatprep.subr.bf16.mxu0 0
    %1785 = vmatpush1.bf16.msra.mxu0 0
    %1786 = vmatprep.subr.bf16.mxu0 0
    %1787 = vmatpush1.bf16.msra.mxu0 0
    %1788 = vmatprep.subr.bf16.mxu0 0
    %1789 = vmatpush1.bf16.msra.mxu0 0
    %1790 = vmatprep.subr.bf16.mxu0 0
    %1791 = vmatpush1.bf16.msra.mxu0 0
    %1792 = vmatprep.subr.bf16.mxu0 0
    %1793 = vmatpush1.bf16.msra.mxu0 0
    %1794 = vmatprep.subr.bf16.mxu0 0
    %1795 = vmatpush1.bf16.msra.mxu0 0
    %1796 = vmatprep.subr.bf16.mxu0 0
    %1797 = vmatpush1.bf16.msra.mxu0 0
    %1798 = vmatprep.subr.bf16.mxu0 0
    %1799 = vmatpush1.bf16.msra.mxu0 0
    %1800 = vmatprep.subr.bf16.mxu0 0
    %1801 = vmatpush1.bf16.msra.mxu0 0
    %1802 = vmatprep.subr.bf16.mxu0 0
    %1803 = vmatpush1.bf16.msra.mxu0 0
    %1804 = vmatprep.subr.bf16.mxu0 0
    %1805 = vmatpush1.bf16.msra.mxu0 0
    %1806 = vmatprep.subr.bf16.mxu0 0
    %1807 = vmatpush1.bf16.msra.mxu0 0
    %1808 = vmatprep.mubr.bf16.mxu0 0
    %1809 = vmatmul.mubr.bf16.gmra.mrb[0].mxu0 %v1774
    %v1810 = vpop.f32.mrb[0].mxu0
    %v1811 = vadd.f32 0.0, %v1810
    %v1812 = vpop.f32.mrb[0].mxu0
    %v1813 = vpop.f32.mrb[0].mxu0
    %v1814 = vpop.f32.mrb[0].mxu0
    %1815 = vdwg.mxu0
    %v1816 = vadd.f32 %v1768, %v1811
    %v1817 = vmul.f32 %v210, %v1816
    %v1818 = vtanh.pop %v1817
    %v1819 = vmul.f32 %v210, %v1818
    %v1820 = vadd.f32 %v1819, %v211
    %v1821 = vmul.f32 %v1820, %v1756
    %1823 = vrot.lane.b32.xlu0 %v1820, 64
    %v1824 = vpop.permute.xlu0 %1823
    %v1826 = vmul.f32 %v1820, %v1824
    %1828 = vrot.lane.b32.xlu0 %v1826, 32
    %v1829 = vpop.permute.xlu0 %1828
    %v1831 = vadd.f32 %v1821, %v1829
    %v1832 = vtanh.pop %v1831
    %1834 = vrot.lane.b32.xlu0 %v1832, 64
    %v1835 = vpop.permute.xlu0 %1834
    %v1837 = vmul.f32 %v1820, %v1835
    %1839 = vrot.lane.b32.xlu0 %v1837, 32
    %v1840 = vpop.permute.xlu0 %1839
    %1842 = vst.msk [vmem:[%s371] sm:$0xff] %vm225, %v1840
    %v1843 = vld [vmem:[%s373] sm:$0xff]
    %v1844 = vpack.c.bf16 %v1837, %v1837
    %1846 = vrot.lane.b32.xlu0 %v1844, 32
    %v1847 = vpop.permute.xlu0 %1846
    %v1849 = vsel %vm225, %v1847, 0
    %1851 = vmatprep.subr.bf16.mxu0 0
    %1852 = vmatpush1.bf16.msra.mxu0 %v1697
    %1853 = vmatprep.subr.bf16.mxu0 0
    %1854 = vmatpush1.bf16.msra.mxu0 %v1698
    %1855 = vmatprep.subr.bf16.mxu0 0
    %1856 = vmatpush1.bf16.msra.mxu0 0
    %1857 = vmatprep.subr.bf16.mxu0 0
    %1858 = vmatpush1.bf16.msra.mxu0 0
    %1859 = vmatprep.subr.bf16.mxu0 0
    %1860 = vmatpush1.bf16.msra.mxu0 0
    %1861 = vmatprep.subr.bf16.mxu0 0
    %1862 = vmatpush1.bf16.msra.mxu0 0
    %1863 = vmatprep.subr.bf16.mxu0 0
    %1864 = vmatpush1.bf16.msra.mxu0 0
    %1865 = vmatprep.subr.bf16.mxu0 0
    %1866 = vmatpush1.bf16.msra.mxu0 0
    %1867 = vmatprep.subr.bf16.mxu0 0
    %1868 = vmatpush1.bf16.msra.mxu0 0
    %1869 = vmatprep.subr.bf16.mxu0 0
    %1870 = vmatpush1.bf16.msra.mxu0 0
    %1871 = vmatprep.subr.bf16.mxu0 0
    %1872 = vmatpush1.bf16.msra.mxu0 0
    %1873 = vmatprep.subr.bf16.mxu0 0
    %1874 = vmatpush1.bf16.msra.mxu0 0
    %1875 = vmatprep.subr.bf16.mxu0 0
    %1876 = vmatpush1.bf16.msra.mxu0 0
    %1877 = vmatprep.subr.bf16.mxu0 0
    %1878 = vmatpush1.bf16.msra.mxu0 0
    %1879 = vmatprep.subr.bf16.mxu0 0
    %1880 = vmatpush1.bf16.msra.mxu0 0
    %1881 = vmatprep.subr.bf16.mxu0 0
    %1882 = vmatpush1.bf16.msra.mxu0 0
    %1883 = vmatprep.mubr.bf16.mxu0 0
    %1884 = vmatmul.mubr.bf16.gmra.mrb[0].mxu0 %v1849
    %v1885 = vpop.f32.mrb[0].mxu0
    %v1886 = vadd.f32 0.0, %v1885
    %v1887 = vpop.f32.mrb[0].mxu0
    %v1888 = vpop.f32.mrb[0].mxu0
    %v1889 = vpop.f32.mrb[0].mxu0
    %1890 = vdwg.mxu0
    %v1891 = vadd.f32 %v1843, %v1886
    %v1892 = vmul.f32 %v210, %v1891
    %v1893 = vtanh.pop %v1892
    %v1894 = vmul.f32 %v210, %v1893
    %v1895 = vadd.f32 %v1894, %v211
    %v1896 = vmul.f32 %v1895, %v1831
    %1898 = vrot.lane.b32.xlu0 %v1895, 64
    %v1899 = vpop.permute.xlu0 %1898
    %v1901 = vmul.f32 %v1895, %v1899
    %1903 = vrot.lane.b32.xlu0 %v1901, 32
    %v1904 = vpop.permute.xlu0 %1903
    %v1906 = vadd.f32 %v1896, %v1904
    %v1907 = vtanh.pop %v1906
    %1909 = vrot.lane.b32.xlu0 %v1907, 64
    %v1910 = vpop.permute.xlu0 %1909
    %v1912 = vmul.f32 %v1895, %v1910
    %1914 = vrot.lane.b32.xlu0 %v1912, 32
    %v1915 = vpop.permute.xlu0 %1914
    %1917 = vst.msk [vmem:[%s448] sm:$0xff] %vm225, %v1915
    %v1918 = vld [vmem:[%s450] sm:$0xff]
    %v1919 = vpack.c.bf16 %v1912, %v1912
    %1921 = vrot.lane.b32.xlu0 %v1919, 32
    %v1922 = vpop.permute.xlu0 %1921
    %v1924 = vsel %vm225, %v1922, 0
    %1926 = vmatprep.subr.bf16.mxu0 0
    %1927 = vmatpush1.bf16.msra.mxu0 %v1697
    %1928 = vmatprep.subr.bf16.mxu0 0
    %1929 = vmatpush1.bf16.msra.mxu0 %v1698
    %1930 = vmatprep.subr.bf16.mxu0 0
    %1931 = vmatpush1.bf16.msra.mxu0 0
    %1932 = vmatprep.subr.bf16.mxu0 0
    %1933 = vmatpush1.bf16.msra.mxu0 0
    %1934 = vmatprep.subr.bf16.mxu0 0
    %1935 = vmatpush1.bf16.msra.mxu0 0
    %1936 = vmatprep.subr.bf16.mxu0 0
    %1937 = vmatpush1.bf16.msra.mxu0 0
    %1938 = vmatprep.subr.bf16.mxu0 0
    %1939 = vmatpush1.bf16.msra.mxu0 0
    %1940 = vmatprep.subr.bf16.mxu0 0
    %1941 = vmatpush1.bf16.msra.mxu0 0
    %1942 = vmatprep.subr.bf16.mxu0 0
    %1943 = vmatpush1.bf16.msra.mxu0 0
    %1944 = vmatprep.subr.bf16.mxu0 0
    %1945 = vmatpush1.bf16.msra.mxu0 0
    %1946 = vmatprep.subr.bf16.mxu0 0
    %1947 = vmatpush1.bf16.msra.mxu0 0
    %1948 = vmatprep.subr.bf16.mxu0 0
    %1949 = vmatpush1.bf16.msra.mxu0 0
    %1950 = vmatprep.subr.bf16.mxu0 0
    %1951 = vmatpush1.bf16.msra.mxu0 0
    %1952 = vmatprep.subr.bf16.mxu0 0
    %1953 = vmatpush1.bf16.msra.mxu0 0
    %1954 = vmatprep.subr.bf16.mxu0 0
    %1955 = vmatpush1.bf16.msra.mxu0 0
    %1956 = vmatprep.subr.bf16.mxu0 0
    %1957 = vmatpush1.bf16.msra.mxu0 0
    %1958 = vmatprep.mubr.bf16.mxu0 0
    %1959 = vmatmul.mubr.bf16.gmra.mrb[0].mxu0 %v1924
    %v1960 = vpop.f32.mrb[0].mxu0
    %v1961 = vadd.f32 0.0, %v1960
    %v1962 = vpop.f32.mrb[0].mxu0
    %v1963 = vpop.f32.mrb[0].mxu0
    %v1964 = vpop.f32.mrb[0].mxu0
    %1965 = vdwg.mxu0
    %v1966 = vadd.f32 %v1918, %v1961
    %v1967 = vmul.f32 %v210, %v1966
    %v1968 = vtanh.pop %v1967
    %v1969 = vmul.f32 %v210, %v1968
    %v1970 = vadd.f32 %v1969, %v211
    %v1971 = vmul.f32 %v1970, %v1906
    %1973 = vrot.lane.b32.xlu0 %v1970, 64
    %v1974 = vpop.permute.xlu0 %1973
    %v1976 = vmul.f32 %v1970, %v1974
    %1978 = vrot.lane.b32.xlu0 %v1976, 32
    %v1979 = vpop.permute.xlu0 %1978
    %v1981 = vadd.f32 %v1971, %v1979
    %v1982 = vtanh.pop %v1981
    %1984 = vrot.lane.b32.xlu0 %v1982, 64
    %v1985 = vpop.permute.xlu0 %1984
    %v1987 = vmul.f32 %v1970, %v1985
    %1989 = vrot.lane.b32.xlu0 %v1987, 32
    %v1990 = vpop.permute.xlu0 %1989
    %1992 = vst.msk [vmem:[%s525] sm:$0xff] %vm225, %v1990
    %v1993 = vld [vmem:[%s527] sm:$0xff]
    %v1994 = vpack.c.bf16 %v1987, %v1987
    %1996 = vrot.lane.b32.xlu0 %v1994, 32
    %v1997 = vpop.permute.xlu0 %1996
    %v1999 = vsel %vm225, %v1997, 0
    %2001 = vmatprep.subr.bf16.mxu0 0
    %2002 = vmatpush1.bf16.msra.mxu0 %v1697
    %2003 = vmatprep.subr.bf16.mxu0 0
    %2004 = vmatpush1.bf16.msra.mxu0 %v1698
    %2005 = vmatprep.subr.bf16.mxu0 0
    %2006 = vmatpush1.bf16.msra.mxu0 0
    %2007 = vmatprep.subr.bf16.mxu0 0
    %2008 = vmatpush1.bf16.msra.mxu0 0
    %2009 = vmatprep.subr.bf16.mxu0 0
    %2010 = vmatpush1.bf16.msra.mxu0 0
    %2011 = vmatprep.subr.bf16.mxu0 0
    %2012 = vmatpush1.bf16.msra.mxu0 0
    %2013 = vmatprep.subr.bf16.mxu0 0
    %2014 = vmatpush1.bf16.msra.mxu0 0
    %2015 = vmatprep.subr.bf16.mxu0 0
    %2016 = vmatpush1.bf16.msra.mxu0 0
    %2017 = vmatprep.subr.bf16.mxu0 0
    %2018 = vmatpush1.bf16.msra.mxu0 0
    %2019 = vmatprep.subr.bf16.mxu0 0
    %2020 = vmatpush1.bf16.msra.mxu0 0
    %2021 = vmatprep.subr.bf16.mxu0 0
    %2022 = vmatpush1.bf16.msra.mxu0 0
    %2023 = vmatprep.subr.bf16.mxu0 0
    %2024 = vmatpush1.bf16.msra.mxu0 0
    %2025 = vmatprep.subr.bf16.mxu0 0
    %2026 = vmatpush1.bf16.msra.mxu0 0
    %2027 = vmatprep.subr.bf16.mxu0 0
    %2028 = vmatpush1.bf16.msra.mxu0 0
    %2029 = vmatprep.subr.bf16.mxu0 0
    %2030 = vmatpush1.bf16.msra.mxu0 0
    %2031 = vmatprep.subr.bf16.mxu0 0
    %2032 = vmatpush1.bf16.msra.mxu0 0
    %2033 = vmatprep.mubr.bf16.mxu0 0
    %2034 = vmatmul.mubr.bf16.gmra.mrb[0].mxu0 %v1999
    %v2035 = vpop.f32.mrb[0].mxu0
    %v2036 = vadd.f32 0.0, %v2035
    %v2037 = vpop.f32.mrb[0].mxu0
    %v2038 = vpop.f32.mrb[0].mxu0
    %v2039 = vpop.f32.mrb[0].mxu0
    %2040 = vdwg.mxu0
    %v2041 = vadd.f32 %v1993, %v2036
    %v2042 = vmul.f32 %v210, %v2041
    %v2043 = vtanh.pop %v2042
    %v2044 = vmul.f32 %v210, %v2043
    %v2045 = vadd.f32 %v2044, %v211
    %v2046 = vmul.f32 %v2045, %v1981
    %2048 = vrot.lane.b32.xlu0 %v2045, 64
    %v2049 = vpop.permute.xlu0 %2048
    %v2051 = vmul.f32 %v2045, %v2049
    %2053 = vrot.lane.b32.xlu0 %v2051, 32
    %v2054 = vpop.permute.xlu0 %2053
    %v2056 = vadd.f32 %v2046, %v2054
    %v2057 = vtanh.pop %v2056
    %2059 = vrot.lane.b32.xlu0 %v2057, 64
    %v2060 = vpop.permute.xlu0 %2059
    %v2062 = vmul.f32 %v2045, %v2060
    %2064 = vrot.lane.b32.xlu0 %v2062, 32
    %v2065 = vpop.permute.xlu0 %2064
    %2067 = vst.msk [vmem:[%s602] sm:$0xff] %vm225, %v2065
    %v2068 = vld [vmem:[%s604] sm:$0xff]
    %v2069 = vpack.c.bf16 %v2062, %v2062
    %2071 = vrot.lane.b32.xlu0 %v2069, 32
    %v2072 = vpop.permute.xlu0 %2071
    %v2074 = vsel %vm225, %v2072, 0
    %2076 = vmatprep.subr.bf16.mxu0 0
    %2077 = vmatpush1.bf16.msra.mxu0 %v1697
    %2078 = vmatprep.subr.bf16.mxu0 0
    %2079 = vmatpush1.bf16.msra.mxu0 %v1698
    %2080 = vmatprep.subr.bf16.mxu0 0
    %2081 = vmatpush1.bf16.msra.mxu0 0
    %2082 = vmatprep.subr.bf16.mxu0 0
    %2083 = vmatpush1.bf16.msra.mxu0 0
    %2084 = vmatprep.subr.bf16.mxu0 0
    %2085 = vmatpush1.bf16.msra.mxu0 0
    %2086 = vmatprep.subr.bf16.mxu0 0
    %2087 = vmatpush1.bf16.msra.mxu0 0
    %2088 = vmatprep.subr.bf16.mxu0 0
    %2089 = vmatpush1.bf16.msra.mxu0 0
    %2090 = vmatprep.subr.bf16.mxu0 0
    %2091 = vmatpush1.bf16.msra.mxu0 0
    %2092 = vmatprep.subr.bf16.mxu0 0
    %2093 = vmatpush1.bf16.msra.mxu0 0
    %2094 = vmatprep.subr.bf16.mxu0 0
    %2095 = vmatpush1.bf16.msra.mxu0 0
    %2096 = vmatprep.subr.bf16.mxu0 0
    %2097 = vmatpush1.bf16.msra.mxu0 0
    %2098 = vmatprep.subr.bf16.mxu0 0
    %2099 = vmatpush1.bf16.msra.mxu0 0
    %2100 = vmatprep.subr.bf16.mxu0 0
    %2101 = vmatpush1.bf16.msra.mxu0 0
    %2102 = vmatprep.subr.bf16.mxu0 0
    %2103 = vmatpush1.bf16.msra.mxu0 0
    %2104 = vmatprep.subr.bf16.mxu0 0
    %2105 = vmatpush1.bf16.msra.mxu0 0
    %2106 = vmatprep.subr.bf16.mxu0 0
    %2107 = vmatpush1.bf16.msra.mxu0 0
    %2108 = vmatprep.mubr.bf16.mxu0 0
    %2109 = vmatmul.mubr.bf16.gmra.mrb[0].mxu0 %v2074
    %v2110 = vpop.f32.mrb[0].mxu0
    %v2111 = vadd.f32 0.0, %v2110
    %v2112 = vpop.f32.mrb[0].mxu0
    %v2113 = vpop.f32.mrb[0].mxu0
    %v2114 = vpop.f32.mrb[0].mxu0
    %2115 = vdwg.mxu0
    %v2116 = vadd.f32 %v2068, %v2111
    %v2117 = vmul.f32 %v210, %v2116
    %v2118 = vtanh.pop %v2117
    %v2119 = vmul.f32 %v210, %v2118
    %v2120 = vadd.f32 %v2119, %v211
    %v2121 = vmul.f32 %v2120, %v2056
    %2123 = vrot.lane.b32.xlu0 %v2120, 64
    %v2124 = vpop.permute.xlu0 %2123
    %v2126 = vmul.f32 %v2120, %v2124
    %2128 = vrot.lane.b32.xlu0 %v2126, 32
    %v2129 = vpop.permute.xlu0 %2128
    %v2131 = vadd.f32 %v2121, %v2129
    %v2132 = vtanh.pop %v2131
    %2134 = vrot.lane.b32.xlu0 %v2132, 64
    %v2135 = vpop.permute.xlu0 %2134
    %v2137 = vmul.f32 %v2120, %v2135
    %2139 = vrot.lane.b32.xlu0 %v2137, 32
    %v2140 = vpop.permute.xlu0 %2139
    %2142 = vst.msk [vmem:[%s679] sm:$0xff] %vm225, %v2140
    %v2143 = vld [vmem:[%s681] sm:$0xff]
    %v2144 = vpack.c.bf16 %v2137, %v2137
    %2146 = vrot.lane.b32.xlu0 %v2144, 32
    %v2147 = vpop.permute.xlu0 %2146
    %v2149 = vsel %vm225, %v2147, 0
    %2151 = vmatprep.subr.bf16.mxu0 0
    %2152 = vmatpush1.bf16.msra.mxu0 %v1697
    %2153 = vmatprep.subr.bf16.mxu0 0
    %2154 = vmatpush1.bf16.msra.mxu0 %v1698
    %2155 = vmatprep.subr.bf16.mxu0 0
    %2156 = vmatpush1.bf16.msra.mxu0 0
    %2157 = vmatprep.subr.bf16.mxu0 0
    %2158 = vmatpush1.bf16.msra.mxu0 0
    %2159 = vmatprep.subr.bf16.mxu0 0
    %2160 = vmatpush1.bf16.msra.mxu0 0
    %2161 = vmatprep.subr.bf16.mxu0 0
    %2162 = vmatpush1.bf16.msra.mxu0 0
    %2163 = vmatprep.subr.bf16.mxu0 0
    %2164 = vmatpush1.bf16.msra.mxu0 0
    %2165 = vmatprep.subr.bf16.mxu0 0
    %2166 = vmatpush1.bf16.msra.mxu0 0
    %2167 = vmatprep.subr.bf16.mxu0 0
    %2168 = vmatpush1.bf16.msra.mxu0 0
    %2169 = vmatprep.subr.bf16.mxu0 0
    %2170 = vmatpush1.bf16.msra.mxu0 0
    %2171 = vmatprep.subr.bf16.mxu0 0
    %2172 = vmatpush1.bf16.msra.mxu0 0
    %2173 = vmatprep.subr.bf16.mxu0 0
    %2174 = vmatpush1.bf16.msra.mxu0 0
    %2175 = vmatprep.subr.bf16.mxu0 0
    %2176 = vmatpush1.bf16.msra.mxu0 0
    %2177 = vmatprep.subr.bf16.mxu0 0
    %2178 = vmatpush1.bf16.msra.mxu0 0
    %2179 = vmatprep.subr.bf16.mxu0 0
    %2180 = vmatpush1.bf16.msra.mxu0 0
    %2181 = vmatprep.subr.bf16.mxu0 0
    %2182 = vmatpush1.bf16.msra.mxu0 0
    %2183 = vmatprep.mubr.bf16.mxu0 0
    %2184 = vmatmul.mubr.bf16.gmra.mrb[0].mxu0 %v2149
    %v2185 = vpop.f32.mrb[0].mxu0
    %v2186 = vadd.f32 0.0, %v2185
    %v2187 = vpop.f32.mrb[0].mxu0
    %v2188 = vpop.f32.mrb[0].mxu0
    %v2189 = vpop.f32.mrb[0].mxu0
    %2190 = vdwg.mxu0
    %v2191 = vadd.f32 %v2143, %v2186
    %v2192 = vmul.f32 %v210, %v2191
    %v2193 = vtanh.pop %v2192
    %v2194 = vmul.f32 %v210, %v2193
    %v2195 = vadd.f32 %v2194, %v211
    %v2196 = vmul.f32 %v2195, %v2131
    %2198 = vrot.lane.b32.xlu0 %v2195, 64
    %v2199 = vpop.permute.xlu0 %2198
    %v2201 = vmul.f32 %v2195, %v2199
    %2203 = vrot.lane.b32.xlu0 %v2201, 32
    %v2204 = vpop.permute.xlu0 %2203
    %v2206 = vadd.f32 %v2196, %v2204
    %v2207 = vtanh.pop %v2206
    %2209 = vrot.lane.b32.xlu0 %v2207, 64
    %v2210 = vpop.permute.xlu0 %2209
    %v2212 = vmul.f32 %v2195, %v2210
    %2214 = vrot.lane.b32.xlu0 %v2212, 32
    %v2215 = vpop.permute.xlu0 %2214
    %2217 = vst.msk [vmem:[%s756] sm:$0xff] %vm225, %v2215
    %v2218 = vld [vmem:[%s758] sm:$0xff]
    %v2219 = vpack.c.bf16 %v2212, %v2212
    %2221 = vrot.lane.b32.xlu0 %v2219, 32
    %v2222 = vpop.permute.xlu0 %2221
    %v2224 = vsel %vm225, %v2222, 0
    %2226 = vmatprep.subr.bf16.mxu0 0
    %2227 = vmatpush1.bf16.msra.mxu0 %v1697
    %2228 = vmatprep.subr.bf16.mxu0 0
    %2229 = vmatpush1.bf16.msra.mxu0 %v1698
    %2230 = vmatprep.subr.bf16.mxu0 0
    %2231 = vmatpush1.bf16.msra.mxu0 0
    %2232 = vmatprep.subr.bf16.mxu0 0
    %2233 = vmatpush1.bf16.msra.mxu0 0
    %2234 = vmatprep.subr.bf16.mxu0 0
    %2235 = vmatpush1.bf16.msra.mxu0 0
    %2236 = vmatprep.subr.bf16.mxu0 0
    %2237 = vmatpush1.bf16.msra.mxu0 0
    %2238 = vmatprep.subr.bf16.mxu0 0
    %2239 = vmatpush1.bf16.msra.mxu0 0
    %2240 = vmatprep.subr.bf16.mxu0 0
    %2241 = vmatpush1.bf16.msra.mxu0 0
    %2242 = vmatprep.subr.bf16.mxu0 0
    %2243 = vmatpush1.bf16.msra.mxu0 0
    %2244 = vmatprep.subr.bf16.mxu0 0
    %2245 = vmatpush1.bf16.msra.mxu0 0
    %2246 = vmatprep.subr.bf16.mxu0 0
    %2247 = vmatpush1.bf16.msra.mxu0 0
    %2248 = vmatprep.subr.bf16.mxu0 0
    %2249 = vmatpush1.bf16.msra.mxu0 0
    %2250 = vmatprep.subr.bf16.mxu0 0
    %2251 = vmatpush1.bf16.msra.mxu0 0
    %2252 = vmatprep.subr.bf16.mxu0 0
    %2253 = vmatpush1.bf16.msra.mxu0 0
    %2254 = vmatprep.subr.bf16.mxu0 0
    %2255 = vmatpush1.bf16.msra.mxu0 0
    %2256 = vmatprep.subr.bf16.mxu0 0
    %2257 = vmatpush1.bf16.msra.mxu0 0
    %2258 = vmatprep.mubr.bf16.mxu0 0
    %2259 = vmatmul.mubr.bf16.gmra.mrb[0].mxu0 %v2224
    %v2260 = vpop.f32.mrb[0].mxu0
    %v2261 = vadd.f32 0.0, %v2260
    %v2262 = vpop.f32.mrb[0].mxu0
    %v2263 = vpop.f32.mrb[0].mxu0
    %v2264 = vpop.f32.mrb[0].mxu0
    %2265 = vdwg.mxu0
    %v2266 = vadd.f32 %v2218, %v2261
    %v2267 = vmul.f32 %v210, %v2266
    %v2268 = vtanh.pop %v2267
    %v2269 = vmul.f32 %v210, %v2268
    %v2270 = vadd.f32 %v2269, %v211
    %v2271 = vmul.f32 %v2270, %v2206
    %2273 = vrot.lane.b32.xlu0 %v2270, 64
    %v2274 = vpop.permute.xlu0 %2273
    %v2276 = vmul.f32 %v2270, %v2274
    %2278 = vrot.lane.b32.xlu0 %v2276, 32
    %v2279 = vpop.permute.xlu0 %2278
    %v2281 = vadd.f32 %v2271, %v2279
    %v2282 = vtanh.pop %v2281
    %2284 = vrot.lane.b32.xlu0 %v2282, 64
    %v2285 = vpop.permute.xlu0 %2284
    %v2287 = vmul.f32 %v2270, %v2285
    %2289 = vrot.lane.b32.xlu0 %v2287, 32
    %v2290 = vpop.permute.xlu0 %2289
    %2292 = vst.msk [vmem:[%s833] sm:$0xff] %vm225, %v2290
    %v2293 = vld [vmem:[#allocation3] sm:$0xff]
    %v2294 = vld [vmem:[#allocation3 + $0x8] sm:$0xff]
    %v2295 = vld [vmem:[#allocation3 + $0x10] sm:$0xff]
    %v2296 = vld [vmem:[#allocation3 + $0x18] sm:$0xff]
    %v2297 = vld [vmem:[#allocation3 + $0x20] sm:$0xff]
    %v2298 = vld [vmem:[#allocation3 + $0x28] sm:$0xff]
    %v2299 = vld [vmem:[#allocation3 + $0x30] sm:$0xff]
    %v2300 = vld [vmem:[#allocation3 + $0x38] sm:$0xff]
    %v2301 = vpack.c.bf16 %v2294, %v2293
    %v2302 = vpack.c.bf16 %v2296, %v2295
    %v2303 = vpack.c.bf16 %v2298, %v2297
    %v2304 = vpack.c.bf16 %v2300, %v2299
    %v2305 = vld [vmem:[%s10] sm:$0xf]
    %v2306 = vld [vmem:[%s10 + $0x4] sm:$0xf]
    %v2307 = vld [vmem:[%s10 + $0x8] sm:$0xf]
    %v2308 = vld [vmem:[%s10 + $0xc] sm:$0xf]
    %v2309 = vld [vmem:[%s12] sm:$0x1]
    %v2311 = vlaneseq
    %v2312 = vshrl.u32 %v2311, 7
    %v2313 = vsub.s32 0, %v2312
    %v2314 = vrot.slane %v2309, %v2313
    %v2320 = vunpack.c.l.b16 %v2305
    %v2321 = vunpack.c.l.b16 %v2306
    %v2322 = vunpack.c.l.b16 %v2307
    %v2323 = vunpack.c.l.b16 %v2308
    %v2324 = vpack.c.b16 %v2321, %v2320
    %v2325 = vpack.c.b16 %v2323, %v2322
    %v2329 = vsel %vm225, %v2301, 0
    %v2332 = vsel %vm225, %v2302, 0
    %v2335 = vsel %vm225, %v2303, 0
    %v2338 = vsel %vm225, %v2304, 0
    %2340 = vmatprep.subr.bf16.mxu0 0
    %2341 = vmatpush1.bf16.msra.mxu0 %v2324
    %2342 = vmatprep.subr.bf16.mxu0 0
    %2343 = vmatpush1.bf16.msra.mxu0 %v2325
    %2344 = vmatprep.subr.bf16.mxu0 0
    %2345 = vmatpush1.bf16.msra.mxu0 0
    %2346 = vmatprep.subr.bf16.mxu0 0
    %2347 = vmatpush1.bf16.msra.mxu0 0
    %2348 = vmatprep.subr.bf16.mxu0 0
    %2349 = vmatpush1.bf16.msra.mxu0 0
    %2350 = vmatprep.subr.bf16.mxu0 0
    %2351 = vmatpush1.bf16.msra.mxu0 0
    %2352 = vmatprep.subr.bf16.mxu0 0
    %2353 = vmatpush1.bf16.msra.mxu0 0
    %2354 = vmatprep.subr.bf16.mxu0 0
    %2355 = vmatpush1.bf16.msra.mxu0 0
    %2356 = vmatprep.subr.bf16.mxu0 0
    %2357 = vmatpush1.bf16.msra.mxu0 0
    %2358 = vmatprep.subr.bf16.mxu0 0
    %2359 = vmatpush1.bf16.msra.mxu0 0
    %2360 = vmatprep.subr.bf16.mxu0 0
    %2361 = vmatpush1.bf16.msra.mxu0 0
    %2362 = vmatprep.subr.bf16.mxu0 0
    %2363 = vmatpush1.bf16.msra.mxu0 0
    %2364 = vmatprep.subr.bf16.mxu0 0
    %2365 = vmatpush1.bf16.msra.mxu0 0
    %2366 = vmatprep.subr.bf16.mxu0 0
    %2367 = vmatpush1.bf16.msra.mxu0 0
    %2368 = vmatprep.subr.bf16.mxu0 0
    %2369 = vmatpush1.bf16.msra.mxu0 0
    %2370 = vmatprep.subr.bf16.mxu0 0
    %2371 = vmatpush1.bf16.msra.mxu0 0
    %2372 = vmatprep.mubr.bf16.mxu0 0
    %2373 = vmatmul.mubr.bf16.gmra.mrb[0].mxu0 %v2329
    %v2374 = vpop.f32.mrb[0].mxu0
    %v2375 = vadd.f32 %v2314, %v2374
    %v2376 = vpop.f32.mrb[0].mxu0
    %v2377 = vpop.f32.mrb[0].mxu0
    %v2378 = vadd.f32 %v2314, %v2377
    %v2379 = vpop.f32.mrb[0].mxu0
    %2380 = vmatprep.mubr.bf16.mxu0 0
    %2381 = vmatmul.mubr.bf16.gmra.mrb[0].mxu0 %v2332
    %v2382 = vpop.f32.mrb[0].mxu0
    %v2383 = vadd.f32 %v2314, %v2382
    %v2384 = vpop.f32.mrb[0].mxu0
    %v2385 = vpop.f32.mrb[0].mxu0
    %v2386 = vadd.f32 %v2314, %v2385
    %v2387 = vpop.f32.mrb[0].mxu0
    %2388 = vmatprep.mubr.bf16.mxu0 0
    %2389 = vmatmul.mubr.bf16.gmra.mrb[0].mxu0 %v2335
    %v2390 = vpop.f32.mrb[0].mxu0
    %v2391 = vadd.f32 %v2314, %v2390
    %v2392 = vpop.f32.mrb[0].mxu0
    %v2393 = vpop.f32.mrb[0].mxu0
    %v2394 = vadd.f32 %v2314, %v2393
    %v2395 = vpop.f32.mrb[0].mxu0
    %2396 = vmatprep.mubr.bf16.mxu0 0
    %2397 = vmatmul.mubr.bf16.gmra.mrb[0].mxu0 %v2338
    %v2398 = vpop.f32.mrb[0].mxu0
    %v2399 = vadd.f32 %v2314, %v2398
    %v2400 = vpop.f32.mrb[0].mxu0
    %v2401 = vpop.f32.mrb[0].mxu0
    %v2402 = vadd.f32 %v2314, %v2401
    %v2403 = vpop.f32.mrb[0].mxu0
    %2404 = vdwg.mxu0
    %2405 = vst [vmem:[#allocation2] sm:$0xff] %v2375
    %2406 = vst [vmem:[#allocation2 + $0x8] sm:$0xff] %v2378
    %2407 = vst [vmem:[#allocation2 + $0x10] sm:$0xff] %v2383
    %2408 = vst [vmem:[#allocation2 + $0x18] sm:$0xff] %v2386
    %2409 = vst [vmem:[#allocation2 + $0x20] sm:$0xff] %v2391
    %2410 = vst [vmem:[#allocation2 + $0x28] sm:$0xff] %v2394
    %2411 = vst [vmem:[#allocation2 + $0x30] sm:$0xff] %v2399
    %2412 = vst [vmem:[#allocation2 + $0x38] sm:$0xff] %v2402
    %v2413 = vld [vmem:[%s11] sm:$0xf]
    %v2414 = vld [vmem:[%s11 + $0x4] sm:$0xf]
    %v2415 = vld [vmem:[%s11 + $0x8] sm:$0xf]
    %v2416 = vld [vmem:[%s11 + $0xc] sm:$0xf]
    %v2417 = vld [vmem:[#allocation2] sm:$0xff]
    %v2422 = vunpack.c.l.b16 %v2413
    %v2423 = vunpack.c.l.b16 %v2414
    %v2424 = vunpack.c.l.b16 %v2415
    %v2425 = vunpack.c.l.b16 %v2416
    %v2426 = vpack.c.b16 %v2423, %v2422
    %v2427 = vpack.c.b16 %v2425, %v2424
    %2430 = vmatprep.subr.bf16.mxu0 0
    %2431 = vmatpush1.bf16.msra.mxu0 %v2426
    %2432 = vmatprep.subr.bf16.mxu0 0
    %2433 = vmatpush1.bf16.msra.mxu0 %v2427
    %2434 = vmatprep.subr.bf16.mxu0 0
    %2435 = vmatpush1.bf16.msra.mxu0 0
    %2436 = vmatprep.subr.bf16.mxu0 0
    %2437 = vmatpush1.bf16.msra.mxu0 0
    %2438 = vmatprep.subr.bf16.mxu0 0
    %2439 = vmatpush1.bf16.msra.mxu0 0
    %2440 = vmatprep.subr.bf16.mxu0 0
    %2441 = vmatpush1.bf16.msra.mxu0 0
    %2442 = vmatprep.subr.bf16.mxu0 0
    %2443 = vmatpush1.bf16.msra.mxu0 0
    %2444 = vmatprep.subr.bf16.mxu0 0
    %2445 = vmatpush1.bf16.msra.mxu0 0
    %2446 = vmatprep.subr.bf16.mxu0 0
    %2447 = vmatpush1.bf16.msra.mxu0 0
    %2448 = vmatprep.subr.bf16.mxu0 0
    %2449 = vmatpush1.bf16.msra.mxu0 0
    %2450 = vmatprep.subr.bf16.mxu0 0
    %2451 = vmatpush1.bf16.msra.mxu0 0
    %2452 = vmatprep.subr.bf16.mxu0 0
    %2453 = vmatpush1.bf16.msra.mxu0 0
    %2454 = vmatprep.subr.bf16.mxu0 0
    %2455 = vmatpush1.bf16.msra.mxu0 0
    %2456 = vmatprep.subr.bf16.mxu0 0
    %2457 = vmatpush1.bf16.msra.mxu0 0
    %2458 = vmatprep.subr.bf16.mxu0 0
    %2459 = vmatpush1.bf16.msra.mxu0 0
    %2460 = vmatprep.subr.bf16.mxu0 0
    %2461 = vmatpush1.bf16.msra.mxu0 0
    %2462 = vmatprep.mubr.bf16.mxu0 0
    %2463 = vmatmul.mubr.bf16.gmra.mrb[0].mxu0 %v227
    %v2464 = vpop.f32.mrb[0].mxu0
    %v2465 = vadd.f32 0.0, %v2464
    %v2466 = vpop.f32.mrb[0].mxu0
    %v2467 = vpop.f32.mrb[0].mxu0
    %v2468 = vpop.f32.mrb[0].mxu0
    %2469 = vdwg.mxu0
    %v2470 = vadd.f32 %v2417, %v2465
    %v2471 = vmul.f32 %v210, %v2470
    %v2472 = vtanh.pop %v2471
    %v2473 = vmul.f32 %v210, %v2472
    %v2474 = vadd.f32 %v2473, %v211
    %v2475 = vmul.f32 %v2474, 0.0
    %2477 = vrot.lane.b32.xlu0 %v2474, 64
    %v2478 = vpop.permute.xlu0 %2477
    %v2480 = vmul.f32 %v2474, %v2478
    %2482 = vrot.lane.b32.xlu0 %v2480, 32
    %v2483 = vpop.permute.xlu0 %2482
    %v2485 = vadd.f32 %v2475, %v2483
    %v2486 = vtanh.pop %v2485
    %2488 = vrot.lane.b32.xlu0 %v2486, 64
    %v2489 = vpop.permute.xlu0 %2488
    %v2491 = vmul.f32 %v2474, %v2489
    %2493 = vrot.lane.b32.xlu0 %v2491, 32
    %v2494 = vpop.permute.xlu0 %2493
    %2496 = vst.msk [vmem:[#allocation4] sm:$0xff] %vm225, %v2494
    %v2497 = vld [vmem:[%s296] sm:$0xff]
    %v2498 = vpack.c.bf16 %v2491, %v2491
    %2500 = vrot.lane.b32.xlu0 %v2498, 32
    %v2501 = vpop.permute.xlu0 %2500
    %v2503 = vsel %vm225, %v2501, 0
    %2505 = vmatprep.subr.bf16.mxu0 0
    %2506 = vmatpush1.bf16.msra.mxu0 %v2426
    %2507 = vmatprep.subr.bf16.mxu0 0
    %2508 = vmatpush1.bf16.msra.mxu0 %v2427
    %2509 = vmatprep.subr.bf16.mxu0 0
    %2510 = vmatpush1.bf16.msra.mxu0 0
    %2511 = vmatprep.subr.bf16.mxu0 0
    %2512 = vmatpush1.bf16.msra.mxu0 0
    %2513 = vmatprep.subr.bf16.mxu0 0
    %2514 = vmatpush1.bf16.msra.mxu0 0
    %2515 = vmatprep.subr.bf16.mxu0 0
    %2516 = vmatpush1.bf16.msra.mxu0 0
    %2517 = vmatprep.subr.bf16.mxu0 0
    %2518 = vmatpush1.bf16.msra.mxu0 0
    %2519 = vmatprep.subr.bf16.mxu0 0
    %2520 = vmatpush1.bf16.msra.mxu0 0
    %2521 = vmatprep.subr.bf16.mxu0 0
    %2522 = vmatpush1.bf16.msra.mxu0 0
    %2523 = vmatprep.subr.bf16.mxu0 0
    %2524 = vmatpush1.bf16.msra.mxu0 0
    %2525 = vmatprep.subr.bf16.mxu0 0
    %2526 = vmatpush1.bf16.msra.mxu0 0
    %2527 = vmatprep.subr.bf16.mxu0 0
    %2528 = vmatpush1.bf16.msra.mxu0 0
    %2529 = vmatprep.subr.bf16.mxu0 0
    %2530 = vmatpush1.bf16.msra.mxu0 0
    %2531 = vmatprep.subr.bf16.mxu0 0
    %2532 = vmatpush1.bf16.msra.mxu0 0
    %2533 = vmatprep.subr.bf16.mxu0 0
    %2534 = vmatpush1.bf16.msra.mxu0 0
    %2535 = vmatprep.subr.bf16.mxu0 0
    %2536 = vmatpush1.bf16.msra.mxu0 0
    %2537 = vmatprep.mubr.bf16.mxu0 0
    %2538 = vmatmul.mubr.bf16.gmra.mrb[0].mxu0 %v2503
    %v2539 = vpop.f32.mrb[0].mxu0
    %v2540 = vadd.f32 0.0, %v2539
    %v2541 = vpop.f32.mrb[0].mxu0
    %v2542 = vpop.f32.mrb[0].mxu0
    %v2543 = vpop.f32.mrb[0].mxu0
    %2544 = vdwg.mxu0
    %v2545 = vadd.f32 %v2497, %v2540
    %v2546 = vmul.f32 %v210, %v2545
    %v2547 = vtanh.pop %v2546
    %v2548 = vmul.f32 %v210, %v2547
    %v2549 = vadd.f32 %v2548, %v211
    %v2550 = vmul.f32 %v2549, %v2485
    %2552 = vrot.lane.b32.xlu0 %v2549, 64
    %v2553 = vpop.permute.xlu0 %2552
    %v2555 = vmul.f32 %v2549, %v2553
    %2557 = vrot.lane.b32.xlu0 %v2555, 32
    %v2558 = vpop.permute.xlu0 %2557
    %v2560 = vadd.f32 %v2550, %v2558
    %v2561 = vtanh.pop %v2560
    %2563 = vrot.lane.b32.xlu0 %v2561, 64
    %v2564 = vpop.permute.xlu0 %2563
    %v2566 = vmul.f32 %v2549, %v2564
    %2568 = vrot.lane.b32.xlu0 %v2566, 32
    %v2569 = vpop.permute.xlu0 %2568
    %2571 = vst.msk [vmem:[%s1114] sm:$0xff] %vm225, %v2569
    %v2572 = vld [vmem:[%s373] sm:$0xff]
    %v2573 = vpack.c.bf16 %v2566, %v2566
    %2575 = vrot.lane.b32.xlu0 %v2573, 32
    %v2576 = vpop.permute.xlu0 %2575
    %v2578 = vsel %vm225, %v2576, 0
    %2580 = vmatprep.subr.bf16.mxu0 0
    %2581 = vmatpush1.bf16.msra.mxu0 %v2426
    %2582 = vmatprep.subr.bf16.mxu0 0
    %2583 = vmatpush1.bf16.msra.mxu0 %v2427
    %2584 = vmatprep.subr.bf16.mxu0 0
    %2585 = vmatpush1.bf16.msra.mxu0 0
    %2586 = vmatprep.subr.bf16.mxu0 0
    %2587 = vmatpush1.bf16.msra.mxu0 0
    %2588 = vmatprep.subr.bf16.mxu0 0
    %2589 = vmatpush1.bf16.msra.mxu0 0
    %2590 = vmatprep.subr.bf16.mxu0 0
    %2591 = vmatpush1.bf16.msra.mxu0 0
    %2592 = vmatprep.subr.bf16.mxu0 0
    %2593 = vmatpush1.bf16.msra.mxu0 0
    %2594 = vmatprep.subr.bf16.mxu0 0
    %2595 = vmatpush1.bf16.msra.mxu0 0
    %2596 = vmatprep.subr.bf16.mxu0 0
    %2597 = vmatpush1.bf16.msra.mxu0 0
    %2598 = vmatprep.subr.bf16.mxu0 0
    %2599 = vmatpush1.bf16.msra.mxu0 0
    %2600 = vmatprep.subr.bf16.mxu0 0
    %2601 = vmatpush1.bf16.msra.mxu0 0
    %2602 = vmatprep.subr.bf16.mxu0 0
    %2603 = vmatpush1.bf16.msra.mxu0 0
    %2604 = vmatprep.subr.bf16.mxu0 0
    %2605 = vmatpush1.bf16.msra.mxu0 0
    %2606 = vmatprep.subr.bf16.mxu0 0
    %2607 = vmatpush1.bf16.msra.mxu0 0
    %2608 = vmatprep.subr.bf16.mxu0 0
    %2609 = vmatpush1.bf16.msra.mxu0 0
    %2610 = vmatprep.subr.bf16.mxu0 0
    %2611 = vmatpush1.bf16.msra.mxu0 0
    %2612 = vmatprep.mubr.bf16.mxu0 0
    %2613 = vmatmul.mubr.bf16.gmra.mrb[0].mxu0 %v2578
    %v2614 = vpop.f32.mrb[0].mxu0
    %v2615 = vadd.f32 0.0, %v2614
    %v2616 = vpop.f32.mrb[0].mxu0
    %v2617 = vpop.f32.mrb[0].mxu0
    %v2618 = vpop.f32.mrb[0].mxu0
    %2619 = vdwg.mxu0
    %v2620 = vadd.f32 %v2572, %v2615
    %v2621 = vmul.f32 %v210, %v2620
    %v2622 = vtanh.pop %v2621
    %v2623 = vmul.f32 %v210, %v2622
    %v2624 = vadd.f32 %v2623, %v211
    %v2625 = vmul.f32 %v2624, %v2560
    %2627 = vrot.lane.b32.xlu0 %v2624, 64
    %v2628 = vpop.permute.xlu0 %2627
    %v2630 = vmul.f32 %v2624, %v2628
    %2632 = vrot.lane.b32.xlu0 %v2630, 32
    %v2633 = vpop.permute.xlu0 %2632
    %v2635 = vadd.f32 %v2625, %v2633
    %v2636 = vtanh.pop %v2635
    %2638 = vrot.lane.b32.xlu0 %v2636, 64
    %v2639 = vpop.permute.xlu0 %2638
    %v2641 = vmul.f32 %v2624, %v2639
    %2643 = vrot.lane.b32.xlu0 %v2641, 32
    %v2644 = vpop.permute.xlu0 %2643
    %2646 = vst.msk [vmem:[%s1190] sm:$0xff] %vm225, %v2644
    %v2647 = vld [vmem:[%s450] sm:$0xff]
    %v2648 = vpack.c.bf16 %v2641, %v2641
    %2650 = vrot.lane.b32.xlu0 %v2648, 32
    %v2651 = vpop.permute.xlu0 %2650
    %v2653 = vsel %vm225, %v2651, 0
    %2655 = vmatprep.subr.bf16.mxu0 0
    %2656 = vmatpush1.bf16.msra.mxu0 %v2426
    %2657 = vmatprep.subr.bf16.mxu0 0
    %2658 = vmatpush1.bf16.msra.mxu0 %v2427
    %2659 = vmatprep.subr.bf16.mxu0 0
    %2660 = vmatpush1.bf16.msra.mxu0 0
    %2661 = vmatprep.subr.bf16.mxu0 0
    %2662 = vmatpush1.bf16.msra.mxu0 0
    %2663 = vmatprep.subr.bf16.mxu0 0
    %2664 = vmatpush1.bf16.msra.mxu0 0
    %2665 = vmatprep.subr.bf16.mxu0 0
    %2666 = vmatpush1.bf16.msra.mxu0 0
    %2667 = vmatprep.subr.bf16.mxu0 0
    %2668 = vmatpush1.bf16.msra.mxu0 0
    %2669 = vmatprep.subr.bf16.mxu0 0
    %2670 = vmatpush1.bf16.msra.mxu0 0
    %2671 = vmatprep.subr.bf16.mxu0 0
    %2672 = vmatpush1.bf16.msra.mxu0 0
    %2673 = vmatprep.subr.bf16.mxu0 0
    %2674 = vmatpush1.bf16.msra.mxu0 0
    %2675 = vmatprep.subr.bf16.mxu0 0
    %2676 = vmatpush1.bf16.msra.mxu0 0
    %2677 = vmatprep.subr.bf16.mxu0 0
    %2678 = vmatpush1.bf16.msra.mxu0 0
    %2679 = vmatprep.subr.bf16.mxu0 0
    %2680 = vmatpush1.bf16.msra.mxu0 0
    %2681 = vmatprep.subr.bf16.mxu0 0
    %2682 = vmatpush1.bf16.msra.mxu0 0
    %2683 = vmatprep.subr.bf16.mxu0 0
    %2684 = vmatpush1.bf16.msra.mxu0 0
    %2685 = vmatprep.subr.bf16.mxu0 0
    %2686 = vmatpush1.bf16.msra.mxu0 0
    %2687 = vmatprep.mubr.bf16.mxu0 0
    %2688 = vmatmul.mubr.bf16.gmra.mrb[0].mxu0 %v2653
    %v2689 = vpop.f32.mrb[0].mxu0
    %v2690 = vadd.f32 0.0, %v2689
    %v2691 = vpop.f32.mrb[0].mxu0
    %v2692 = vpop.f32.mrb[0].mxu0
    %v2693 = vpop.f32.mrb[0].mxu0
    %2694 = vdwg.mxu0
    %v2695 = vadd.f32 %v2647, %v2690
    %v2696 = vmul.f32 %v210, %v2695
    %v2697 = vtanh.pop %v2696
    %v2698 = vmul.f32 %v210, %v2697
    %v2699 = vadd.f32 %v2698, %v211
    %v2700 = vmul.f32 %v2699, %v2635
    %2702 = vrot.lane.b32.xlu0 %v2699, 64
    %v2703 = vpop.permute.xlu0 %2702
    %v2705 = vmul.f32 %v2699, %v2703
    %2707 = vrot.lane.b32.xlu0 %v2705, 32
    %v2708 = vpop.permute.xlu0 %2707
    %v2710 = vadd.f32 %v2700, %v2708
    %v2711 = vtanh.pop %v2710
    %2713 = vrot.lane.b32.xlu0 %v2711, 64
    %v2714 = vpop.permute.xlu0 %2713
    %v2716 = vmul.f32 %v2699, %v2714
    %2718 = vrot.lane.b32.xlu0 %v2716, 32
    %v2719 = vpop.permute.xlu0 %2718
    %2721 = vst.msk [vmem:[%s1266] sm:$0xff] %vm225, %v2719
    %v2722 = vld [vmem:[%s527] sm:$0xff]
    %v2723 = vpack.c.bf16 %v2716, %v2716
    %2725 = vrot.lane.b32.xlu0 %v2723, 32
    %v2726 = vpop.permute.xlu0 %2725
    %v2728 = vsel %vm225, %v2726, 0
    %2730 = vmatprep.subr.bf16.mxu0 0
    %2731 = vmatpush1.bf16.msra.mxu0 %v2426
    %2732 = vmatprep.subr.bf16.mxu0 0
    %2733 = vmatpush1.bf16.msra.mxu0 %v2427
    %2734 = vmatprep.subr.bf16.mxu0 0
    %2735 = vmatpush1.bf16.msra.mxu0 0
    %2736 = vmatprep.subr.bf16.mxu0 0
    %2737 = vmatpush1.bf16.msra.mxu0 0
    %2738 = vmatprep.subr.bf16.mxu0 0
    %2739 = vmatpush1.bf16.msra.mxu0 0
    %2740 = vmatprep.subr.bf16.mxu0 0
    %2741 = vmatpush1.bf16.msra.mxu0 0
    %2742 = vmatprep.subr.bf16.mxu0 0
    %2743 = vmatpush1.bf16.msra.mxu0 0
    %2744 = vmatprep.subr.bf16.mxu0 0
    %2745 = vmatpush1.bf16.msra.mxu0 0
    %2746 = vmatprep.subr.bf16.mxu0 0
    %2747 = vmatpush1.bf16.msra.mxu0 0
    %2748 = vmatprep.subr.bf16.mxu0 0
    %2749 = vmatpush1.bf16.msra.mxu0 0
    %2750 = vmatprep.subr.bf16.mxu0 0
    %2751 = vmatpush1.bf16.msra.mxu0 0
    %2752 = vmatprep.subr.bf16.mxu0 0
    %2753 = vmatpush1.bf16.msra.mxu0 0
    %2754 = vmatprep.subr.bf16.mxu0 0
    %2755 = vmatpush1.bf16.msra.mxu0 0
    %2756 = vmatprep.subr.bf16.mxu0 0
    %2757 = vmatpush1.bf16.msra.mxu0 0
    %2758 = vmatprep.subr.bf16.mxu0 0
    %2759 = vmatpush1.bf16.msra.mxu0 0
    %2760 = vmatprep.subr.bf16.mxu0 0
    %2761 = vmatpush1.bf16.msra.mxu0 0
    %2762 = vmatprep.mubr.bf16.mxu0 0
    %2763 = vmatmul.mubr.bf16.gmra.mrb[0].mxu0 %v2728
    %v2764 = vpop.f32.mrb[0].mxu0
    %v2765 = vadd.f32 0.0, %v2764
    %v2766 = vpop.f32.mrb[0].mxu0
    %v2767 = vpop.f32.mrb[0].mxu0
    %v2768 = vpop.f32.mrb[0].mxu0
    %2769 = vdwg.mxu0
    %v2770 = vadd.f32 %v2722, %v2765
    %v2771 = vmul.f32 %v210, %v2770
    %v2772 = vtanh.pop %v2771
    %v2773 = vmul.f32 %v210, %v2772
    %v2774 = vadd.f32 %v2773, %v211
    %v2775 = vmul.f32 %v2774, %v2710
    %2777 = vrot.lane.b32.xlu0 %v2774, 64
    %v2778 = vpop.permute.xlu0 %2777
    %v2780 = vmul.f32 %v2774, %v2778
    %2782 = vrot.lane.b32.xlu0 %v2780, 32
    %v2783 = vpop.permute.xlu0 %2782
    %v2785 = vadd.f32 %v2775, %v2783
    %v2786 = vtanh.pop %v2785
    %2788 = vrot.lane.b32.xlu0 %v2786, 64
    %v2789 = vpop.permute.xlu0 %2788
    %v2791 = vmul.f32 %v2774, %v2789
    %2793 = vrot.lane.b32.xlu0 %v2791, 32
    %v2794 = vpop.permute.xlu0 %2793
    %2796 = vst.msk [vmem:[%s1342] sm:$0xff] %vm225, %v2794
    %v2797 = vld [vmem:[%s604] sm:$0xff]
    %v2798 = vpack.c.bf16 %v2791, %v2791
    %2800 = vrot.lane.b32.xlu0 %v2798, 32
    %v2801 = vpop.permute.xlu0 %2800
    %v2803 = vsel %vm225, %v2801, 0
    %2805 = vmatprep.subr.bf16.mxu0 0
    %2806 = vmatpush1.bf16.msra.mxu0 %v2426
    %2807 = vmatprep.subr.bf16.mxu0 0
    %2808 = vmatpush1.bf16.msra.mxu0 %v2427
    %2809 = vmatprep.subr.bf16.mxu0 0
    %2810 = vmatpush1.bf16.msra.mxu0 0
    %2811 = vmatprep.subr.bf16.mxu0 0
    %2812 = vmatpush1.bf16.msra.mxu0 0
    %2813 = vmatprep.subr.bf16.mxu0 0
    %2814 = vmatpush1.bf16.msra.mxu0 0
    %2815 = vmatprep.subr.bf16.mxu0 0
    %2816 = vmatpush1.bf16.msra.mxu0 0
    %2817 = vmatprep.subr.bf16.mxu0 0
    %2818 = vmatpush1.bf16.msra.mxu0 0
    %2819 = vmatprep.subr.bf16.mxu0 0
    %2820 = vmatpush1.bf16.msra.mxu0 0
    %2821 = vmatprep.subr.bf16.mxu0 0
    %2822 = vmatpush1.bf16.msra.mxu0 0
    %2823 = vmatprep.subr.bf16.mxu0 0
    %2824 = vmatpush1.bf16.msra.mxu0 0
    %2825 = vmatprep.subr.bf16.mxu0 0
    %2826 = vmatpush1.bf16.msra.mxu0 0
    %2827 = vmatprep.subr.bf16.mxu0 0
    %2828 = vmatpush1.bf16.msra.mxu0 0
    %2829 = vmatprep.subr.bf16.mxu0 0
    %2830 = vmatpush1.bf16.msra.mxu0 0
    %2831 = vmatprep.subr.bf16.mxu0 0
    %2832 = vmatpush1.bf16.msra.mxu0 0
    %2833 = vmatprep.subr.bf16.mxu0 0
    %2834 = vmatpush1.bf16.msra.mxu0 0
    %2835 = vmatprep.subr.bf16.mxu0 0
    %2836 = vmatpush1.bf16.msra.mxu0 0
    %2837 = vmatprep.mubr.bf16.mxu0 0
    %2838 = vmatmul.mubr.bf16.gmra.mrb[0].mxu0 %v2803
    %v2839 = vpop.f32.mrb[0].mxu0
    %v2840 = vadd.f32 0.0, %v2839
    %v2841 = vpop.f32.mrb[0].mxu0
    %v2842 = vpop.f32.mrb[0].mxu0
    %v2843 = vpop.f32.mrb[0].mxu0
    %2844 = vdwg.mxu0
    %v2845 = vadd.f32 %v2797, %v2840
    %v2846 = vmul.f32 %v210, %v2845
    %v2847 = vtanh.pop %v2846
    %v2848 = vmul.f32 %v210, %v2847
    %v2849 = vadd.f32 %v2848, %v211
    %v2850 = vmul.f32 %v2849, %v2785
    %2852 = vrot.lane.b32.xlu0 %v2849, 64
    %v2853 = vpop.permute.xlu0 %2852
    %v2855 = vmul.f32 %v2849, %v2853
    %2857 = vrot.lane.b32.xlu0 %v2855, 32
    %v2858 = vpop.permute.xlu0 %2857
    %v2860 = vadd.f32 %v2850, %v2858
    %v2861 = vtanh.pop %v2860
    %2863 = vrot.lane.b32.xlu0 %v2861, 64
    %v2864 = vpop.permute.xlu0 %2863
    %v2866 = vmul.f32 %v2849, %v2864
    %2868 = vrot.lane.b32.xlu0 %v2866, 32
    %v2869 = vpop.permute.xlu0 %2868
    %2871 = vst.msk [vmem:[%s1418] sm:$0xff] %vm225, %v2869
    %v2872 = vld [vmem:[%s681] sm:$0xff]
    %v2873 = vpack.c.bf16 %v2866, %v2866
    %2875 = vrot.lane.b32.xlu0 %v2873, 32
    %v2876 = vpop.permute.xlu0 %2875
    %v2878 = vsel %vm225, %v2876, 0
    %2880 = vmatprep.subr.bf16.mxu0 0
    %2881 = vmatpush1.bf16.msra.mxu0 %v2426
    %2882 = vmatprep.subr.bf16.mxu0 0
    %2883 = vmatpush1.bf16.msra.mxu0 %v2427
    %2884 = vmatprep.subr.bf16.mxu0 0
    %2885 = vmatpush1.bf16.msra.mxu0 0
    %2886 = vmatprep.subr.bf16.mxu0 0
    %2887 = vmatpush1.bf16.msra.mxu0 0
    %2888 = vmatprep.subr.bf16.mxu0 0
    %2889 = vmatpush1.bf16.msra.mxu0 0
    %2890 = vmatprep.subr.bf16.mxu0 0
    %2891 = vmatpush1.bf16.msra.mxu0 0
    %2892 = vmatprep.subr.bf16.mxu0 0
    %2893 = vmatpush1.bf16.msra.mxu0 0
    %2894 = vmatprep.subr.bf16.mxu0 0
    %2895 = vmatpush1.bf16.msra.mxu0 0
    %2896 = vmatprep.subr.bf16.mxu0 0
    %2897 = vmatpush1.bf16.msra.mxu0 0
    %2898 = vmatprep.subr.bf16.mxu0 0
    %2899 = vmatpush1.bf16.msra.mxu0 0
    %2900 = vmatprep.subr.bf16.mxu0 0
    %2901 = vmatpush1.bf16.msra.mxu0 0
    %2902 = vmatprep.subr.bf16.mxu0 0
    %2903 = vmatpush1.bf16.msra.mxu0 0
    %2904 = vmatprep.subr.bf16.mxu0 0
    %2905 = vmatpush1.bf16.msra.mxu0 0
    %2906 = vmatprep.subr.bf16.mxu0 0
    %2907 = vmatpush1.bf16.msra.mxu0 0
    %2908 = vmatprep.subr.bf16.mxu0 0
    %2909 = vmatpush1.bf16.msra.mxu0 0
    %2910 = vmatprep.subr.bf16.mxu0 0
    %2911 = vmatpush1.bf16.msra.mxu0 0
    %2912 = vmatprep.mubr.bf16.mxu0 0
    %2913 = vmatmul.mubr.bf16.gmra.mrb[0].mxu0 %v2878
    %v2914 = vpop.f32.mrb[0].mxu0
    %v2915 = vadd.f32 0.0, %v2914
    %v2916 = vpop.f32.mrb[0].mxu0
    %v2917 = vpop.f32.mrb[0].mxu0
    %v2918 = vpop.f32.mrb[0].mxu0
    %2919 = vdwg.mxu0
    %v2920 = vadd.f32 %v2872, %v2915
    %v2921 = vmul.f32 %v210, %v2920
    %v2922 = vtanh.pop %v2921
    %v2923 = vmul.f32 %v210, %v2922
    %v2924 = vadd.f32 %v2923, %v211
    %v2925 = vmul.f32 %v2924, %v2860
    %2927 = vrot.lane.b32.xlu0 %v2924, 64
    %v2928 = vpop.permute.xlu0 %2927
    %v2930 = vmul.f32 %v2924, %v2928
    %2932 = vrot.lane.b32.xlu0 %v2930, 32
    %v2933 = vpop.permute.xlu0 %2932
    %v2935 = vadd.f32 %v2925, %v2933
    %v2936 = vtanh.pop %v2935
    %2938 = vrot.lane.b32.xlu0 %v2936, 64
    %v2939 = vpop.permute.xlu0 %2938
    %v2941 = vmul.f32 %v2924, %v2939
    %2943 = vrot.lane.b32.xlu0 %v2941, 32
    %v2944 = vpop.permute.xlu0 %2943
    %2946 = vst.msk [vmem:[%s1494] sm:$0xff] %vm225, %v2944
    %v2947 = vld [vmem:[%s758] sm:$0xff]
    %v2948 = vpack.c.bf16 %v2941, %v2941
    %2950 = vrot.lane.b32.xlu0 %v2948, 32
    %v2951 = vpop.permute.xlu0 %2950
    %v2953 = vsel %vm225, %v2951, 0
    %2955 = vmatprep.subr.bf16.mxu0 0
    %2956 = vmatpush1.bf16.msra.mxu0 %v2426
    %2957 = vmatprep.subr.bf16.mxu0 0
    %2958 = vmatpush1.bf16.msra.mxu0 %v2427
    %2959 = vmatprep.subr.bf16.mxu0 0
    %2960 = vmatpush1.bf16.msra.mxu0 0
    %2961 = vmatprep.subr.bf16.mxu0 0
    %2962 = vmatpush1.bf16.msra.mxu0 0
    %2963 = vmatprep.subr.bf16.mxu0 0
    %2964 = vmatpush1.bf16.msra.mxu0 0
    %2965 = vmatprep.subr.bf16.mxu0 0
    %2966 = vmatpush1.bf16.msra.mxu0 0
    %2967 = vmatprep.subr.bf16.mxu0 0
    %2968 = vmatpush1.bf16.msra.mxu0 0
    %2969 = vmatprep.subr.bf16.mxu0 0
    %2970 = vmatpush1.bf16.msra.mxu0 0
    %2971 = vmatprep.subr.bf16.mxu0 0
    %2972 = vmatpush1.bf16.msra.mxu0 0
    %2973 = vmatprep.subr.bf16.mxu0 0
    %2974 = vmatpush1.bf16.msra.mxu0 0
    %2975 = vmatprep.subr.bf16.mxu0 0
    %2976 = vmatpush1.bf16.msra.mxu0 0
    %2977 = vmatprep.subr.bf16.mxu0 0
    %2978 = vmatpush1.bf16.msra.mxu0 0
    %2979 = vmatprep.subr.bf16.mxu0 0
    %2980 = vmatpush1.bf16.msra.mxu0 0
    %2981 = vmatprep.subr.bf16.mxu0 0
    %2982 = vmatpush1.bf16.msra.mxu0 0
    %2983 = vmatprep.subr.bf16.mxu0 0
    %2984 = vmatpush1.bf16.msra.mxu0 0
    %2985 = vmatprep.subr.bf16.mxu0 0
    %2986 = vmatpush1.bf16.msra.mxu0 0
    %2987 = vmatprep.mubr.bf16.mxu0 0
    %2988 = vmatmul.mubr.bf16.gmra.mrb[0].mxu0 %v2953
    %v2989 = vpop.f32.mrb[0].mxu0
    %v2990 = vadd.f32 0.0, %v2989
    %v2991 = vpop.f32.mrb[0].mxu0
    %v2992 = vpop.f32.mrb[0].mxu0
    %v2993 = vpop.f32.mrb[0].mxu0
    %2994 = vdwg.mxu0
    %v2995 = vadd.f32 %v2947, %v2990
    %v2996 = vmul.f32 %v210, %v2995
    %v2997 = vtanh.pop %v2996
    %v2998 = vmul.f32 %v210, %v2997
    %v2999 = vadd.f32 %v2998, %v211
    %v3000 = vmul.f32 %v2999, %v2935
    %3002 = vrot.lane.b32.xlu0 %v2999, 64
    %v3003 = vpop.permute.xlu0 %3002
    %v3005 = vmul.f32 %v2999, %v3003
    %3007 = vrot.lane.b32.xlu0 %v3005, 32
    %v3008 = vpop.permute.xlu0 %3007
    %v3010 = vadd.f32 %v3000, %v3008
    %v3011 = vtanh.pop %v3010
    %3013 = vrot.lane.b32.xlu0 %v3011, 64
    %v3014 = vpop.permute.xlu0 %3013
    %v3016 = vmul.f32 %v2999, %v3014
    %3018 = vrot.lane.b32.xlu0 %v3016, 32
    %v3019 = vpop.permute.xlu0 %3018
    %3021 = vst.msk [vmem:[%s1570] sm:$0xff] %vm225, %v3019
    %v3022 = vld [vmem:[#allocation4] sm:$0xff]
    %v3023 = vld [vmem:[#allocation4 + $0x8] sm:$0xff]
    %v3024 = vld [vmem:[#allocation4 + $0x10] sm:$0xff]
    %v3025 = vld [vmem:[#allocation4 + $0x18] sm:$0xff]
    %v3026 = vld [vmem:[#allocation4 + $0x20] sm:$0xff]
    %v3027 = vld [vmem:[#allocation4 + $0x28] sm:$0xff]
    %v3028 = vld [vmem:[#allocation4 + $0x30] sm:$0xff]
    %v3029 = vld [vmem:[#allocation4 + $0x38] sm:$0xff]
    %v3030 = vpack.c.bf16 %v3023, %v3022
    %v3031 = vpack.c.bf16 %v3025, %v3024
    %v3032 = vpack.c.bf16 %v3027, %v3026
    %v3033 = vpack.c.bf16 %v3029, %v3028
    %v3034 = vld [vmem:[%s13] sm:$0xf]
    %v3035 = vld [vmem:[%s13 + $0x4] sm:$0xf]
    %v3036 = vld [vmem:[%s13 + $0x8] sm:$0xf]
    %v3037 = vld [vmem:[%s13 + $0xc] sm:$0xf]
    %v3038 = vld [vmem:[%s14] sm:$0x1]
    %v3040 = vlaneseq
    %v3041 = vshrl.u32 %v3040, 7
    %v3042 = vsub.s32 0, %v3041
    %v3043 = vrot.slane %v3038, %v3042
    %v3049 = vunpack.c.l.b16 %v3034
    %v3050 = vunpack.c.l.b16 %v3035
    %v3051 = vunpack.c.l.b16 %v3036
    %v3052 = vunpack.c.l.b16 %v3037
    %v3053 = vpack.c.b16 %v3050, %v3049
    %v3054 = vpack.c.b16 %v3052, %v3051
    %v3058 = vsel %vm225, %v3030, 0
    %v3061 = vsel %vm225, %v3031, 0
    %v3064 = vsel %vm225, %v3032, 0
    %v3067 = vsel %vm225, %v3033, 0
    %3069 = vmatprep.subr.bf16.mxu0 0
    %3070 = vmatpush1.bf16.msra.mxu0 %v3053
    %3071 = vmatprep.subr.bf16.mxu0 0
    %3072 = vmatpush1.bf16.msra.mxu0 %v3054
    %3073 = vmatprep.subr.bf16.mxu0 0
    %3074 = vmatpush1.bf16.msra.mxu0 0
    %3075 = vmatprep.subr.bf16.mxu0 0
    %3076 = vmatpush1.bf16.msra.mxu0 0
    %3077 = vmatprep.subr.bf16.mxu0 0
    %3078 = vmatpush1.bf16.msra.mxu0 0
    %3079 = vmatprep.subr.bf16.mxu0 0
    %3080 = vmatpush1.bf16.msra.mxu0 0
    %3081 = vmatprep.subr.bf16.mxu0 0
    %3082 = vmatpush1.bf16.msra.mxu0 0
    %3083 = vmatprep.subr.bf16.mxu0 0
    %3084 = vmatpush1.bf16.msra.mxu0 0
    %3085 = vmatprep.subr.bf16.mxu0 0
    %3086 = vmatpush1.bf16.msra.mxu0 0
    %3087 = vmatprep.subr.bf16.mxu0 0
    %3088 = vmatpush1.bf16.msra.mxu0 0
    %3089 = vmatprep.subr.bf16.mxu0 0
    %3090 = vmatpush1.bf16.msra.mxu0 0
    %3091 = vmatprep.subr.bf16.mxu0 0
    %3092 = vmatpush1.bf16.msra.mxu0 0
    %3093 = vmatprep.subr.bf16.mxu0 0
    %3094 = vmatpush1.bf16.msra.mxu0 0
    %3095 = vmatprep.subr.bf16.mxu0 0
    %3096 = vmatpush1.bf16.msra.mxu0 0
    %3097 = vmatprep.subr.bf16.mxu0 0
    %3098 = vmatpush1.bf16.msra.mxu0 0
    %3099 = vmatprep.subr.bf16.mxu0 0
    %3100 = vmatpush1.bf16.msra.mxu0 0
    %3101 = vmatprep.mubr.bf16.mxu0 0
    %3102 = vmatmul.mubr.bf16.gmra.mrb[0].mxu0 %v3058
    %v3103 = vpop.f32.mrb[0].mxu0
    %v3104 = vadd.f32 %v3043, %v3103
    %v3105 = vpop.f32.mrb[0].mxu0
    %v3106 = vpop.f32.mrb[0].mxu0
    %v3107 = vadd.f32 %v3043, %v3106
    %v3108 = vpop.f32.mrb[0].mxu0
    %3109 = vmatprep.mubr.bf16.mxu0 0
    %3110 = vmatmul.mubr.bf16.gmra.mrb[0].mxu0 %v3061
    %v3111 = vpop.f32.mrb[0].mxu0
    %v3112 = vadd.f32 %v3043, %v3111
    %v3113 = vpop.f32.mrb[0].mxu0
    %v3114 = vpop.f32.mrb[0].mxu0
    %v3115 = vadd.f32 %v3043, %v3114
    %v3116 = vpop.f32.mrb[0].mxu0
    %3117 = vmatprep.mubr.bf16.mxu0 0
    %3118 = vmatmul.mubr.bf16.gmra.mrb[0].mxu0 %v3064
    %v3119 = vpop.f32.mrb[0].mxu0
    %v3120 = vadd.f32 %v3043, %v3119
    %v3121 = vpop.f32.mrb[0].mxu0
    %v3122 = vpop.f32.mrb[0].mxu0
    %v3123 = vadd.f32 %v3043, %v3122
    %v3124 = vpop.f32.mrb[0].mxu0
    %3125 = vmatprep.mubr.bf16.mxu0 0
    %3126 = vmatmul.mubr.bf16.gmra.mrb[0].mxu0 %v3067
    %v3127 = vpop.f32.mrb[0].mxu0
    %v3128 = vadd.f32 %v3043, %v3127
    %v3129 = vpop.f32.mrb[0].mxu0
    %v3130 = vpop.f32.mrb[0].mxu0
    %v3131 = vadd.f32 %v3043, %v3130
    %v3132 = vpop.f32.mrb[0].mxu0
    %3133 = vdwg.mxu0
    %3134 = vmax.xlane.f32.xlu0 %v3104
    %v3135 = vpop.xlane.xlu0 %3134
    %3136 = vmax.xlane.f32.xlu0 %v3107
    %v3137 = vpop.xlane.xlu0 %3136
    %3138 = vmax.xlane.f32.xlu0 %v3112
    %v3139 = vpop.xlane.xlu0 %3138
    %3140 = vmax.xlane.f32.xlu0 %v3115
    %v3141 = vpop.xlane.xlu0 %3140
    %3142 = vmax.xlane.f32.xlu0 %v3120
    %v3143 = vpop.xlane.xlu0 %3142
    %3144 = vmax.xlane.f32.xlu0 %v3123
    %v3145 = vpop.xlane.xlu0 %3144
    %3146 = vmax.xlane.f32.xlu0 %v3128
    %v3147 = vpop.xlane.xlu0 %3146
    %3148 = vmax.xlane.f32.xlu0 %v3131
    %v3149 = vpop.xlane.xlu0 %3148
    %v3150 = vsub.f32 %v3104, %v3135
    %v3151 = vsub.f32 %v3107, %v3137
    %v3152 = vsub.f32 %v3112, %v3139
    %v3153 = vsub.f32 %v3115, %v3141
    %v3154 = vsub.f32 %v3120, %v3143
    %v3155 = vsub.f32 %v3123, %v3145
    %v3156 = vsub.f32 %v3128, %v3147
    %v3157 = vsub.f32 %v3131, %v3149
    %v3158 = vmul.f32 %v3150, 1.442695
    %v3159 = vpow.pop %v3158
    %v3160 = vmul.f32 %v3151, 1.442695
    %v3161 = vpow.pop %v3160
    %v3162 = vmul.f32 %v3152, 1.442695
    %v3163 = vpow.pop %v3162
    %v3164 = vmul.f32 %v3153, 1.442695
    %v3165 = vpow.pop %v3164
    %v3166 = vmul.f32 %v3154, 1.442695
    %v3167 = vpow.pop %v3166
    %v3168 = vmul.f32 %v3155, 1.442695
    %v3169 = vpow.pop %v3168
    %v3170 = vmul.f32 %v3156, 1.442695
    %v3171 = vpow.pop %v3170
    %v3172 = vmul.f32 %v3157, 1.442695
    %v3173 = vpow.pop %v3172
    %3174 = vadd.xlane.f32.xlu0 %v3159
    %v3175 = vpop.xlane.xlu0 %3174
    %3176 = vadd.xlane.f32.xlu0 %v3161
    %v3177 = vpop.xlane.xlu0 %3176
    %3178 = vadd.xlane.f32.xlu0 %v3163
    %v3179 = vpop.xlane.xlu0 %3178
    %3180 = vadd.xlane.f32.xlu0 %v3165
    %v3181 = vpop.xlane.xlu0 %3180
    %3182 = vadd.xlane.f32.xlu0 %v3167
    %v3183 = vpop.xlane.xlu0 %3182
    %3184 = vadd.xlane.f32.xlu0 %v3169
    %v3185 = vpop.xlane.xlu0 %3184
    %3186 = vadd.xlane.f32.xlu0 %v3171
    %v3187 = vpop.xlane.xlu0 %3186
    %3188 = vadd.xlane.f32.xlu0 %v3173
    %v3189 = vpop.xlane.xlu0 %3188
    %v3190 = vlog2.pop %v3175
    %v3191 = vmul.f32 %v3190, 0.6931472
    %v3192 = vlog2.pop %v3177
    %v3193 = vmul.f32 %v3192, 0.6931472
    %v3194 = vlog2.pop %v3179
    %v3195 = vmul.f32 %v3194, 0.6931472
    %v3196 = vlog2.pop %v3181
    %v3197 = vmul.f32 %v3196, 0.6931472
    %v3198 = vlog2.pop %v3183
    %v3199 = vmul.f32 %v3198, 0.6931472
    %v3200 = vlog2.pop %v3185
    %v3201 = vmul.f32 %v3200, 0.6931472
    %v3202 = vlog2.pop %v3187
    %v3203 = vmul.f32 %v3202, 0.6931472
    %v3204 = vlog2.pop %v3189
    %v3205 = vmul.f32 %v3204, 0.6931472
    %v3206 = vsub.f32 %v3150, %v3191
    %v3207 = vsub.f32 %v3151, %v3193
    %v3208 = vsub.f32 %v3152, %v3195
    %v3209 = vsub.f32 %v3153, %v3197
    %v3210 = vsub.f32 %v3154, %v3199
    %v3211 = vsub.f32 %v3155, %v3201
    %v3212 = vsub.f32 %v3156, %v3203
    %v3213 = vsub.f32 %v3157, %v3205
    %3214 = vst [vmem:[#allocation11] sm:$0xff] %v3206
    %3215 = vst [vmem:[#allocation11 + $0x8] sm:$0xff] %v3207
    %3216 = vst [vmem:[#allocation11 + $0x10] sm:$0xff] %v3208
    %3217 = vst [vmem:[#allocation11 + $0x18] sm:$0xff] %v3209
    %3218 = vst [vmem:[#allocation11 + $0x20] sm:$0xff] %v3210
    %3219 = vst [vmem:[#allocation11 + $0x28] sm:$0xff] %v3211
    %3220 = vst [vmem:[#allocation11 + $0x30] sm:$0xff] %v3212
    %3221 = vst [vmem:[#allocation11 + $0x38] sm:$0xff] %v3213
    // Predicated region
    $region74: #{tpu_custom_call.1} parent=1 // pred_check
      _
    $region75: #{tpu_custom_call.1} parent=1 // pred_check_branch
      %3223 = sbr.rel (0) target = $region77
    $region76: #{tpu_custom_call.1} parent=1 // pred_region
      %s3225 = ssub.s32 1024, 1024
      %3226 = vsyncadd [#allocation7], %s3225
      %s3227 = sshll.u32 [#allocation11], 4
      %s3228 = int_to_ptr.vmem [resolvable:$true] %s3227
      %3233 = dma.vmem_to_hbm [thread:$0]  %s3228, 1024, %s15, [#allocation7], 128, 128, 8
    $region77: #{tpu_custom_call.1} parent=1 // pred_fallthru
      _
    // Predicated region
    $region78: #{tpu_custom_call.1} parent=1 // pred_check
      _
    $region79: #{tpu_custom_call.1} parent=1 // pred_check_branch
      %3235 = sbr.rel (0) target = $region81
    $region80: #{tpu_custom_call.1} parent=1 // pred_region
      %3236 = dma.done [#allocation7], 1024
    $region81: #{tpu_custom_call.1} parent=1 // pred_fallthru
      _
    %3237 = vsyncpa [#allocation6], 1
    %3238 = vsyncpa [#allocation9], 1
    %3239 = vsyncpa [#allocation7], 1

</llo_original>
